<compile_context>
chip_gen: v7x
topology: tpu7x:2x2x1
jax: 0.10.0
libtpu: 0.0.40
codegen_flags: <defaults>
</compile_context>

<pallas_src>
import functools

import jax
import jax.numpy as jnp
from jax import lax
from jax.experimental import pallas as pl
from jax.experimental.pallas import tpu as pltpu

LANE = 128                       # lane-dense padded width for hidden/latent/class/proj dims
_VMEM_LIMIT = 32 * 1024 * 1024   # explicit budget; safe on v5e/v6e and v7x (64 MiB physical)


# ----------------------------------------------------------------------------
# small in-kernel matmul helpers (no host-side transposes)
# ----------------------------------------------------------------------------
def _dot_nt(a, b):
    """a @ b^T via dot_general dimension_numbers (transpose never materialized)."""
    return lax.dot_general(a, b, (((1,), (1,)), ((), ())),
                           preferred_element_type=jnp.float32)


def _dot_tn(a, b):
    """a^T @ b via dot_general dimension_numbers (transpose never materialized)."""
    return lax.dot_general(a, b, (((0,), (0,)), ((), ())),
                           preferred_element_type=jnp.float32)


# ----------------------------------------------------------------------------
# Fused 3-layer MLP: forward + backward Pallas kernels (custom VJP)
# ----------------------------------------------------------------------------
def _mlp_fwd_kernel(x_ref, w1_ref, b1_ref, w2_ref, b2_ref, w3_ref, b3_ref,
                    h_ref, ft_ref, logit_ref):
    # layer 1 + ReLU (bf16 MXU operands, f32 accumulation / elementwise)
    h = jnp.dot(x_ref[...], w1_ref[...], preferred_element_type=jnp.float32) + b1_ref[...]
    h = jnp.maximum(h, 0.0)
    hb = h.astype(jnp.bfloat16)
    h_ref[...] = hb                                   # residual for backward / Jacobian reg
    # layer 2 (penultimate feature, lane-padded)
    ft = jnp.dot(hb, w2_ref[...], preferred_element_type=jnp.float32) + b2_ref[...]
    ft_ref[...] = ft
    # layer 3 (logits, lane-padded)
    logit_ref[...] = (jnp.dot(ft.astype(jnp.bfloat16), w3_ref[...],
                              preferred_element_type=jnp.float32) + b3_ref[...])


def _mlp_pallas_fwd(x_flat, w1, b1, w2, b2, w3, b3):
    B, Din = x_flat.shape
    HP, LP, CP = w1.shape[1], w2.shape[1], w3.shape[1]
    TM = B if B <= 128 else 128
    assert B % TM == 0, "batch must be a multiple of the M tile"
    grid = (B // TM,)
    xb = x_flat.astype(jnp.bfloat16)
    w1b, w2b, w3b = (w1.astype(jnp.bfloat16), w2.astype(jnp.bfloat16),
                     w3.astype(jnp.bfloat16))
    h, ft, logits = pl.pallas_call(
        _mlp_fwd_kernel,
        out_shape=(jax.ShapeDtypeStruct((B, HP), jnp.bfloat16),
                   jax.ShapeDtypeStruct((B, LP), jnp.float32),
                   jax.ShapeDtypeStruct((B, CP), jnp.float32)),
        grid=grid,
        in_specs=[pl.BlockSpec((TM, Din), lambda i: (i, 0)),
                  pl.BlockSpec((Din, HP), lambda i: (0, 0)),   # weights stay VMEM-resident
                  pl.BlockSpec((1, HP), lambda i: (0, 0)),
                  pl.BlockSpec((HP, LP), lambda i: (0, 0)),
                  pl.BlockSpec((1, LP), lambda i: (0, 0)),
                  pl.BlockSpec((LP, CP), lambda i: (0, 0)),
                  pl.BlockSpec((1, CP), lambda i: (0, 0))],
        out_specs=(pl.BlockSpec((TM, HP), lambda i: (i, 0)),
                   pl.BlockSpec((TM, LP), lambda i: (i, 0)),
                   pl.BlockSpec((TM, CP), lambda i: (i, 0))),
        compiler_params=pltpu.CompilerParams(
            dimension_semantics=("parallel",),        # batch tiles independent (v7x: both TCs)
            vmem_limit_bytes=_VMEM_LIMIT),
    )(xb, w1b, b1, w2b, b2, w3b, b3)
    return h, ft, logits


def _mlp_bwd_kernel(x_ref, h_ref, ft_ref, w1_ref, w2_ref, w3_ref, gft_ref, glog_ref,
                    dx_ref, dw1_ref, db1_ref, dw2_ref, db2_ref, dw3_ref, db3_ref):
    @pl.when(pl.program_id(0) == 0)
    def _init():
        dw1_ref[...] = jnp.zeros_like(dw1_ref)
        db1_ref[...] = jnp.zeros_like(db1_ref)
        dw2_ref[...] = jnp.zeros_like(dw2_ref)
        db2_ref[...] = jnp.zeros_like(db2_ref)
        dw3_ref[...] = jnp.zeros_like(dw3_ref)
        db3_ref[...] = jnp.zeros_like(db3_ref)

    g3 = glog_ref[...]                                 # (TM, CP) f32
    ft = ft_ref[...]                                   # (TM, LP) f32
    h = h_ref[...].astype(jnp.float32)                 # (TM, HP)
    x32 = x_ref[...].astype(jnp.float32)               # (TM, Din)

    # dW3 = ft^T @ g3  (in-kernel transposed contraction), db3 folded in
    dw3_ref[...] += _dot_tn(ft, g3)
    db3_ref[...] += jnp.sum(g3, axis=0, keepdims=True)

    # g_ft_total = g_ft + g3 @ W3^T
    gft = gft_ref[...] + _dot_nt(g3.astype(jnp.bfloat16), w3_ref[...])
    dw2_ref[...] += _dot_tn(h, gft)
    db2_ref[...] += jnp.sum(gft, axis=0, keepdims=True)

    # g_h = (g_ft_total @ W2^T) * relu'(h)
    gh = _dot_nt(gft.astype(jnp.bfloat16), w2_ref[...])
    gh = jnp.where(h > 0.0, gh, 0.0)
    dw1_ref[...] += _dot_tn(x32, gh)
    db1_ref[...] += jnp.sum(gh, axis=0, keepdims=True)

    # dx = g_h @ W1^T
    dx_ref[...] = _dot_nt(gh.astype(jnp.bfloat16), w1_ref[...])


def _mlp_pallas_bwd(x_flat, h, ft, w1, w2, w3, g_ft, g_logits):
    B, Din = x_flat.shape
    HP, LP, CP = w1.shape[1], w2.shape[1], w3.shape[1]
    TM = B if B <= 128 else 128
    grid = (B // TM,)
    xb = x_flat.astype(jnp.bfloat16)
    w1b, w2b, w3b = (w1.astype(jnp.bfloat16), w2.astype(jnp.bfloat16),
                     w3.astype(jnp.bfloat16))
    return pl.pallas_call(
        _mlp_bwd_kernel,
        out_shape=(jax.ShapeDtypeStruct((B, Din), jnp.float32),
                   jax.ShapeDtypeStruct((Din, HP), jnp.float32),
                   jax.ShapeDtypeStruct((1, HP), jnp.float32),
                   jax.ShapeDtypeStruct((HP, LP), jnp.float32),
                   jax.ShapeDtypeStruct((1, LP), jnp.float32),
                   jax.ShapeDtypeStruct((LP, CP), jnp.float32),
                   jax.ShapeDtypeStruct((1, CP), jnp.float32)),
        grid=grid,
        in_specs=[pl.BlockSpec((TM, Din), lambda i: (i, 0)),
                  pl.BlockSpec((TM, HP), lambda i: (i, 0)),
                  pl.BlockSpec((TM, LP), lambda i: (i, 0)),
                  pl.BlockSpec((Din, HP), lambda i: (0, 0)),
                  pl.BlockSpec((HP, LP), lambda i: (0, 0)),
                  pl.BlockSpec((LP, CP), lambda i: (0, 0)),
                  pl.BlockSpec((TM, LP), lambda i: (i, 0)),
                  pl.BlockSpec((TM, CP), lambda i: (i, 0))],
        out_specs=(pl.BlockSpec((TM, Din), lambda i: (i, 0)),
                   pl.BlockSpec((Din, HP), lambda i: (0, 0)),   # dW/db accumulate in VMEM
                   pl.BlockSpec((1, HP), lambda i: (0, 0)),
                   pl.BlockSpec((HP, LP), lambda i: (0, 0)),
                   pl.BlockSpec((1, LP), lambda i: (0, 0)),
                   pl.BlockSpec((LP, CP), lambda i: (0, 0)),
                   pl.BlockSpec((1, CP), lambda i: (0, 0))),
        compiler_params=pltpu.CompilerParams(
            dimension_semantics=("arbitrary",),        # dW reduction over batch tiles
            vmem_limit_bytes=_VMEM_LIMIT),
    )(xb, h, ft, w1b, w2b, w3b, g_ft.astype(jnp.float32), g_logits.astype(jnp.float32))


@jax.custom_vjp
def mlp_apply(x_flat, w1, b1, w2, b2, w3, b3):
    """Fused linear+ReLU+linear+linear; returns (penultimate_ft, logits), both lane-padded."""
    _, ft, logits = _mlp_pallas_fwd(x_flat, w1, b1, w2, b2, w3, b3)
    return ft, logits


def _mlp_apply_fwd(x_flat, w1, b1, w2, b2, w3, b3):
    h, ft, logits = _mlp_pallas_fwd(x_flat, w1, b1, w2, b2, w3, b3)
    return (ft, logits), (x_flat, h, ft, w1, w2, w3)


def _mlp_apply_bwd(res, cot):
    x_flat, h, ft, w1, w2, w3 = res
    g_ft, g_logits = cot
    dx, dw1, db1, dw2, db2, dw3, db3 = _mlp_pallas_bwd(x_flat, h, ft, w1, w2, w3,
                                                       g_ft, g_logits)
    return dx, dw1, db1, dw2, db2, dw3, db3


mlp_apply.defvjp(_mlp_apply_fwd, _mlp_apply_bwd)


# ----------------------------------------------------------------------------
# Cross-entropy (masked log-sum-exp, batch mean computed in-kernel)
# ----------------------------------------------------------------------------
def _ce_kernel(logits_ref, onehot_ref, mask_ref, out_ref):
    logits = logits_ref[...]
    z = jnp.where(mask_ref[...] > 0.5, logits, -1e30)   # mask lane padding out of the LSE
    m = jnp.max(z, axis=-1, keepdims=True)
    lse = m + jnp.log(jnp.sum(jnp.exp(z - m), axis=-1, keepdims=True))
    tgt = jnp.sum(logits * onehot_ref[...], axis=-1, keepdims=True)
    per = lse - tgt                                      # (B, 1) per-sample CE
    out_ref[...] = jnp.sum(per, axis=0, keepdims=True) * (1.0 / logits.shape[0])


def _ce_impl(logits, onehot, mask):
    out = pl.pallas_call(
        _ce_kernel,
        out_shape=jax.ShapeDtypeStruct((1, 1), jnp.float32),
    )(logits.astype(jnp.float32), onehot, mask)
    return out[0, 0]


@jax.custom_vjp
def cross_entropy(logits, onehot, mask):
    return _ce_impl(logits, onehot, mask)


def _ce_fwd(logits, onehot, mask):
    return _ce_impl(logits, onehot, mask), (logits, onehot, mask)


def _ce_bwd(res, g):
    logits, onehot, mask = res
    B = logits.shape[0]
    p = jax.nn.softmax(jnp.where(mask > 0.5, logits, -1e30), axis=-1)
    return (p - onehot) * (g / B), jnp.zeros_like(onehot), jnp.zeros_like(mask)


cross_entropy.defvjp(_ce_fwd, _ce_bwd)


# ----------------------------------------------------------------------------
# SWD: single stacked projection matmul + per-direction reduction
# ----------------------------------------------------------------------------
def _proj_kernel(x_ref, p_ref, o_ref):
    o_ref[...] = jnp.dot(x_ref[...], p_ref[...], preferred_element_type=jnp.float32)


def _proj_bwd_kernel(g_ref, p_ref, o_ref):
    o_ref[...] = _dot_nt(g_ref[...], p_ref[...])        # g @ proj^T, no host transpose


def _proj_impl(stacked, proj_pad):
    N = stacked.shape[0]
    PP = proj_pad.shape[1]
    return pl.pallas_call(
        _proj_kernel,
        out_shape=jax.ShapeDtypeStruct((N, PP), jnp.float32),
    )(stacked.astype(jnp.bfloat16), proj_pad.astype(jnp.bfloat16))


@jax.custom_vjp
def swd_project(stacked, proj_pad):
    return _proj_impl(stacked, proj_pad)


def _swd_project_fwd(stacked, proj_pad):
    return _proj_impl(stacked, proj_pad), proj_pad


def _swd_project_bwd(proj_pad, g):
    N = g.shape[0]
    LP = proj_pad.shape[0]
    dstacked = pl.pallas_call(
        _proj_bwd_kernel,
        out_shape=jax.ShapeDtypeStruct((N, LP), jnp.float32),
    )(g.astype(jnp.bfloat16), proj_pad.astype(jnp.bfloat16))
    return dstacked, jnp.zeros_like(proj_pad)


swd_project.defvjp(_swd_project_fwd, _swd_project_bwd)


def _swd_reduce_kernel(s_ref, d_ref, o_ref):
    diff = s_ref[...] - d_ref[...]
    o_ref[...] = jnp.mean(diff * diff, axis=0, keepdims=True)   # (1, PP)


def _swd_reduce_impl(src_sorted, des_sorted):
    PP = src_sorted.shape[1]
    return pl.pallas_call(
        _swd_reduce_kernel,
        out_shape=jax.ShapeDtypeStruct((1, PP), jnp.float32),
    )(src_sorted.astype(jnp.float32), des_sorted.astype(jnp.float32))


@jax.custom_vjp
def swd_per_direction(src_sorted, des_sorted):
    return _swd_reduce_impl(src_sorted, des_sorted)


def _swd_red_fwd(s, d):
    return _swd_reduce_impl(s, d), (s, d)


def _swd_red_bwd(res, g):
    s, d = res
    ds = (2.0 / s.shape[0]) * (s - d) * g
    return ds, -ds


swd_per_direction.defvjp(_swd_red_fwd, _swd_red_bwd)


def swd_loss(src, des, proj_pad, num_proj, return_dir=False):
    """Sliced Wasserstein distance with fixed, lane-padded unit projections (LANE, LANE)."""
    B = src.shape[0]
    stacked = jnp.concatenate([src, des], axis=0)       # one projection matmul for src AND des
    projected = swd_project(stacked, proj_pad)          # (2B, LANE); padded dirs project to 0
    src_p, des_p = projected[:B], projected[B:]
    # TODO(synk): sorting has no clean Pallas TPU equivalent; done with jnp.sort.
    src_s = jnp.sort(src_p, axis=0)
    des_s = jnp.sort(des_p, axis=0)
    per_dir = swd_per_direction(src_s, des_s)           # (1, LANE); padded dirs contribute 0
    loss = jnp.sum(per_dir) / num_proj
    if not return_dir:
        return loss
    jac_dir = proj_pad[:, jnp.argmax(per_dir[0, :num_proj])]   # most-transporting direction
    return loss, jac_dir


# ----------------------------------------------------------------------------
# Jacobian regularizer: all directions batched into ONE Pallas VJP kernel
# ----------------------------------------------------------------------------
def _jacreg_kernel(gft_ref, h_ref, w1_ref, w2_ref, o_ref):
    gh = _dot_nt(gft_ref[...], w2_ref[...])             # (N, HP) = dirs @ W2^T (per row)
    gh = jnp.where(h_ref[...] > 0.0, gh, 0.0)           # relu'(h) mask per sample
    dx = _dot_nt(gh.astype(jnp.bfloat16), w1_ref[...])  # (N, Din) = gh @ W1^T
    sq = jnp.sum(dx * dx, axis=1, keepdims=True)        # (N, 1)
    o_ref[...] = jnp.sum(sq, axis=0, keepdims=True)     # (1, 1) total squared norm


def jacobian_reg(params, h_nat, dirs_pad, reg_dim):
    """Projected Jacobian norm of the penultimate feature along given directions.
    All nproj directions folded into one batched backward kernel (no Python loop
    of replayed forwards/backwards)."""
    # TODO(synk): original JacobianReg source not provided; standard projected
    # Frobenius-norm estimator implemented here.
    nproj = dirs_pad.shape[0]
    B = h_nat.shape[0]
    gft = jnp.repeat(dirs_pad, B, axis=0).astype(jnp.bfloat16)   # row i*B+b = dir_i
    h_st = jnp.tile(h_nat, (nproj, 1)).astype(jnp.bfloat16)      # row i*B+b = h_b
    total = pl.pallas_call(
        _jacreg_kernel,
        out_shape=jax.ShapeDtypeStruct((1, 1), jnp.float32),
    )(gft, h_st,
      params["W1"].astype(jnp.bfloat16), params["W2"].astype(jnp.bfloat16))[0, 0]
    return 0.5 * reg_dim * total / (nproj * B)


# ----------------------------------------------------------------------------
# Synthetic model (the original module takes `model` as an argument)
# ----------------------------------------------------------------------------
def init_model_params(key, in_dim, hidden, latent_dim, num_class):
    """Weights stored lane-padded to 128 once at init (padding hoisted off the hot path)."""
    k1, k2, k3 = jax.random.split(key, 3)
    w1 = 0.05 * jax.random.normal(k1, (in_dim, hidden), jnp.float32)
    w2 = 0.05 * jax.random.normal(k2, (hidden, latent_dim), jnp.float32)
    w3 = 0.05 * jax.random.normal(k3, (latent_dim, num_class), jnp.float32)
    return {
        "W1": jnp.zeros((in_dim, LANE), jnp.float32).at[:, :hidden].set(w1),
        "b1": jnp.zeros((1, LANE), jnp.float32),
        "W2": jnp.zeros((LANE, LANE), jnp.float32).at[:hidden, :latent_dim].set(w2),
        "b2": jnp.zeros((1, LANE), jnp.float32),
        "W3": jnp.zeros((LANE, LANE), jnp.float32).at[:latent_dim, :num_class].set(w3),
        "b3": jnp.zeros((1, LANE), jnp.float32),
    }


def mlp_forward_raw(params, x_flat):
    """Non-differentiated fused forward (also returns the ReLU residual)."""
    return _mlp_pallas_fwd(x_flat, params["W1"], params["b1"], params["W2"],
                           params["b2"], params["W3"], params["b3"])


def model_apply(params, x_nchw, return_feature=False):
    x = x_nchw.reshape(x_nchw.shape[0], -1)              # flatten NCHW -> (B, C*H*W)
    ft, logits = mlp_apply(x, params["W1"], params["b1"], params["W2"],
                           params["b2"], params["W3"], params["b3"])
    if return_feature:
        return ft, logits
    return logits


# ----------------------------------------------------------------------------
# PGD adversary + TransportJac forward
# ----------------------------------------------------------------------------
def gen_adversarial_sample(params, x_natural, y_onehot, cls_mask, key, cfg):
    x_adv = x_natural + 0.001 * jax.random.normal(key, x_natural.shape, jnp.float32)
    if cfg["norm"] == "l_inf":
        def ce_of(xa):
            return cross_entropy(model_apply(params, xa), y_onehot, cls_mask)
        for _ in range(cfg["perturb_steps"]):
            grad = jax.grad(ce_of)(x_adv)
            x_adv = x_adv + cfg["step_size"] * jnp.sign(grad)
            x_adv = jnp.clip(x_adv, x_natural - cfg["epsilon"], x_natural + cfg["epsilon"])
            x_adv = jnp.clip(x_adv, 0.0, 1.0)
    else:
        x_adv = jnp.clip(x_adv, 0.0, 1.0)
    return lax.stop_gradient(jnp.clip(x_adv, 0.0, 1.0))


def transport_jac_forward(params, x_natural, y, proj_pad, key, cfg):
    """Mirrors TransportJac.forward for loss == 'trans_swdj', adv_type == 'pgd'."""
    callback = {}
    y_onehot = jax.nn.one_hot(y, LANE, dtype=jnp.float32)          # lane-padded one-hot
    cls_mask = (jnp.arange(LANE) < cfg["num_class"]).astype(jnp.float32)[None, :]

    # adversarial sample (model.eval() / optimizer.zero_grad() have no analogue here)
    x_adv = gen_adversarial_sample(params, x_natural, y_onehot, cls_mask, key, cfg)

    B = x_natural.shape[0]
    # natural pass (raw fused kernel; also yields the ReLU residual for the Jacobian reg)
    h_nat, penultimate_ft, _logits = mlp_forward_raw(params, x_natural.reshape(B, -1))
    # adversarial pass through the differentiable custom-VJP fused kernel
    penultimate_ft_adv, logits_adv = model_apply(params, x_adv, return_feature=True)

    # _ot_logit = False, _jac_logit = False
    data_src, data_des = penultimate_ft_adv, penultimate_ft

    # adv_type == 'pgd'
    loss_ori = cross_entropy(logits_adv, y_onehot, cls_mask)
    callback["pgd"] = loss_ori

    # one_side -> detach destination
    transport_loss, jac_dir = swd_loss(
        data_src, lax.stop_gradient(data_des), proj_pad, cfg["swd_num_proj"],
        return_dir=True)
    jac_regular = jacobian_reg(params, h_nat, jac_dir[None, :], cfg["reg_dim"])

    total = loss_ori + cfg["trans_beta"] * transport_loss + cfg["jac_beta"] * jac_regular
    callback["trans"] = cfg["trans_beta"] * transport_loss
    callback["jac"] = cfg["jac_beta"] * jac_regular
    return total, callback


# ----------------------------------------------------------------------------
# Driver
# ----------------------------------------------------------------------------
if __name__ == "__main__":
    B, C, H, W = 8, 4, 16, 16
    cfg = {
        "num_class": 4,
        "latent_dim": 32,
        "reg_dim": 32,          # latent_dim (use_logit = False)
        "step_size": 0.007,
        "epsilon": 0.031,
        "perturb_steps": 3,
        "norm": "l_inf",
        "trans_beta": 1.0,
        "jac_beta": 0.01,
        "swd_num_proj": 16,     # config.LOSS.SWD.iter
    }

    key = jax.random.PRNGKey(0)
    k_params, k_x, k_y, k_proj, k_noise = jax.random.split(key, 5)

    params = init_model_params(k_params, C * H * W, 64, cfg["latent_dim"], cfg["num_class"])
    x_natural = jax.random.uniform(k_x, (B, C, H, W), jnp.float32)       # NCHW in [0,1]
    y = jax.random.randint(k_y, (B,), 0, cfg["num_class"])

    proj = jax.random.normal(k_proj, (cfg["reg_dim"], cfg["swd_num_proj"]), jnp.float32)
    proj = proj / (jnp.linalg.norm(proj, axis=0, keepdims=True) + 1e-12)  # unit directions
    proj_pad = (jnp.zeros((LANE, LANE), jnp.float32)
                .at[:cfg["reg_dim"], :cfg["swd_num_proj"]].set(proj))     # padded once (hoisted)

    fwd = jax.jit(functools.partial(transport_jac_forward, cfg=cfg))
    loss, callback = fwd(params, x_natural, y, proj_pad, k_noise)
    loss = jax.block_until_ready(loss)
    assert jnp.isfinite(loss)
    print("KERNEL_OK")
</pallas_src>

<mosaic_0001>
module attributes {stable_mosaic.version = 11 : i64} {
  func.func @_mlp_fwd_kernel(%arg0: i32, %arg1: memref<8x1024xbf16, #tpu.memory_space<vmem>>, %arg2: memref<1024x128xbf16, #tpu.memory_space<vmem>>, %arg3: memref<1x128xf32, #tpu.memory_space<vmem>>, %arg4: memref<128x128xbf16, #tpu.memory_space<vmem>>, %arg5: memref<1x128xf32, #tpu.memory_space<vmem>>, %arg6: memref<128x128xbf16, #tpu.memory_space<vmem>>, %arg7: memref<1x128xf32, #tpu.memory_space<vmem>>, %arg8: memref<8x128xbf16, #tpu.memory_space<vmem>>, %arg9: memref<8x128xf32, #tpu.memory_space<vmem>>, %arg10: memref<8x128xf32, #tpu.memory_space<vmem>>) attributes {dimension_semantics = [#tpu.dimension_semantics<parallel>], iteration_bounds = array<i64: 1>, scalar_prefetch = 0 : i64, scratch_operands = 0 : i64, tpu.core_type = #tpu.core_type<tc>, window_params = [{transform_indices = @transform_0, window_bounds = array<i64: 8, 1024>}, {pipeline_mode = #tpu.pipeline_mode<synchronous>, transform_indices = @transform_1, window_bounds = array<i64: 1024, 128>}, {pipeline_mode = #tpu.pipeline_mode<synchronous>, transform_indices = @transform_2, window_bounds = array<i64: 1, 128>}, {pipeline_mode = #tpu.pipeline_mode<synchronous>, transform_indices = @transform_3, window_bounds = array<i64: 128, 128>}, {pipeline_mode = #tpu.pipeline_mode<synchronous>, transform_indices = @transform_4, window_bounds = array<i64: 1, 128>}, {pipeline_mode = #tpu.pipeline_mode<synchronous>, transform_indices = @transform_5, window_bounds = array<i64: 128, 128>}, {pipeline_mode = #tpu.pipeline_mode<synchronous>, transform_indices = @transform_6, window_bounds = array<i64: 1, 128>}, {transform_indices = @transform_7, window_bounds = array<i64: 8, 128>}, {transform_indices = @transform_8, window_bounds = array<i64: 8, 128>}, {transform_indices = @transform_9, window_bounds = array<i64: 8, 128>}]} {
    %c0 = arith.constant 0 : index
    %c0_0 = arith.constant 0 : index
    %0 = vector.load %arg1[%c0, %c0_0] : memref<8x1024xbf16, #tpu.memory_space<vmem>>, vector<8x1024xbf16>
    %c0_1 = arith.constant 0 : index
    %c0_2 = arith.constant 0 : index
    %1 = vector.load %arg2[%c0_1, %c0_2] : memref<1024x128xbf16, #tpu.memory_space<vmem>>, vector<1024x128xbf16>
    %cst = arith.constant dense<0.000000e+00> : vector<8x128xf32>
    %2 = tpu.matmul %0, %1, %cst {dimension_numbers = #tpu.dot_dimension_numbers<[1], [0], [0], [1], [0, 0, 1, 1], [], []>} : vector<8x1024xbf16>, vector<1024x128xbf16>, vector<8x128xf32> -> vector<8x128xf32>
    %c0_3 = arith.constant 0 : index
    %c0_4 = arith.constant 0 : index
    %3 = vector.load %arg3[%c0_3, %c0_4] : memref<1x128xf32, #tpu.memory_space<vmem>>, vector<1x128xf32>
    %4 = vector.broadcast %3 : vector<1x128xf32> to vector<8x128xf32>
    %5 = arith.addf %2, %4 : vector<8x128xf32>
    %cst_5 = arith.constant 0.000000e+00 : f32
    %6 = vector.broadcast %cst_5 : f32 to vector<8x128xf32>
    %7 = arith.maximumf %5, %6 : vector<8x128xf32>
    %8 = arith.truncf %7 : vector<8x128xf32> to vector<8x128xbf16>
    %c0_6 = arith.constant 0 : index
    %c0_7 = arith.constant 0 : index
    %9 = vector.load %arg8[%c0_6, %c0_7] : memref<8x128xbf16, #tpu.memory_space<vmem>>, vector<8x128xbf16>
    tpu.vector_store %arg8[%c0_6, %c0_7], %8 {strides = array<i32>} : memref<8x128xbf16, #tpu.memory_space<vmem>>, vector<8x128xbf16>,
    %c0_8 = arith.constant 0 : index
    %c0_9 = arith.constant 0 : index
    %10 = vector.load %arg4[%c0_8, %c0_9] : memref<128x128xbf16, #tpu.memory_space<vmem>>, vector<128x128xbf16>
    %cst_10 = arith.constant dense<0.000000e+00> : vector<8x128xf32>
    %11 = tpu.matmul %8, %10, %cst_10 {dimension_numbers = #tpu.dot_dimension_numbers<[1], [0], [0], [1], [0, 0, 1, 1], [], []>} : vector<8x128xbf16>, vector<128x128xbf16>, vector<8x128xf32> -> vector<8x128xf32>
    %c0_11 = arith.constant 0 : index
    %c0_12 = arith.constant 0 : index
    %12 = vector.load %arg5[%c0_11, %c0_12] : memref<1x128xf32, #tpu.memory_space<vmem>>, vector<1x128xf32>
    %13 = vector.broadcast %12 : vector<1x128xf32> to vector<8x128xf32>
    %14 = arith.addf %11, %13 : vector<8x128xf32>
    %c0_13 = arith.constant 0 : index
    %c0_14 = arith.constant 0 : index
    %15 = vector.load %arg9[%c0_13, %c0_14] : memref<8x128xf32, #tpu.memory_space<vmem>>, vector<8x128xf32>
    tpu.vector_store %arg9[%c0_13, %c0_14], %14 {strides = array<i32>} : memref<8x128xf32, #tpu.memory_space<vmem>>, vector<8x128xf32>,
    %16 = arith.truncf %14 : vector<8x128xf32> to vector<8x128xbf16>
    %c0_15 = arith.constant 0 : index
    %c0_16 = arith.constant 0 : index
    %17 = vector.load %arg6[%c0_15, %c0_16] : memref<128x128xbf16, #tpu.memory_space<vmem>>, vector<128x128xbf16>
    %cst_17 = arith.constant dense<0.000000e+00> : vector<8x128xf32>
    %18 = tpu.matmul %16, %17, %cst_17 {dimension_numbers = #tpu.dot_dimension_numbers<[1], [0], [0], [1], [0, 0, 1, 1], [], []>} : vector<8x128xbf16>, vector<128x128xbf16>, vector<8x128xf32> -> vector<8x128xf32>
    %c0_18 = arith.constant 0 : index
    %c0_19 = arith.constant 0 : index
    %19 = vector.load %arg7[%c0_18, %c0_19] : memref<1x128xf32, #tpu.memory_space<vmem>>, vector<1x128xf32>
    %20 = vector.broadcast %19 : vector<1x128xf32> to vector<8x128xf32>
    %21 = arith.addf %18, %20 : vector<8x128xf32>
    %c0_20 = arith.constant 0 : index
    %c0_21 = arith.constant 0 : index
    %22 = vector.load %arg10[%c0_20, %c0_21] : memref<8x128xf32, #tpu.memory_space<vmem>>, vector<8x128xf32>
    tpu.vector_store %arg10[%c0_20, %c0_21], %21 {strides = array<i32>} : memref<8x128xf32, #tpu.memory_space<vmem>>, vector<8x128xf32>,
    return
  }
  func.func @transform_0(%arg0: i32) -> (i32, i32) {
    %c0_i32 = arith.constant 0 : i32
    %c0_i32_0 = arith.constant 0 : i32
    return %arg0, %c0_i32 : i32, i32
  }
  func.func @transform_1(%arg0: i32) -> (i32, i32) {
    %c0_i32 = arith.constant 0 : i32
    %c0_i32_0 = arith.constant 0 : i32
    %c0_i32_1 = arith.constant 0 : i32
    return %c0_i32, %c0_i32_0 : i32, i32
  }
  func.func @transform_2(%arg0: i32) -> (i32, i32) {
    %c0_i32 = arith.constant 0 : i32
    %c0_i32_0 = arith.constant 0 : i32
    %c0_i32_1 = arith.constant 0 : i32
    return %c0_i32, %c0_i32_0 : i32, i32
  }
  func.func @transform_3(%arg0: i32) -> (i32, i32) {
    %c0_i32 = arith.constant 0 : i32
    %c0_i32_0 = arith.constant 0 : i32
    %c0_i32_1 = arith.constant 0 : i32
    return %c0_i32, %c0_i32_0 : i32, i32
  }
  func.func @transform_4(%arg0: i32) -> (i32, i32) {
    %c0_i32 = arith.constant 0 : i32
    %c0_i32_0 = arith.constant 0 : i32
    %c0_i32_1 = arith.constant 0 : i32
    return %c0_i32, %c0_i32_0 : i32, i32
  }
  func.func @transform_5(%arg0: i32) -> (i32, i32) {
    %c0_i32 = arith.constant 0 : i32
    %c0_i32_0 = arith.constant 0 : i32
    %c0_i32_1 = arith.constant 0 : i32
    return %c0_i32, %c0_i32_0 : i32, i32
  }
  func.func @transform_6(%arg0: i32) -> (i32, i32) {
    %c0_i32 = arith.constant 0 : i32
    %c0_i32_0 = arith.constant 0 : i32
    %c0_i32_1 = arith.constant 0 : i32
    return %c0_i32, %c0_i32_0 : i32, i32
  }
  func.func @transform_7(%arg0: i32) -> (i32, i32) {
    %c0_i32 = arith.constant 0 : i32
    %c0_i32_0 = arith.constant 0 : i32
    return %arg0, %c0_i32 : i32, i32
  }
  func.func @transform_8(%arg0: i32) -> (i32, i32) {
    %c0_i32 = arith.constant 0 : i32
    %c0_i32_0 = arith.constant 0 : i32
    return %arg0, %c0_i32 : i32, i32
  }
  func.func @transform_9(%arg0: i32) -> (i32, i32) {
    %c0_i32 = arith.constant 0 : i32
    %c0_i32_0 = arith.constant 0 : i32
    return %arg0, %c0_i32 : i32, i32
  }
}

module attributes {stable_mosaic.version = 11 : i64} {
  func.func @_mlp_bwd_kernel(%arg0: i32, %arg1: memref<8x1024xbf16, #tpu.memory_space<vmem>>, %arg2: memref<8x128xbf16, #tpu.memory_space<vmem>>, %arg3: memref<8x128xf32, #tpu.memory_space<vmem>>, %arg4: memref<1024x128xbf16, #tpu.memory_space<vmem>>, %arg5: memref<128x128xbf16, #tpu.memory_space<vmem>>, %arg6: memref<128x128xbf16, #tpu.memory_space<vmem>>, %arg7: memref<8x128xf32, #tpu.memory_space<vmem>>, %arg8: memref<8x128xf32, #tpu.memory_space<vmem>>, %arg9: memref<8x1024xf32, #tpu.memory_space<vmem>>, %arg10: memref<1024x128xf32, #tpu.memory_space<vmem>>, %arg11: memref<1x128xf32, #tpu.memory_space<vmem>>, %arg12: memref<128x128xf32, #tpu.memory_space<vmem>>, %arg13: memref<1x128xf32, #tpu.memory_space<vmem>>, %arg14: memref<128x128xf32, #tpu.memory_space<vmem>>, %arg15: memref<1x128xf32, #tpu.memory_space<vmem>>) attributes {dimension_semantics = [#tpu.dimension_semantics<arbitrary>], iteration_bounds = array<i64: 1>, scalar_prefetch = 0 : i64, scratch_operands = 0 : i64, tpu.core_type = #tpu.core_type<tc>, window_params = [{transform_indices = @transform_0, window_bounds = array<i64: 8, 1024>}, {transform_indices = @transform_1, window_bounds = array<i64: 8, 128>}, {transform_indices = @transform_2, window_bounds = array<i64: 8, 128>}, {pipeline_mode = #tpu.pipeline_mode<synchronous>, transform_indices = @transform_3, window_bounds = array<i64: 1024, 128>}, {pipeline_mode = #tpu.pipeline_mode<synchronous>, transform_indices = @transform_4, window_bounds = array<i64: 128, 128>}, {pipeline_mode = #tpu.pipeline_mode<synchronous>, transform_indices = @transform_5, window_bounds = array<i64: 128, 128>}, {transform_indices = @transform_6, window_bounds = array<i64: 8, 128>}, {transform_indices = @transform_7, window_bounds = array<i64: 8, 128>}, {transform_indices = @transform_8, window_bounds = array<i64: 8, 1024>}, {pipeline_mode = #tpu.pipeline_mode<synchronous>, transform_indices = @transform_9, window_bounds = array<i64: 1024, 128>}, {pipeline_mode = #tpu.pipeline_mode<synchronous>, transform_indices = @transform_10, window_bounds = array<i64: 1, 128>}, {pipeline_mode = #tpu.pipeline_mode<synchronous>, transform_indices = @transform_11, window_bounds = array<i64: 128, 128>}, {pipeline_mode = #tpu.pipeline_mode<synchronous>, transform_indices = @transform_12, window_bounds = array<i64: 1, 128>}, {pipeline_mode = #tpu.pipeline_mode<synchronous>, transform_indices = @transform_13, window_bounds = array<i64: 128, 128>}, {pipeline_mode = #tpu.pipeline_mode<synchronous>, transform_indices = @transform_14, window_bounds = array<i64: 1, 128>}]} {
    %c0_i32 = arith.constant 0 : i32
    %0 = arith.cmpi eq, %arg0, %c0_i32 : i32
    %1 = arith.extui %0 : i1 to i32
    %c0_i32_0 = arith.constant 0 : i32
    %2 = arith.cmpi ne, %1, %c0_i32_0 : i32
    scf.if %2 {
      %cst_52 = arith.constant 0.000000e+00 : f32
      %52 = vector.broadcast %cst_52 : f32 to vector<1024x128xf32>
      %c0_53 = arith.constant 0 : index
      %c0_54 = arith.constant 0 : index
      %53 = vector.load %arg10[%c0_53, %c0_54] : memref<1024x128xf32, #tpu.memory_space<vmem>>, vector<1024x128xf32>
      tpu.vector_store %arg10[%c0_53, %c0_54], %52 {strides = array<i32>} : memref<1024x128xf32, #tpu.memory_space<vmem>>, vector<1024x128xf32>,
      %cst_55 = arith.constant 0.000000e+00 : f32
      %54 = vector.broadcast %cst_55 : f32 to vector<1x128xf32>
      %c0_56 = arith.constant 0 : index
      %c0_57 = arith.constant 0 : index
      %55 = vector.load %arg11[%c0_56, %c0_57] : memref<1x128xf32, #tpu.memory_space<vmem>>, vector<1x128xf32>
      tpu.vector_store %arg11[%c0_56, %c0_57], %54 {strides = array<i32>} : memref<1x128xf32, #tpu.memory_space<vmem>>, vector<1x128xf32>,
      %cst_58 = arith.constant 0.000000e+00 : f32
      %56 = vector.broadcast %cst_58 : f32 to vector<128x128xf32>
      %c0_59 = arith.constant 0 : index
      %c0_60 = arith.constant 0 : index
      %57 = vector.load %arg12[%c0_59, %c0_60] : memref<128x128xf32, #tpu.memory_space<vmem>>, vector<128x128xf32>
      tpu.vector_store %arg12[%c0_59, %c0_60], %56 {strides = array<i32>} : memref<128x128xf32, #tpu.memory_space<vmem>>, vector<128x128xf32>,
      %cst_61 = arith.constant 0.000000e+00 : f32
      %58 = vector.broadcast %cst_61 : f32 to vector<1x128xf32>
      %c0_62 = arith.constant 0 : index
      %c0_63 = arith.constant 0 : index
      %59 = vector.load %arg13[%c0_62, %c0_63] : memref<1x128xf32, #tpu.memory_space<vmem>>, vector<1x128xf32>
      tpu.vector_store %arg13[%c0_62, %c0_63], %58 {strides = array<i32>} : memref<1x128xf32, #tpu.memory_space<vmem>>, vector<1x128xf32>,
      %cst_64 = arith.constant 0.000000e+00 : f32
      %60 = vector.broadcast %cst_64 : f32 to vector<128x128xf32>
      %c0_65 = arith.constant 0 : index
      %c0_66 = arith.constant 0 : index
      %61 = vector.load %arg14[%c0_65, %c0_66] : memref<128x128xf32, #tpu.memory_space<vmem>>, vector<128x128xf32>
      tpu.vector_store %arg14[%c0_65, %c0_66], %60 {strides = array<i32>} : memref<128x128xf32, #tpu.memory_space<vmem>>, vector<128x128xf32>,
      %cst_67 = arith.constant 0.000000e+00 : f32
      %62 = vector.broadcast %cst_67 : f32 to vector<1x128xf32>
      %c0_68 = arith.constant 0 : index
      %c0_69 = arith.constant 0 : index
      %63 = vector.load %arg15[%c0_68, %c0_69] : memref<1x128xf32, #tpu.memory_space<vmem>>, vector<1x128xf32>
      tpu.vector_store %arg15[%c0_68, %c0_69], %62 {strides = array<i32>} : memref<1x128xf32, #tpu.memory_space<vmem>>, vector<1x128xf32>,
    } else {
    }
    %c0 = arith.constant 0 : index
    %c0_1 = arith.constant 0 : index
    %3 = vector.load %arg8[%c0, %c0_1] : memref<8x128xf32, #tpu.memory_space<vmem>>, vector<8x128xf32>
    %c0_2 = arith.constant 0 : index
    %c0_3 = arith.constant 0 : index
    %4 = vector.load %arg3[%c0_2, %c0_3] : memref<8x128xf32, #tpu.memory_space<vmem>>, vector<8x128xf32>
    %c0_4 = arith.constant 0 : index
    %c0_5 = arith.constant 0 : index
    %5 = vector.load %arg2[%c0_4, %c0_5] : memref<8x128xbf16, #tpu.memory_space<vmem>>, vector<8x128xbf16>
    %6 = arith.extf %5 : vector<8x128xbf16> to vector<8x128xf32>
    %c0_6 = arith.constant 0 : index
    %c0_7 = arith.constant 0 : index
    %7 = vector.load %arg1[%c0_6, %c0_7] : memref<8x1024xbf16, #tpu.memory_space<vmem>>, vector<8x1024xbf16>
    %8 = arith.extf %7 : vector<8x1024xbf16> to vector<8x1024xf32>
    %c0_8 = arith.constant 0 : index
    %c0_9 = arith.constant 0 : index
    %9 = vector.load %arg14[%c0_8, %c0_9] : memref<128x128xf32, #tpu.memory_space<vmem>>, vector<128x128xf32>
    %cst = arith.constant dense<0.000000e+00> : vector<128x128xf32>
    %10 = tpu.matmul %4, %3, %cst {dimension_numbers = #tpu.dot_dimension_numbers<[0], [0], [1], [1], [0, 1, 1, 1], [], []>} : vector<8x128xf32>, vector<8x128xf32>, vector<128x128xf32> -> vector<128x128xf32>
    %11 = arith.addf %9, %10 : vector<128x128xf32>
    %c0_10 = arith.constant 0 : index
    %c0_11 = arith.constant 0 : index
    %12 = vector.load %arg14[%c0_10, %c0_11] : memref<128x128xf32, #tpu.memory_space<vmem>>, vector<128x128xf32>
    tpu.vector_store %arg14[%c0_10, %c0_11], %11 {strides = array<i32>} : memref<128x128xf32, #tpu.memory_space<vmem>>, vector<128x128xf32>,
    %c0_12 = arith.constant 0 : index
    %c0_13 = arith.constant 0 : index
    %13 = vector.load %arg15[%c0_12, %c0_13] : memref<1x128xf32, #tpu.memory_space<vmem>>, vector<1x128xf32>
    %cst_14 = arith.constant dense<0.000000e+00> : vector<128xf32>
    %14 = vector.multi_reduction <add>, %3, %cst_14 [0] : vector<8x128xf32> to vector<128xf32>
    %15 = vector.shape_cast %14 : vector<128xf32> to vector<1x128xf32>
    %16 = arith.addf %13, %15 : vector<1x128xf32>
    %c0_15 = arith.constant 0 : index
    %c0_16 = arith.constant 0 : index
    %17 = vector.load %arg15[%c0_15, %c0_16] : memref<1x128xf32, #tpu.memory_space<vmem>>, vector<1x128xf32>
    tpu.vector_store %arg15[%c0_15, %c0_16], %16 {strides = array<i32>} : memref<1x128xf32, #tpu.memory_space<vmem>>, vector<1x128xf32>,
    %c0_17 = arith.constant 0 : index
    %c0_18 = arith.constant 0 : index
    %18 = vector.load %arg7[%c0_17, %c0_18] : memref<8x128xf32, #tpu.memory_space<vmem>>, vector<8x128xf32>
    %19 = arith.truncf %3 : vector<8x128xf32> to vector<8x128xbf16>
    %c0_19 = arith.constant 0 : index
    %c0_20 = arith.constant 0 : index
    %20 = vector.load %arg6[%c0_19, %c0_20] : memref<128x128xbf16, #tpu.memory_space<vmem>>, vector<128x128xbf16>
    %cst_21 = arith.constant dense<0.000000e+00> : vector<8x128xf32>
    %21 = tpu.matmul %19, %20, %cst_21 {dimension_numbers = #tpu.dot_dimension_numbers<[1], [1], [0], [0], [0, 0, 1, 0], [], []>} : vector<8x128xbf16>, vector<128x128xbf16>, vector<8x128xf32> -> vector<8x128xf32>
    %22 = arith.addf %18, %21 : vector<8x128xf32>
    %c0_22 = arith.constant 0 : index
    %c0_23 = arith.constant 0 : index
    %23 = vector.load %arg12[%c0_22, %c0_23] : memref<128x128xf32, #tpu.memory_space<vmem>>, vector<128x128xf32>
    %cst_24 = arith.constant dense<0.000000e+00> : vector<128x128xf32>
    %24 = tpu.matmul %6, %22, %cst_24 {dimension_numbers = #tpu.dot_dimension_numbers<[0], [0], [1], [1], [0, 1, 1, 1], [], []>} : vector<8x128xf32>, vector<8x128xf32>, vector<128x128xf32> -> vector<128x128xf32>
    %25 = arith.addf %23, %24 : vector<128x128xf32>
    %c0_25 = arith.constant 0 : index
    %c0_26 = arith.constant 0 : index
    %26 = vector.load %arg12[%c0_25, %c0_26] : memref<128x128xf32, #tpu.memory_space<vmem>>, vector<128x128xf32>
    tpu.vector_store %arg12[%c0_25, %c0_26], %25 {strides = array<i32>} : memref<128x128xf32, #tpu.memory_space<vmem>>, vector<128x128xf32>,
    %c0_27 = arith.constant 0 : index
    %c0_28 = arith.constant 0 : index
    %27 = vector.load %arg13[%c0_27, %c0_28] : memref<1x128xf32, #tpu.memory_space<vmem>>, vector<1x128xf32>
    %cst_29 = arith.constant dense<0.000000e+00> : vector<128xf32>
    %28 = vector.multi_reduction <add>, %22, %cst_29 [0] : vector<8x128xf32> to vector<128xf32>
    %29 = vector.shape_cast %28 : vector<128xf32> to vector<1x128xf32>
    %30 = arith.addf %27, %29 : vector<1x128xf32>
    %c0_30 = arith.constant 0 : index
    %c0_31 = arith.constant 0 : index
    %31 = vector.load %arg13[%c0_30, %c0_31] : memref<1x128xf32, #tpu.memory_space<vmem>>, vector<1x128xf32>
    tpu.vector_store %arg13[%c0_30, %c0_31], %30 {strides = array<i32>} : memref<1x128xf32, #tpu.memory_space<vmem>>, vector<1x128xf32>,
    %32 = arith.truncf %22 : vector<8x128xf32> to vector<8x128xbf16>
    %c0_32 = arith.constant 0 : index
    %c0_33 = arith.constant 0 : index
    %33 = vector.load %arg5[%c0_32, %c0_33] : memref<128x128xbf16, #tpu.memory_space<vmem>>, vector<128x128xbf16>
    %cst_34 = arith.constant dense<0.000000e+00> : vector<8x128xf32>
    %34 = tpu.matmul %32, %33, %cst_34 {dimension_numbers = #tpu.dot_dimension_numbers<[1], [1], [0], [0], [0, 0, 1, 0], [], []>} : vector<8x128xbf16>, vector<128x128xbf16>, vector<8x128xf32> -> vector<8x128xf32>
    %cst_35 = arith.constant 0.000000e+00 : f32
    %35 = vector.broadcast %cst_35 : f32 to vector<8x128xf32>
    %36 = arith.cmpf ogt, %6, %35 : vector<8x128xf32>
    %cst_36 = arith.constant 0.000000e+00 : f32
    %37 = vector.broadcast %cst_36 : f32 to vector<8x128xf32>
    %38 = arith.select %36, %34, %37 : vector<8x128xi1>, vector<8x128xf32>
    %c0_37 = arith.constant 0 : index
    %c0_38 = arith.constant 0 : index
    %39 = vector.load %arg10[%c0_37, %c0_38] : memref<1024x128xf32, #tpu.memory_space<vmem>>, vector<1024x128xf32>
    %cst_39 = arith.constant dense<0.000000e+00> : vector<1024x128xf32>
    %40 = tpu.matmul %8, %38, %cst_39 {dimension_numbers = #tpu.dot_dimension_numbers<[0], [0], [1], [1], [0, 1, 1, 1], [], []>} : vector<8x1024xf32>, vector<8x128xf32>, vector<1024x128xf32> -> vector<1024x128xf32>
    %41 = arith.addf %39, %40 : vector<1024x128xf32>
    %c0_40 = arith.constant 0 : index
    %c0_41 = arith.constant 0 : index
    %42 = vector.load %arg10[%c0_40, %c0_41] : memref<1024x128xf32, #tpu.memory_space<vmem>>, vector<1024x128xf32>
    tpu.vector_store %arg10[%c0_40, %c0_41], %41 {strides = array<i32>} : memref<1024x128xf32, #tpu.memory_space<vmem>>, vector<1024x128xf32>,
    %c0_42 = arith.constant 0 : index
    %c0_43 = arith.constant 0 : index
    %43 = vector.load %arg11[%c0_42, %c0_43] : memref<1x128xf32, #tpu.memory_space<vmem>>, vector<1x128xf32>
    %cst_44 = arith.constant dense<0.000000e+00> : vector<128xf32>
    %44 = vector.multi_reduction <add>, %38, %cst_44 [0] : vector<8x128xf32> to vector<128xf32>
    %45 = vector.shape_cast %44 : vector<128xf32> to vector<1x128xf32>
    %46 = arith.addf %43, %45 : vector<1x128xf32>
    %c0_45 = arith.constant 0 : index
    %c0_46 = arith.constant 0 : index
    %47 = vector.load %arg11[%c0_45, %c0_46] : memref<1x128xf32, #tpu.memory_space<vmem>>, vector<1x128xf32>
    tpu.vector_store %arg11[%c0_45, %c0_46], %46 {strides = array<i32>} : memref<1x128xf32, #tpu.memory_space<vmem>>, vector<1x128xf32>,
    %48 = arith.truncf %38 : vector<8x128xf32> to vector<8x128xbf16>
    %c0_47 = arith.constant 0 : index
    %c0_48 = arith.constant 0 : index
    %49 = vector.load %arg4[%c0_47, %c0_48] : memref<1024x128xbf16, #tpu.memory_space<vmem>>, vector<1024x128xbf16>
    %cst_49 = arith.constant dense<0.000000e+00> : vector<8x1024xf32>
    %50 = tpu.matmul %48, %49, %cst_49 {dimension_numbers = #tpu.dot_dimension_numbers<[1], [1], [0], [0], [0, 0, 1, 0], [], []>} : vector<8x128xbf16>, vector<1024x128xbf16>, vector<8x1024xf32> -> vector<8x1024xf32>
    %c0_50 = arith.constant 0 : index
    %c0_51 = arith.constant 0 : index
    %51 = vector.load %arg9[%c0_50, %c0_51] : memref<8x1024xf32, #tpu.memory_space<vmem>>, vector<8x1024xf32>
    tpu.vector_store %arg9[%c0_50, %c0_51], %50 {strides = array<i32>} : memref<8x1024xf32, #tpu.memory_space<vmem>>, vector<8x1024xf32>,
    return
  }
  func.func @transform_0(%arg0: i32) -> (i32, i32) {
    %c0_i32 = arith.constant 0 : i32
    %c0_i32_0 = arith.constant 0 : i32
    return %arg0, %c0_i32 : i32, i32
  }
  func.func @transform_1(%arg0: i32) -> (i32, i32) {
    %c0_i32 = arith.constant 0 : i32
    %c0_i32_0 = arith.constant 0 : i32
    return %arg0, %c0_i32 : i32, i32
  }
  func.func @transform_2(%arg0: i32) -> (i32, i32) {
    %c0_i32 = arith.constant 0 : i32
    %c0_i32_0 = arith.constant 0 : i32
    return %arg0, %c0_i32 : i32, i32
  }
  func.func @transform_3(%arg0: i32) -> (i32, i32) {
    %c0_i32 = arith.constant 0 : i32
    %c0_i32_0 = arith.constant 0 : i32
    %c0_i32_1 = arith.constant 0 : i32
    return %c0_i32, %c0_i32_0 : i32, i32
  }
  func.func @transform_4(%arg0: i32) -> (i32, i32) {
    %c0_i32 = arith.constant 0 : i32
    %c0_i32_0 = arith.constant 0 : i32
    %c0_i32_1 = arith.constant 0 : i32
    return %c0_i32, %c0_i32_0 : i32, i32
  }
  func.func @transform_5(%arg0: i32) -> (i32, i32) {
    %c0_i32 = arith.constant 0 : i32
    %c0_i32_0 = arith.constant 0 : i32
    %c0_i32_1 = arith.constant 0 : i32
    return %c0_i32, %c0_i32_0 : i32, i32
  }
  func.func @transform_6(%arg0: i32) -> (i32, i32) {
    %c0_i32 = arith.constant 0 : i32
    %c0_i32_0 = arith.constant 0 : i32
    return %arg0, %c0_i32 : i32, i32
  }
  func.func @transform_7(%arg0: i32) -> (i32, i32) {
    %c0_i32 = arith.constant 0 : i32
    %c0_i32_0 = arith.constant 0 : i32
    return %arg0, %c0_i32 : i32, i32
  }
  func.func @transform_8(%arg0: i32) -> (i32, i32) {
    %c0_i32 = arith.constant 0 : i32
    %c0_i32_0 = arith.constant 0 : i32
    return %arg0, %c0_i32 : i32, i32
  }
  func.func @transform_9(%arg0: i32) -> (i32, i32) {
    %c0_i32 = arith.constant 0 : i32
    %c0_i32_0 = arith.constant 0 : i32
    %c0_i32_1 = arith.constant 0 : i32
    return %c0_i32, %c0_i32_0 : i32, i32
  }
  func.func @transform_10(%arg0: i32) -> (i32, i32) {
    %c0_i32 = arith.constant 0 : i32
    %c0_i32_0 = arith.constant 0 : i32
    %c0_i32_1 = arith.constant 0 : i32
    return %c0_i32, %c0_i32_0 : i32, i32
  }
  func.func @transform_11(%arg0: i32) -> (i32, i32) {
    %c0_i32 = arith.constant 0 : i32
    %c0_i32_0 = arith.constant 0 : i32
    %c0_i32_1 = arith.constant 0 : i32
    return %c0_i32, %c0_i32_0 : i32, i32
  }
  func.func @transform_12(%arg0: i32) -> (i32, i32) {
    %c0_i32 = arith.constant 0 : i32
    %c0_i32_0 = arith.constant 0 : i32
    %c0_i32_1 = arith.constant 0 : i32
    return %c0_i32, %c0_i32_0 : i32, i32
  }
  func.func @transform_13(%arg0: i32) -> (i32, i32) {
    %c0_i32 = arith.constant 0 : i32
    %c0_i32_0 = arith.constant 0 : i32
    %c0_i32_1 = arith.constant 0 : i32
    return %c0_i32, %c0_i32_0 : i32, i32
  }
  func.func @transform_14(%arg0: i32) -> (i32, i32) {
    %c0_i32 = arith.constant 0 : i32
    %c0_i32_0 = arith.constant 0 : i32
    %c0_i32_1 = arith.constant 0 : i32
    return %c0_i32, %c0_i32_0 : i32, i32
  }
}

module attributes {stable_mosaic.version = 11 : i64} {
  func.func @_mlp_fwd_kernel(%arg0: i32, %arg1: memref<8x1024xbf16, #tpu.memory_space<vmem>>, %arg2: memref<1024x128xbf16, #tpu.memory_space<vmem>>, %arg3: memref<1x128xf32, #tpu.memory_space<vmem>>, %arg4: memref<128x128xbf16, #tpu.memory_space<vmem>>, %arg5: memref<1x128xf32, #tpu.memory_space<vmem>>, %arg6: memref<128x128xbf16, #tpu.memory_space<vmem>>, %arg7: memref<1x128xf32, #tpu.memory_space<vmem>>, %arg8: memref<8x128xbf16, #tpu.memory_space<vmem>>, %arg9: memref<8x128xf32, #tpu.memory_space<vmem>>, %arg10: memref<8x128xf32, #tpu.memory_space<vmem>>) attributes {dimension_semantics = [#tpu.dimension_semantics<parallel>], iteration_bounds = array<i64: 1>, scalar_prefetch = 0 : i64, scratch_operands = 0 : i64, tpu.core_type = #tpu.core_type<tc>, window_params = [{transform_indices = @transform_0, window_bounds = array<i64: 8, 1024>}, {pipeline_mode = #tpu.pipeline_mode<synchronous>, transform_indices = @transform_1, window_bounds = array<i64: 1024, 128>}, {pipeline_mode = #tpu.pipeline_mode<synchronous>, transform_indices = @transform_2, window_bounds = array<i64: 1, 128>}, {pipeline_mode = #tpu.pipeline_mode<synchronous>, transform_indices = @transform_3, window_bounds = array<i64: 128, 128>}, {pipeline_mode = #tpu.pipeline_mode<synchronous>, transform_indices = @transform_4, window_bounds = array<i64: 1, 128>}, {pipeline_mode = #tpu.pipeline_mode<synchronous>, transform_indices = @transform_5, window_bounds = array<i64: 128, 128>}, {pipeline_mode = #tpu.pipeline_mode<synchronous>, transform_indices = @transform_6, window_bounds = array<i64: 1, 128>}, {transform_indices = @transform_7, window_bounds = array<i64: 8, 128>}, {transform_indices = @transform_8, window_bounds = array<i64: 8, 128>}, {transform_indices = @transform_9, window_bounds = array<i64: 8, 128>}]} {
    %c0 = arith.constant 0 : index
    %c0_0 = arith.constant 0 : index
    %0 = vector.load %arg1[%c0, %c0_0] : memref<8x1024xbf16, #tpu.memory_space<vmem>>, vector<8x1024xbf16>
    %c0_1 = arith.constant 0 : index
    %c0_2 = arith.constant 0 : index
    %1 = vector.load %arg2[%c0_1, %c0_2] : memref<1024x128xbf16, #tpu.memory_space<vmem>>, vector<1024x128xbf16>
    %cst = arith.constant dense<0.000000e+00> : vector<8x128xf32>
    %2 = tpu.matmul %0, %1, %cst {dimension_numbers = #tpu.dot_dimension_numbers<[1], [0], [0], [1], [0, 0, 1, 1], [], []>} : vector<8x1024xbf16>, vector<1024x128xbf16>, vector<8x128xf32> -> vector<8x128xf32>
    %c0_3 = arith.constant 0 : index
    %c0_4 = arith.constant 0 : index
    %3 = vector.load %arg3[%c0_3, %c0_4] : memref<1x128xf32, #tpu.memory_space<vmem>>, vector<1x128xf32>
    %4 = vector.broadcast %3 : vector<1x128xf32> to vector<8x128xf32>
    %5 = arith.addf %2, %4 : vector<8x128xf32>
    %cst_5 = arith.constant 0.000000e+00 : f32
    %6 = vector.broadcast %cst_5 : f32 to vector<8x128xf32>
    %7 = arith.maximumf %5, %6 : vector<8x128xf32>
    %8 = arith.truncf %7 : vector<8x128xf32> to vector<8x128xbf16>
    %c0_6 = arith.constant 0 : index
    %c0_7 = arith.constant 0 : index
    %9 = vector.load %arg8[%c0_6, %c0_7] : memref<8x128xbf16, #tpu.memory_space<vmem>>, vector<8x128xbf16>
    tpu.vector_store %arg8[%c0_6, %c0_7], %8 {strides = array<i32>} : memref<8x128xbf16, #tpu.memory_space<vmem>>, vector<8x128xbf16>,
    %c0_8 = arith.constant 0 : index
    %c0_9 = arith.constant 0 : index
    %10 = vector.load %arg4[%c0_8, %c0_9] : memref<128x128xbf16, #tpu.memory_space<vmem>>, vector<128x128xbf16>
    %cst_10 = arith.constant dense<0.000000e+00> : vector<8x128xf32>
    %11 = tpu.matmul %8, %10, %cst_10 {dimension_numbers = #tpu.dot_dimension_numbers<[1], [0], [0], [1], [0, 0, 1, 1], [], []>} : vector<8x128xbf16>, vector<128x128xbf16>, vector<8x128xf32> -> vector<8x128xf32>
    %c0_11 = arith.constant 0 : index
    %c0_12 = arith.constant 0 : index
    %12 = vector.load %arg5[%c0_11, %c0_12] : memref<1x128xf32, #tpu.memory_space<vmem>>, vector<1x128xf32>
    %13 = vector.broadcast %12 : vector<1x128xf32> to vector<8x128xf32>
    %14 = arith.addf %11, %13 : vector<8x128xf32>
    %c0_13 = arith.constant 0 : index
    %c0_14 = arith.constant 0 : index
    %15 = vector.load %arg9[%c0_13, %c0_14] : memref<8x128xf32, #tpu.memory_space<vmem>>, vector<8x128xf32>
    tpu.vector_store %arg9[%c0_13, %c0_14], %14 {strides = array<i32>} : memref<8x128xf32, #tpu.memory_space<vmem>>, vector<8x128xf32>,
    %16 = arith.truncf %14 : vector<8x128xf32> to vector<8x128xbf16>
    %c0_15 = arith.constant 0 : index
    %c0_16 = arith.constant 0 : index
    %17 = vector.load %arg6[%c0_15, %c0_16] : memref<128x128xbf16, #tpu.memory_space<vmem>>, vector<128x128xbf16>
    %cst_17 = arith.constant dense<0.000000e+00> : vector<8x128xf32>
    %18 = tpu.matmul %16, %17, %cst_17 {dimension_numbers = #tpu.dot_dimension_numbers<[1], [0], [0], [1], [0, 0, 1, 1], [], []>} : vector<8x128xbf16>, vector<128x128xbf16>, vector<8x128xf32> -> vector<8x128xf32>
    %c0_18 = arith.constant 0 : index
    %c0_19 = arith.constant 0 : index
    %19 = vector.load %arg7[%c0_18, %c0_19] : memref<1x128xf32, #tpu.memory_space<vmem>>, vector<1x128xf32>
    %20 = vector.broadcast %19 : vector<1x128xf32> to vector<8x128xf32>
    %21 = arith.addf %18, %20 : vector<8x128xf32>
    %c0_20 = arith.constant 0 : index
    %c0_21 = arith.constant 0 : index
    %22 = vector.load %arg10[%c0_20, %c0_21] : memref<8x128xf32, #tpu.memory_space<vmem>>, vector<8x128xf32>
    tpu.vector_store %arg10[%c0_20, %c0_21], %21 {strides = array<i32>} : memref<8x128xf32, #tpu.memory_space<vmem>>, vector<8x128xf32>,
    return
  }
  func.func @transform_0(%arg0: i32) -> (i32, i32) {
    %c0_i32 = arith.constant 0 : i32
    %c0_i32_0 = arith.constant 0 : i32
    return %arg0, %c0_i32 : i32, i32
  }
  func.func @transform_1(%arg0: i32) -> (i32, i32) {
    %c0_i32 = arith.constant 0 : i32
    %c0_i32_0 = arith.constant 0 : i32
    %c0_i32_1 = arith.constant 0 : i32
    return %c0_i32, %c0_i32_0 : i32, i32
  }
  func.func @transform_2(%arg0: i32) -> (i32, i32) {
    %c0_i32 = arith.constant 0 : i32
    %c0_i32_0 = arith.constant 0 : i32
    %c0_i32_1 = arith.constant 0 : i32
    return %c0_i32, %c0_i32_0 : i32, i32
  }
  func.func @transform_3(%arg0: i32) -> (i32, i32) {
    %c0_i32 = arith.constant 0 : i32
    %c0_i32_0 = arith.constant 0 : i32
    %c0_i32_1 = arith.constant 0 : i32
    return %c0_i32, %c0_i32_0 : i32, i32
  }
  func.func @transform_4(%arg0: i32) -> (i32, i32) {
    %c0_i32 = arith.constant 0 : i32
    %c0_i32_0 = arith.constant 0 : i32
    %c0_i32_1 = arith.constant 0 : i32
    return %c0_i32, %c0_i32_0 : i32, i32
  }
  func.func @transform_5(%arg0: i32) -> (i32, i32) {
    %c0_i32 = arith.constant 0 : i32
    %c0_i32_0 = arith.constant 0 : i32
    %c0_i32_1 = arith.constant 0 : i32
    return %c0_i32, %c0_i32_0 : i32, i32
  }
  func.func @transform_6(%arg0: i32) -> (i32, i32) {
    %c0_i32 = arith.constant 0 : i32
    %c0_i32_0 = arith.constant 0 : i32
    %c0_i32_1 = arith.constant 0 : i32
    return %c0_i32, %c0_i32_0 : i32, i32
  }
  func.func @transform_7(%arg0: i32) -> (i32, i32) {
    %c0_i32 = arith.constant 0 : i32
    %c0_i32_0 = arith.constant 0 : i32
    return %arg0, %c0_i32 : i32, i32
  }
  func.func @transform_8(%arg0: i32) -> (i32, i32) {
    %c0_i32 = arith.constant 0 : i32
    %c0_i32_0 = arith.constant 0 : i32
    return %arg0, %c0_i32 : i32, i32
  }
  func.func @transform_9(%arg0: i32) -> (i32, i32) {
    %c0_i32 = arith.constant 0 : i32
    %c0_i32_0 = arith.constant 0 : i32
    return %arg0, %c0_i32 : i32, i32
  }
}

module attributes {stable_mosaic.version = 11 : i64} {
  func.func @_ce_kernel(%arg0: memref<8x128xf32, #tpu.memory_space<vmem>>, %arg1: memref<8x128xf32, #tpu.memory_space<vmem>>, %arg2: memref<1x128xf32, #tpu.memory_space<vmem>>, %arg3: memref<1x1xf32, #tpu.memory_space<vmem>>) attributes {dimension_semantics = [], scalar_prefetch = 0 : i64, scratch_operands = 0 : i64, tpu.core_type = #tpu.core_type<tc>} {
    %c0 = arith.constant 0 : index
    %c0_0 = arith.constant 0 : index
    %0 = vector.load %arg0[%c0, %c0_0] : memref<8x128xf32, #tpu.memory_space<vmem>>, vector<8x128xf32>
    %c0_1 = arith.constant 0 : index
    %c0_2 = arith.constant 0 : index
    %1 = vector.load %arg2[%c0_1, %c0_2] : memref<1x128xf32, #tpu.memory_space<vmem>>, vector<1x128xf32>
    %cst = arith.constant 5.000000e-01 : f32
    %2 = vector.broadcast %cst : f32 to vector<1x128xf32>
    %3 = arith.cmpf ogt, %1, %2 : vector<1x128xf32>
    %cst_3 = arith.constant -1.000000e+30 : f32
    %4 = vector.shape_cast %3 : vector<1x128xi1> to vector<1x128xi1>
    %5 = vector.broadcast %4 : vector<1x128xi1> to vector<8x128xi1>
    %6 = vector.broadcast %cst_3 : f32 to vector<8x128xf32>
    %7 = arith.select %5, %0, %6 : vector<8x128xi1>, vector<8x128xf32>
    %cst_4 = arith.constant dense<0xFF800000> : vector<8xf32>
    %8 = vector.multi_reduction <maximumf>, %7, %cst_4 [1] : vector<8x128xf32> to vector<8xf32>
    %9 = vector.shape_cast %8 : vector<8xf32> to vector<8x1xf32>
    %10 = vector.broadcast %9 : vector<8x1xf32> to vector<8x128xf32>
    %11 = arith.subf %7, %10 : vector<8x128xf32>
    %12 = math.exp %11 : vector<8x128xf32>
    %cst_5 = arith.constant dense<0.000000e+00> : vector<8xf32>
    %13 = vector.multi_reduction <add>, %12, %cst_5 [1] : vector<8x128xf32> to vector<8xf32>
    %14 = vector.shape_cast %13 : vector<8xf32> to vector<8x1xf32>
    %15 = math.log %14 : vector<8x1xf32>
    %16 = arith.addf %9, %15 : vector<8x1xf32>
    %c0_6 = arith.constant 0 : index
    %c0_7 = arith.constant 0 : index
    %17 = vector.load %arg1[%c0_6, %c0_7] : memref<8x128xf32, #tpu.memory_space<vmem>>, vector<8x128xf32>
    %18 = arith.mulf %0, %17 : vector<8x128xf32>
    %cst_8 = arith.constant dense<0.000000e+00> : vector<8xf32>
    %19 = vector.multi_reduction <add>, %18, %cst_8 [1] : vector<8x128xf32> to vector<8xf32>
    %20 = vector.shape_cast %19 : vector<8xf32> to vector<8x1xf32>
    %21 = arith.subf %16, %20 : vector<8x1xf32>
    %cst_9 = arith.constant dense<0.000000e+00> : vector<1xf32>
    %22 = vector.multi_reduction <add>, %21, %cst_9 [0] : vector<8x1xf32> to vector<1xf32>
    %23 = vector.shape_cast %22 : vector<1xf32> to vector<1x1xf32>
    %cst_10 = arith.constant 1.250000e-01 : f32
    %24 = vector.broadcast %cst_10 : f32 to vector<1x1xf32>
    %25 = arith.mulf %23, %24 : vector<1x1xf32>
    %c0_11 = arith.constant 0 : index
    %c0_12 = arith.constant 0 : index
    %26 = vector.load %arg3[%c0_11, %c0_12] : memref<1x1xf32, #tpu.memory_space<vmem>>, vector<1x1xf32>
    tpu.vector_store %arg3[%c0_11, %c0_12], %25 {strides = array<i32>} : memref<1x1xf32, #tpu.memory_space<vmem>>, vector<1x1xf32>,
    return
  }
}

module attributes {stable_mosaic.version = 11 : i64} {
  func.func @_mlp_fwd_kernel(%arg0: i32, %arg1: memref<8x1024xbf16, #tpu.memory_space<vmem>>, %arg2: memref<1024x128xbf16, #tpu.memory_space<vmem>>, %arg3: memref<1x128xf32, #tpu.memory_space<vmem>>, %arg4: memref<128x128xbf16, #tpu.memory_space<vmem>>, %arg5: memref<1x128xf32, #tpu.memory_space<vmem>>, %arg6: memref<128x128xbf16, #tpu.memory_space<vmem>>, %arg7: memref<1x128xf32, #tpu.memory_space<vmem>>, %arg8: memref<8x128xbf16, #tpu.memory_space<vmem>>, %arg9: memref<8x128xf32, #tpu.memory_space<vmem>>, %arg10: memref<8x128xf32, #tpu.memory_space<vmem>>) attributes {dimension_semantics = [#tpu.dimension_semantics<parallel>], iteration_bounds = array<i64: 1>, scalar_prefetch = 0 : i64, scratch_operands = 0 : i64, tpu.core_type = #tpu.core_type<tc>, window_params = [{transform_indices = @transform_0, window_bounds = array<i64: 8, 1024>}, {pipeline_mode = #tpu.pipeline_mode<synchronous>, transform_indices = @transform_1, window_bounds = array<i64: 1024, 128>}, {pipeline_mode = #tpu.pipeline_mode<synchronous>, transform_indices = @transform_2, window_bounds = array<i64: 1, 128>}, {pipeline_mode = #tpu.pipeline_mode<synchronous>, transform_indices = @transform_3, window_bounds = array<i64: 128, 128>}, {pipeline_mode = #tpu.pipeline_mode<synchronous>, transform_indices = @transform_4, window_bounds = array<i64: 1, 128>}, {pipeline_mode = #tpu.pipeline_mode<synchronous>, transform_indices = @transform_5, window_bounds = array<i64: 128, 128>}, {pipeline_mode = #tpu.pipeline_mode<synchronous>, transform_indices = @transform_6, window_bounds = array<i64: 1, 128>}, {transform_indices = @transform_7, window_bounds = array<i64: 8, 128>}, {transform_indices = @transform_8, window_bounds = array<i64: 8, 128>}, {transform_indices = @transform_9, window_bounds = array<i64: 8, 128>}]} {
    %c0 = arith.constant 0 : index
    %c0_0 = arith.constant 0 : index
    %0 = vector.load %arg1[%c0, %c0_0] : memref<8x1024xbf16, #tpu.memory_space<vmem>>, vector<8x1024xbf16>
    %c0_1 = arith.constant 0 : index
    %c0_2 = arith.constant 0 : index
    %1 = vector.load %arg2[%c0_1, %c0_2] : memref<1024x128xbf16, #tpu.memory_space<vmem>>, vector<1024x128xbf16>
    %cst = arith.constant dense<0.000000e+00> : vector<8x128xf32>
    %2 = tpu.matmul %0, %1, %cst {dimension_numbers = #tpu.dot_dimension_numbers<[1], [0], [0], [1], [0, 0, 1, 1], [], []>} : vector<8x1024xbf16>, vector<1024x128xbf16>, vector<8x128xf32> -> vector<8x128xf32>
    %c0_3 = arith.constant 0 : index
    %c0_4 = arith.constant 0 : index
    %3 = vector.load %arg3[%c0_3, %c0_4] : memref<1x128xf32, #tpu.memory_space<vmem>>, vector<1x128xf32>
    %4 = vector.broadcast %3 : vector<1x128xf32> to vector<8x128xf32>
    %5 = arith.addf %2, %4 : vector<8x128xf32>
    %cst_5 = arith.constant 0.000000e+00 : f32
    %6 = vector.broadcast %cst_5 : f32 to vector<8x128xf32>
    %7 = arith.maximumf %5, %6 : vector<8x128xf32>
    %8 = arith.truncf %7 : vector<8x128xf32> to vector<8x128xbf16>
    %c0_6 = arith.constant 0 : index
    %c0_7 = arith.constant 0 : index
    %9 = vector.load %arg8[%c0_6, %c0_7] : memref<8x128xbf16, #tpu.memory_space<vmem>>, vector<8x128xbf16>
    tpu.vector_store %arg8[%c0_6, %c0_7], %8 {strides = array<i32>} : memref<8x128xbf16, #tpu.memory_space<vmem>>, vector<8x128xbf16>,
    %c0_8 = arith.constant 0 : index
    %c0_9 = arith.constant 0 : index
    %10 = vector.load %arg4[%c0_8, %c0_9] : memref<128x128xbf16, #tpu.memory_space<vmem>>, vector<128x128xbf16>
    %cst_10 = arith.constant dense<0.000000e+00> : vector<8x128xf32>
    %11 = tpu.matmul %8, %10, %cst_10 {dimension_numbers = #tpu.dot_dimension_numbers<[1], [0], [0], [1], [0, 0, 1, 1], [], []>} : vector<8x128xbf16>, vector<128x128xbf16>, vector<8x128xf32> -> vector<8x128xf32>
    %c0_11 = arith.constant 0 : index
    %c0_12 = arith.constant 0 : index
    %12 = vector.load %arg5[%c0_11, %c0_12] : memref<1x128xf32, #tpu.memory_space<vmem>>, vector<1x128xf32>
    %13 = vector.broadcast %12 : vector<1x128xf32> to vector<8x128xf32>
    %14 = arith.addf %11, %13 : vector<8x128xf32>
    %c0_13 = arith.constant 0 : index
    %c0_14 = arith.constant 0 : index
    %15 = vector.load %arg9[%c0_13, %c0_14] : memref<8x128xf32, #tpu.memory_space<vmem>>, vector<8x128xf32>
    tpu.vector_store %arg9[%c0_13, %c0_14], %14 {strides = array<i32>} : memref<8x128xf32, #tpu.memory_space<vmem>>, vector<8x128xf32>,
    %16 = arith.truncf %14 : vector<8x128xf32> to vector<8x128xbf16>
    %c0_15 = arith.constant 0 : index
    %c0_16 = arith.constant 0 : index
    %17 = vector.load %arg6[%c0_15, %c0_16] : memref<128x128xbf16, #tpu.memory_space<vmem>>, vector<128x128xbf16>
    %cst_17 = arith.constant dense<0.000000e+00> : vector<8x128xf32>
    %18 = tpu.matmul %16, %17, %cst_17 {dimension_numbers = #tpu.dot_dimension_numbers<[1], [0], [0], [1], [0, 0, 1, 1], [], []>} : vector<8x128xbf16>, vector<128x128xbf16>, vector<8x128xf32> -> vector<8x128xf32>
    %c0_18 = arith.constant 0 : index
    %c0_19 = arith.constant 0 : index
    %19 = vector.load %arg7[%c0_18, %c0_19] : memref<1x128xf32, #tpu.memory_space<vmem>>, vector<1x128xf32>
    %20 = vector.broadcast %19 : vector<1x128xf32> to vector<8x128xf32>
    %21 = arith.addf %18, %20 : vector<8x128xf32>
    %c0_20 = arith.constant 0 : index
    %c0_21 = arith.constant 0 : index
    %22 = vector.load %arg10[%c0_20, %c0_21] : memref<8x128xf32, #tpu.memory_space<vmem>>, vector<8x128xf32>
    tpu.vector_store %arg10[%c0_20, %c0_21], %21 {strides = array<i32>} : memref<8x128xf32, #tpu.memory_space<vmem>>, vector<8x128xf32>,
    return
  }
  func.func @transform_0(%arg0: i32) -> (i32, i32) {
    %c0_i32 = arith.constant 0 : i32
    %c0_i32_0 = arith.constant 0 : i32
    return %arg0, %c0_i32 : i32, i32
  }
  func.func @transform_1(%arg0: i32) -> (i32, i32) {
    %c0_i32 = arith.constant 0 : i32
    %c0_i32_0 = arith.constant 0 : i32
    %c0_i32_1 = arith.constant 0 : i32
    return %c0_i32, %c0_i32_0 : i32, i32
  }
  func.func @transform_2(%arg0: i32) -> (i32, i32) {
    %c0_i32 = arith.constant 0 : i32
    %c0_i32_0 = arith.constant 0 : i32
    %c0_i32_1 = arith.constant 0 : i32
    return %c0_i32, %c0_i32_0 : i32, i32
  }
  func.func @transform_3(%arg0: i32) -> (i32, i32) {
    %c0_i32 = arith.constant 0 : i32
    %c0_i32_0 = arith.constant 0 : i32
    %c0_i32_1 = arith.constant 0 : i32
    return %c0_i32, %c0_i32_0 : i32, i32
  }
  func.func @transform_4(%arg0: i32) -> (i32, i32) {
    %c0_i32 = arith.constant 0 : i32
    %c0_i32_0 = arith.constant 0 : i32
    %c0_i32_1 = arith.constant 0 : i32
    return %c0_i32, %c0_i32_0 : i32, i32
  }
  func.func @transform_5(%arg0: i32) -> (i32, i32) {
    %c0_i32 = arith.constant 0 : i32
    %c0_i32_0 = arith.constant 0 : i32
    %c0_i32_1 = arith.constant 0 : i32
    return %c0_i32, %c0_i32_0 : i32, i32
  }
  func.func @transform_6(%arg0: i32) -> (i32, i32) {
    %c0_i32 = arith.constant 0 : i32
    %c0_i32_0 = arith.constant 0 : i32
    %c0_i32_1 = arith.constant 0 : i32
    return %c0_i32, %c0_i32_0 : i32, i32
  }
  func.func @transform_7(%arg0: i32) -> (i32, i32) {
    %c0_i32 = arith.constant 0 : i32
    %c0_i32_0 = arith.constant 0 : i32
    return %arg0, %c0_i32 : i32, i32
  }
  func.func @transform_8(%arg0: i32) -> (i32, i32) {
    %c0_i32 = arith.constant 0 : i32
    %c0_i32_0 = arith.constant 0 : i32
    return %arg0, %c0_i32 : i32, i32
  }
  func.func @transform_9(%arg0: i32) -> (i32, i32) {
    %c0_i32 = arith.constant 0 : i32
    %c0_i32_0 = arith.constant 0 : i32
    return %arg0, %c0_i32 : i32, i32
  }
}

module attributes {stable_mosaic.version = 11 : i64} {
  func.func @_proj_kernel(%arg0: memref<16x128xbf16, #tpu.memory_space<vmem>>, %arg1: memref<128x128xbf16, #tpu.memory_space<vmem>>, %arg2: memref<16x128xf32, #tpu.memory_space<vmem>>) attributes {dimension_semantics = [], scalar_prefetch = 0 : i64, scratch_operands = 0 : i64, tpu.core_type = #tpu.core_type<tc>} {
    %c0 = arith.constant 0 : index
    %c0_0 = arith.constant 0 : index
    %0 = vector.load %arg0[%c0, %c0_0] : memref<16x128xbf16, #tpu.memory_space<vmem>>, vector<16x128xbf16>
    %c0_1 = arith.constant 0 : index
    %c0_2 = arith.constant 0 : index
    %1 = vector.load %arg1[%c0_1, %c0_2] : memref<128x128xbf16, #tpu.memory_space<vmem>>, vector<128x128xbf16>
    %cst = arith.constant dense<0.000000e+00> : vector<16x128xf32>
    %2 = tpu.matmul %0, %1, %cst {dimension_numbers = #tpu.dot_dimension_numbers<[1], [0], [0], [1], [0, 0, 1, 1], [], []>} : vector<16x128xbf16>, vector<128x128xbf16>, vector<16x128xf32> -> vector<16x128xf32>
    %c0_3 = arith.constant 0 : index
    %c0_4 = arith.constant 0 : index
    %3 = vector.load %arg2[%c0_3, %c0_4] : memref<16x128xf32, #tpu.memory_space<vmem>>, vector<16x128xf32>
    tpu.vector_store %arg2[%c0_3, %c0_4], %2 {strides = array<i32>} : memref<16x128xf32, #tpu.memory_space<vmem>>, vector<16x128xf32>,
    return
  }
}

module attributes {stable_mosaic.version = 11 : i64} {
  func.func @_swd_reduce_kernel(%arg0: memref<8x128xf32, #tpu.memory_space<vmem>>, %arg1: memref<8x128xf32, #tpu.memory_space<vmem>>, %arg2: memref<1x128xf32, #tpu.memory_space<vmem>>) attributes {dimension_semantics = [], scalar_prefetch = 0 : i64, scratch_operands = 0 : i64, tpu.core_type = #tpu.core_type<tc>} {
    %c0 = arith.constant 0 : index
    %c0_0 = arith.constant 0 : index
    %0 = vector.load %arg0[%c0, %c0_0] : memref<8x128xf32, #tpu.memory_space<vmem>>, vector<8x128xf32>
    %c0_1 = arith.constant 0 : index
    %c0_2 = arith.constant 0 : index
    %1 = vector.load %arg1[%c0_1, %c0_2] : memref<8x128xf32, #tpu.memory_space<vmem>>, vector<8x128xf32>
    %2 = arith.subf %0, %1 : vector<8x128xf32>
    %3 = arith.mulf %2, %2 : vector<8x128xf32>
    %cst = arith.constant dense<0.000000e+00> : vector<128xf32>
    %4 = vector.multi_reduction <add>, %3, %cst [0] : vector<8x128xf32> to vector<128xf32>
    %5 = vector.shape_cast %4 : vector<128xf32> to vector<1x128xf32>
    %cst_3 = arith.constant 8.000000e+00 : f32
    %6 = vector.broadcast %cst_3 : f32 to vector<1x128xf32>
    %7 = arith.divf %5, %6 : vector<1x128xf32>
    %c0_4 = arith.constant 0 : index
    %c0_5 = arith.constant 0 : index
    %8 = vector.load %arg2[%c0_4, %c0_5] : memref<1x128xf32, #tpu.memory_space<vmem>>, vector<1x128xf32>
    tpu.vector_store %arg2[%c0_4, %c0_5], %7 {strides = array<i32>} : memref<1x128xf32, #tpu.memory_space<vmem>>, vector<1x128xf32>,
    return
  }
}

module attributes {stable_mosaic.version = 11 : i64} {
  func.func @_jacreg_kernel(%arg0: memref<8x128xbf16, #tpu.memory_space<vmem>>, %arg1: memref<8x128xbf16, #tpu.memory_space<vmem>>, %arg2: memref<1024x128xbf16, #tpu.memory_space<vmem>>, %arg3: memref<128x128xbf16, #tpu.memory_space<vmem>>, %arg4: memref<1x1xf32, #tpu.memory_space<vmem>>) attributes {dimension_semantics = [], scalar_prefetch = 0 : i64, scratch_operands = 0 : i64, tpu.core_type = #tpu.core_type<tc>} {
    %c0 = arith.constant 0 : index
    %c0_0 = arith.constant 0 : index
    %0 = vector.load %arg0[%c0, %c0_0] : memref<8x128xbf16, #tpu.memory_space<vmem>>, vector<8x128xbf16>
    %c0_1 = arith.constant 0 : index
    %c0_2 = arith.constant 0 : index
    %1 = vector.load %arg3[%c0_1, %c0_2] : memref<128x128xbf16, #tpu.memory_space<vmem>>, vector<128x128xbf16>
    %cst = arith.constant dense<0.000000e+00> : vector<8x128xf32>
    %2 = tpu.matmul %0, %1, %cst {dimension_numbers = #tpu.dot_dimension_numbers<[1], [1], [0], [0], [0, 0, 1, 0], [], []>} : vector<8x128xbf16>, vector<128x128xbf16>, vector<8x128xf32> -> vector<8x128xf32>
    %c0_3 = arith.constant 0 : index
    %c0_4 = arith.constant 0 : index
    %3 = vector.load %arg1[%c0_3, %c0_4] : memref<8x128xbf16, #tpu.memory_space<vmem>>, vector<8x128xbf16>
    %cst_5 = arith.constant 0.000000e+00 : bf16
    %4 = vector.broadcast %cst_5 : bf16 to vector<8x128xbf16>
    %5 = arith.cmpf ogt, %3, %4 : vector<8x128xbf16>
    %cst_6 = arith.constant 0.000000e+00 : f32
    %6 = vector.broadcast %cst_6 : f32 to vector<8x128xf32>
    %7 = arith.select %5, %2, %6 : vector<8x128xi1>, vector<8x128xf32>
    %8 = arith.truncf %7 : vector<8x128xf32> to vector<8x128xbf16>
    %c0_7 = arith.constant 0 : index
    %c0_8 = arith.constant 0 : index
    %9 = vector.load %arg2[%c0_7, %c0_8] : memref<1024x128xbf16, #tpu.memory_space<vmem>>, vector<1024x128xbf16>
    %cst_9 = arith.constant dense<0.000000e+00> : vector<8x1024xf32>
    %10 = tpu.matmul %8, %9, %cst_9 {dimension_numbers = #tpu.dot_dimension_numbers<[1], [1], [0], [0], [0, 0, 1, 0], [], []>} : vector<8x128xbf16>, vector<1024x128xbf16>, vector<8x1024xf32> -> vector<8x1024xf32>
    %11 = arith.mulf %10, %10 : vector<8x1024xf32>
    %cst_10 = arith.constant dense<0.000000e+00> : vector<8xf32>
    %12 = vector.multi_reduction <add>, %11, %cst_10 [1] : vector<8x1024xf32> to vector<8xf32>
    %13 = vector.shape_cast %12 : vector<8xf32> to vector<8x1xf32>
    %cst_11 = arith.constant dense<0.000000e+00> : vector<1xf32>
    %14 = vector.multi_reduction <add>, %13, %cst_11 [0] : vector<8x1xf32> to vector<1xf32>
    %15 = vector.shape_cast %14 : vector<1xf32> to vector<1x1xf32>
    %c0_12 = arith.constant 0 : index
    %c0_13 = arith.constant 0 : index
    %16 = vector.load %arg4[%c0_12, %c0_13] : memref<1x1xf32, #tpu.memory_space<vmem>>, vector<1x1xf32>
    tpu.vector_store %arg4[%c0_12, %c0_13], %15 {strides = array<i32>} : memref<1x1xf32, #tpu.memory_space<vmem>>, vector<1x1xf32>,
    return
  }
}

</mosaic_0001>

<llo_original>
// kernel: jvp__.3
$region0: #{jvp__.3}
  #allocation0 [shape = 'u32[]', space=smem, size = 0x4, offset = 0x4, fixed_abs, tag = 'smem constant byte address 0x4 - core index']
  #allocation1 [shape = 'u32[144,128]{1,0:T(1,128)}', space=vmem, size = 0x12000, scoped, tag = 'internal scratch']
  %s0 = inlined_call_operand.vmem [shape: bf16[8,1024], index: 0, kind: input, shape index: {}]
  %s1 = inlined_call_operand.vmem [shape: bf16[1024,128], index: 1, kind: input, shape index: {}]
  %s2 = inlined_call_operand.vmem [shape: f32[1,128], index: 2, kind: input, shape index: {}]
  %s3 = inlined_call_operand.vmem [shape: bf16[128,128], index: 3, kind: input, shape index: {}]
  %s4 = inlined_call_operand.vmem [shape: f32[1,128], index: 4, kind: input, shape index: {}]
  %s5 = inlined_call_operand.vmem [shape: bf16[128,128], index: 5, kind: input, shape index: {}]
  %s6 = inlined_call_operand.vmem [shape: f32[1,128], index: 6, kind: input, shape index: {}]
  %s7 = inlined_call_operand.vmem [shape: bf16[8,128], index: 7, kind: output, shape index: {0}]
  %s8 = inlined_call_operand.vmem [shape: f32[8,128], index: 8, kind: output, shape index: {1}]
  %s9 = inlined_call_operand.vmem [shape: f32[8,128], index: 9, kind: output, shape index: {2}]
  %10 = xla_tuple %s7, %s8, %s9
  %s11 = sld [smem:[#allocation0]]
  $region54: #{jvp__.3} parent=0
    _
  %s13 = ssub.s32 1, %s11
  %s14 = scalar_select 0, %s13, %s11
  // Predicated region
  $region2: #{jvp__.3} parent=0 // pred_check
    _
  $region3: #{jvp__.3} parent=0 // pred_check_branch
    %16 = sbr.rel (0) target = $region5
  $region4: #{jvp__.3} parent=0 // pred_region
    _
  $region5: #{jvp__.3} parent=0 // pred_fallthru
    _
  // Predicated region
  $region6: #{jvp__.3} parent=0 // pred_check
    _
  $region7: #{jvp__.3} parent=0 // pred_check_branch
    %18 = sbr.rel (0) target = $region9
  $region8: #{jvp__.3} parent=0 // pred_region
    _
  $region9: #{jvp__.3} parent=0 // pred_fallthru
    _
  // Predicated region
  $region10: #{jvp__.3} parent=0 // pred_check
    _
  $region11: #{jvp__.3} parent=0 // pred_check_branch
    %20 = sbr.rel (0) target = $region13
  $region12: #{jvp__.3} parent=0 // pred_region
    _
  $region13: #{jvp__.3} parent=0 // pred_fallthru
    _
  // Predicated region
  $region14: #{jvp__.3} parent=0 // pred_check
    _
  $region15: #{jvp__.3} parent=0 // pred_check_branch
    %22 = sbr.rel (0) target = $region17
  $region16: #{jvp__.3} parent=0 // pred_region
    _
  $region17: #{jvp__.3} parent=0 // pred_fallthru
    _
  // Predicated region
  $region18: #{jvp__.3} parent=0 // pred_check
    _
  $region19: #{jvp__.3} parent=0 // pred_check_branch
    %24 = sbr.rel (0) target = $region21
  $region20: #{jvp__.3} parent=0 // pred_region
    _
  $region21: #{jvp__.3} parent=0 // pred_fallthru
    _
  // Predicated region
  $region22: #{jvp__.3} parent=0 // pred_check
    _
  $region23: #{jvp__.3} parent=0 // pred_check_branch
    %26 = sbr.rel (0) target = $region25
  $region24: #{jvp__.3} parent=0 // pred_region
    _
  $region25: #{jvp__.3} parent=0 // pred_fallthru
    _
  // Predicated region
  $region26: #{jvp__.3} parent=0 // pred_check
    _
  $region27: #{jvp__.3} parent=0 // pred_check_branch
    %28 = sbr.rel (0) target = $region29
  $region28: #{jvp__.3} parent=0 // pred_region
    _
  $region29: #{jvp__.3} parent=0 // pred_fallthru
    _
  %v30 = vld [vmem:[%s0] sm:$0xff]
  %v31 = vld [vmem:[%s0 + $0x8] sm:$0xff]
  %v32 = vld [vmem:[%s0 + $0x10] sm:$0xff]
  %v33 = vld [vmem:[%s0 + $0x18] sm:$0xff]
  %v34 = vld [vmem:[%s1] sm:$0xf]
  %v35 = vld [vmem:[%s1 + $0x4] sm:$0xf]
  %v36 = vld [vmem:[%s1 + $0x8] sm:$0xf]
  %v37 = vld [vmem:[%s1 + $0xc] sm:$0xf]
  %v38 = vld [vmem:[%s1 + $0x10] sm:$0xf]
  %v39 = vld [vmem:[%s1 + $0x14] sm:$0xf]
  %v40 = vld [vmem:[%s1 + $0x18] sm:$0xf]
  %v41 = vld [vmem:[%s1 + $0x1c] sm:$0xf]
  %v42 = vld [vmem:[%s1 + $0x20] sm:$0xf]
  %v43 = vld [vmem:[%s1 + $0x24] sm:$0xf]
  %v44 = vld [vmem:[%s1 + $0x28] sm:$0xf]
  %v45 = vld [vmem:[%s1 + $0x2c] sm:$0xf]
  %v46 = vld [vmem:[%s1 + $0x30] sm:$0xf]
  %v47 = vld [vmem:[%s1 + $0x34] sm:$0xf]
  %v48 = vld [vmem:[%s1 + $0x38] sm:$0xf]
  %v49 = vld [vmem:[%s1 + $0x3c] sm:$0xf]
  %v50 = vld [vmem:[%s1 + $0x40] sm:$0xf]
  %v51 = vld [vmem:[%s1 + $0x44] sm:$0xf]
  %v52 = vld [vmem:[%s1 + $0x48] sm:$0xf]
  %v53 = vld [vmem:[%s1 + $0x4c] sm:$0xf]
  %v54 = vld [vmem:[%s1 + $0x50] sm:$0xf]
  %v55 = vld [vmem:[%s1 + $0x54] sm:$0xf]
  %v56 = vld [vmem:[%s1 + $0x58] sm:$0xf]
  %v57 = vld [vmem:[%s1 + $0x5c] sm:$0xf]
  %v58 = vld [vmem:[%s1 + $0x60] sm:$0xf]
  %v59 = vld [vmem:[%s1 + $0x64] sm:$0xf]
  %v60 = vld [vmem:[%s1 + $0x68] sm:$0xf]
  %v61 = vld [vmem:[%s1 + $0x6c] sm:$0xf]
  %v62 = vld [vmem:[%s1 + $0x70] sm:$0xf]
  %v63 = vld [vmem:[%s1 + $0x74] sm:$0xf]
  %v64 = vld [vmem:[%s1 + $0x78] sm:$0xf]
  %v65 = vld [vmem:[%s1 + $0x7c] sm:$0xf]
  %v66 = vld [vmem:[%s1 + $0x80] sm:$0xf]
  %v67 = vld [vmem:[%s1 + $0x84] sm:$0xf]
  %v68 = vld [vmem:[%s1 + $0x88] sm:$0xf]
  %v69 = vld [vmem:[%s1 + $0x8c] sm:$0xf]
  %v70 = vld [vmem:[%s1 + $0x90] sm:$0xf]
  %v71 = vld [vmem:[%s1 + $0x94] sm:$0xf]
  %v72 = vld [vmem:[%s1 + $0x98] sm:$0xf]
  %v73 = vld [vmem:[%s1 + $0x9c] sm:$0xf]
  %v74 = vld [vmem:[%s1 + $0xa0] sm:$0xf]
  %v75 = vld [vmem:[%s1 + $0xa4] sm:$0xf]
  %v76 = vld [vmem:[%s1 + $0xa8] sm:$0xf]
  %v77 = vld [vmem:[%s1 + $0xac] sm:$0xf]
  %v78 = vld [vmem:[%s1 + $0xb0] sm:$0xf]
  %v79 = vld [vmem:[%s1 + $0xb4] sm:$0xf]
  %v80 = vld [vmem:[%s1 + $0xb8] sm:$0xf]
  %v81 = vld [vmem:[%s1 + $0xbc] sm:$0xf]
  %v82 = vld [vmem:[%s1 + $0xc0] sm:$0xf]
  %v83 = vld [vmem:[%s1 + $0xc4] sm:$0xf]
  %v84 = vld [vmem:[%s1 + $0xc8] sm:$0xf]
  %v85 = vld [vmem:[%s1 + $0xcc] sm:$0xf]
  %v86 = vld [vmem:[%s1 + $0xd0] sm:$0xf]
  %v87 = vld [vmem:[%s1 + $0xd4] sm:$0xf]
  %v88 = vld [vmem:[%s1 + $0xd8] sm:$0xf]
  %v89 = vld [vmem:[%s1 + $0xdc] sm:$0xf]
  %v90 = vld [vmem:[%s1 + $0xe0] sm:$0xf]
  %v91 = vld [vmem:[%s1 + $0xe4] sm:$0xf]
  %v92 = vld [vmem:[%s1 + $0xe8] sm:$0xf]
  %v93 = vld [vmem:[%s1 + $0xec] sm:$0xf]
  %v94 = vld [vmem:[%s1 + $0xf0] sm:$0xf]
  %v95 = vld [vmem:[%s1 + $0xf4] sm:$0xf]
  %v96 = vld [vmem:[%s1 + $0xf8] sm:$0xf]
  %v97 = vld [vmem:[%s1 + $0xfc] sm:$0xf]
  %v98 = vld [vmem:[%s1 + $0x100] sm:$0xf]
  %v99 = vld [vmem:[%s1 + $0x104] sm:$0xf]
  %v100 = vld [vmem:[%s1 + $0x108] sm:$0xf]
  %v101 = vld [vmem:[%s1 + $0x10c] sm:$0xf]
  %v102 = vld [vmem:[%s1 + $0x110] sm:$0xf]
  %v103 = vld [vmem:[%s1 + $0x114] sm:$0xf]
  %v104 = vld [vmem:[%s1 + $0x118] sm:$0xf]
  %v105 = vld [vmem:[%s1 + $0x11c] sm:$0xf]
  %v106 = vld [vmem:[%s1 + $0x120] sm:$0xf]
  %v107 = vld [vmem:[%s1 + $0x124] sm:$0xf]
  %v108 = vld [vmem:[%s1 + $0x128] sm:$0xf]
  %v109 = vld [vmem:[%s1 + $0x12c] sm:$0xf]
  %v110 = vld [vmem:[%s1 + $0x130] sm:$0xf]
  %v111 = vld [vmem:[%s1 + $0x134] sm:$0xf]
  %v112 = vld [vmem:[%s1 + $0x138] sm:$0xf]
  %v113 = vld [vmem:[%s1 + $0x13c] sm:$0xf]
  %v114 = vld [vmem:[%s1 + $0x140] sm:$0xf]
  %v115 = vld [vmem:[%s1 + $0x144] sm:$0xf]
  %v116 = vld [vmem:[%s1 + $0x148] sm:$0xf]
  %v117 = vld [vmem:[%s1 + $0x14c] sm:$0xf]
  %v118 = vld [vmem:[%s1 + $0x150] sm:$0xf]
  %v119 = vld [vmem:[%s1 + $0x154] sm:$0xf]
  %v120 = vld [vmem:[%s1 + $0x158] sm:$0xf]
  %v121 = vld [vmem:[%s1 + $0x15c] sm:$0xf]
  %v122 = vld [vmem:[%s1 + $0x160] sm:$0xf]
  %v123 = vld [vmem:[%s1 + $0x164] sm:$0xf]
  %v124 = vld [vmem:[%s1 + $0x168] sm:$0xf]
  %v125 = vld [vmem:[%s1 + $0x16c] sm:$0xf]
  %v126 = vld [vmem:[%s1 + $0x170] sm:$0xf]
  %v127 = vld [vmem:[%s1 + $0x174] sm:$0xf]
  %v128 = vld [vmem:[%s1 + $0x178] sm:$0xf]
  %v129 = vld [vmem:[%s1 + $0x17c] sm:$0xf]
  %v130 = vld [vmem:[%s1 + $0x180] sm:$0xf]
  %v131 = vld [vmem:[%s1 + $0x184] sm:$0xf]
  %v132 = vld [vmem:[%s1 + $0x188] sm:$0xf]
  %v133 = vld [vmem:[%s1 + $0x18c] sm:$0xf]
  %v134 = vld [vmem:[%s1 + $0x190] sm:$0xf]
  %v135 = vld [vmem:[%s1 + $0x194] sm:$0xf]
  %v136 = vld [vmem:[%s1 + $0x198] sm:$0xf]
  %v137 = vld [vmem:[%s1 + $0x19c] sm:$0xf]
  %v138 = vld [vmem:[%s1 + $0x1a0] sm:$0xf]
  %v139 = vld [vmem:[%s1 + $0x1a4] sm:$0xf]
  %v140 = vld [vmem:[%s1 + $0x1a8] sm:$0xf]
  %v141 = vld [vmem:[%s1 + $0x1ac] sm:$0xf]
  %v142 = vld [vmem:[%s1 + $0x1b0] sm:$0xf]
  %v143 = vld [vmem:[%s1 + $0x1b4] sm:$0xf]
  %v144 = vld [vmem:[%s1 + $0x1b8] sm:$0xf]
  %v145 = vld [vmem:[%s1 + $0x1bc] sm:$0xf]
  %v146 = vld [vmem:[%s1 + $0x1c0] sm:$0xf]
  %v147 = vld [vmem:[%s1 + $0x1c4] sm:$0xf]
  %v148 = vld [vmem:[%s1 + $0x1c8] sm:$0xf]
  %v149 = vld [vmem:[%s1 + $0x1cc] sm:$0xf]
  %v150 = vld [vmem:[%s1 + $0x1d0] sm:$0xf]
  %v151 = vld [vmem:[%s1 + $0x1d4] sm:$0xf]
  %v152 = vld [vmem:[%s1 + $0x1d8] sm:$0xf]
  %v153 = vld [vmem:[%s1 + $0x1dc] sm:$0xf]
  %v154 = vld [vmem:[%s1 + $0x1e0] sm:$0xf]
  %v155 = vld [vmem:[%s1 + $0x1e4] sm:$0xf]
  %v156 = vld [vmem:[%s1 + $0x1e8] sm:$0xf]
  %v157 = vld [vmem:[%s1 + $0x1ec] sm:$0xf]
  %v158 = vld [vmem:[%s1 + $0x1f0] sm:$0xf]
  %v159 = vld [vmem:[%s1 + $0x1f4] sm:$0xf]
  %v160 = vld [vmem:[%s1 + $0x1f8] sm:$0xf]
  %v161 = vld [vmem:[%s1 + $0x1fc] sm:$0xf]
  %v162 = vld [vmem:[%s2] sm:$0x1]
  %v164 = vlaneseq
  %v165 = vshrl.u32 %v164, 7
  %v166 = vsub.s32 0, %v165
  %v167 = vrot.slane %v162, %v166
  %v173 = vunpack.c.l.b16 %v30
  %v174 = vunpack.c.h.b16 %v30
  %v175 = vunpack.c.l.b16 %v31
  %v176 = vunpack.c.h.b16 %v31
  %v177 = vunpack.c.l.b16 %v32
  %v178 = vunpack.c.h.b16 %v32
  %v179 = vunpack.c.l.b16 %v33
  %v180 = vunpack.c.h.b16 %v33
  %v181 = vpack.c.b16 %v173, %v173
  %v182 = vpack.c.b16 %v174, %v174
  %v183 = vpack.c.b16 %v175, %v175
  %v184 = vpack.c.b16 %v176, %v176
  %v185 = vpack.c.b16 %v177, %v177
  %v186 = vpack.c.b16 %v178, %v178
  %v187 = vpack.c.b16 %v179, %v179
  %v188 = vpack.c.b16 %v180, %v180
  %v325 = vunpack.c.l.b16 %v34
  %v326 = vunpack.c.l.b16 %v35
  %v327 = vunpack.c.l.b16 %v36
  %v328 = vunpack.c.l.b16 %v37
  %v329 = vunpack.c.l.b16 %v38
  %v330 = vunpack.c.l.b16 %v39
  %v331 = vunpack.c.l.b16 %v40
  %v332 = vunpack.c.l.b16 %v41
  %v333 = vunpack.c.l.b16 %v42
  %v334 = vunpack.c.l.b16 %v43
  %v335 = vunpack.c.l.b16 %v44
  %v336 = vunpack.c.l.b16 %v45
  %v337 = vunpack.c.l.b16 %v46
  %v338 = vunpack.c.l.b16 %v47
  %v339 = vunpack.c.l.b16 %v48
  %v340 = vunpack.c.l.b16 %v49
  %v341 = vunpack.c.l.b16 %v50
  %v342 = vunpack.c.l.b16 %v51
  %v343 = vunpack.c.l.b16 %v52
  %v344 = vunpack.c.l.b16 %v53
  %v345 = vunpack.c.l.b16 %v54
  %v346 = vunpack.c.l.b16 %v55
  %v347 = vunpack.c.l.b16 %v56
  %v348 = vunpack.c.l.b16 %v57
  %v349 = vunpack.c.l.b16 %v58
  %v350 = vunpack.c.l.b16 %v59
  %v351 = vunpack.c.l.b16 %v60
  %v352 = vunpack.c.l.b16 %v61
  %v353 = vunpack.c.l.b16 %v62
  %v354 = vunpack.c.l.b16 %v63
  %v355 = vunpack.c.l.b16 %v64
  %v356 = vunpack.c.l.b16 %v65
  %v357 = vunpack.c.l.b16 %v66
  %v358 = vunpack.c.l.b16 %v67
  %v359 = vunpack.c.l.b16 %v68
  %v360 = vunpack.c.l.b16 %v69
  %v361 = vunpack.c.l.b16 %v70
  %v362 = vunpack.c.l.b16 %v71
  %v363 = vunpack.c.l.b16 %v72
  %v364 = vunpack.c.l.b16 %v73
  %v365 = vunpack.c.l.b16 %v74
  %v366 = vunpack.c.l.b16 %v75
  %v367 = vunpack.c.l.b16 %v76
  %v368 = vunpack.c.l.b16 %v77
  %v369 = vunpack.c.l.b16 %v78
  %v370 = vunpack.c.l.b16 %v79
  %v371 = vunpack.c.l.b16 %v80
  %v372 = vunpack.c.l.b16 %v81
  %v373 = vunpack.c.l.b16 %v82
  %v374 = vunpack.c.l.b16 %v83
  %v375 = vunpack.c.l.b16 %v84
  %v376 = vunpack.c.l.b16 %v85
  %v377 = vunpack.c.l.b16 %v86
  %v378 = vunpack.c.l.b16 %v87
  %v379 = vunpack.c.l.b16 %v88
  %v380 = vunpack.c.l.b16 %v89
  %v381 = vunpack.c.l.b16 %v90
  %v382 = vunpack.c.l.b16 %v91
  %v383 = vunpack.c.l.b16 %v92
  %v384 = vunpack.c.l.b16 %v93
  %v385 = vunpack.c.l.b16 %v94
  %v386 = vunpack.c.l.b16 %v95
  %v387 = vunpack.c.l.b16 %v96
  %v388 = vunpack.c.l.b16 %v97
  %v389 = vunpack.c.l.b16 %v98
  %v390 = vunpack.c.l.b16 %v99
  %v391 = vunpack.c.l.b16 %v100
  %v392 = vunpack.c.l.b16 %v101
  %v393 = vunpack.c.l.b16 %v102
  %v394 = vunpack.c.l.b16 %v103
  %v395 = vunpack.c.l.b16 %v104
  %v396 = vunpack.c.l.b16 %v105
  %v397 = vunpack.c.l.b16 %v106
  %v398 = vunpack.c.l.b16 %v107
  %v399 = vunpack.c.l.b16 %v108
  %v400 = vunpack.c.l.b16 %v109
  %v401 = vunpack.c.l.b16 %v110
  %v402 = vunpack.c.l.b16 %v111
  %v403 = vunpack.c.l.b16 %v112
  %v404 = vunpack.c.l.b16 %v113
  %v405 = vunpack.c.l.b16 %v114
  %v406 = vunpack.c.l.b16 %v115
  %v407 = vunpack.c.l.b16 %v116
  %v408 = vunpack.c.l.b16 %v117
  %v409 = vunpack.c.l.b16 %v118
  %v410 = vunpack.c.l.b16 %v119
  %v411 = vunpack.c.l.b16 %v120
  %v412 = vunpack.c.l.b16 %v121
  %v413 = vunpack.c.l.b16 %v122
  %v414 = vunpack.c.l.b16 %v123
  %v415 = vunpack.c.l.b16 %v124
  %v416 = vunpack.c.l.b16 %v125
  %v417 = vunpack.c.l.b16 %v126
  %v418 = vunpack.c.l.b16 %v127
  %v419 = vunpack.c.l.b16 %v128
  %v420 = vunpack.c.l.b16 %v129
  %v421 = vunpack.c.l.b16 %v130
  %v422 = vunpack.c.l.b16 %v131
  %v423 = vunpack.c.l.b16 %v132
  %v424 = vunpack.c.l.b16 %v133
  %v425 = vunpack.c.l.b16 %v134
  %v426 = vunpack.c.l.b16 %v135
  %v427 = vunpack.c.l.b16 %v136
  %v428 = vunpack.c.l.b16 %v137
  %v429 = vunpack.c.l.b16 %v138
  %v430 = vunpack.c.l.b16 %v139
  %v431 = vunpack.c.l.b16 %v140
  %v432 = vunpack.c.l.b16 %v141
  %v433 = vunpack.c.l.b16 %v142
  %v434 = vunpack.c.l.b16 %v143
  %v435 = vunpack.c.l.b16 %v144
  %v436 = vunpack.c.l.b16 %v145
  %v437 = vunpack.c.l.b16 %v146
  %v438 = vunpack.c.l.b16 %v147
  %v439 = vunpack.c.l.b16 %v148
  %v440 = vunpack.c.l.b16 %v149
  %v441 = vunpack.c.l.b16 %v150
  %v442 = vunpack.c.l.b16 %v151
  %v443 = vunpack.c.l.b16 %v152
  %v444 = vunpack.c.l.b16 %v153
  %v445 = vunpack.c.l.b16 %v154
  %v446 = vunpack.c.l.b16 %v155
  %v447 = vunpack.c.l.b16 %v156
  %v448 = vunpack.c.l.b16 %v157
  %v449 = vunpack.c.l.b16 %v158
  %v450 = vunpack.c.l.b16 %v159
  %v451 = vunpack.c.l.b16 %v160
  %v452 = vunpack.c.l.b16 %v161
  %v453 = vpack.c.b16 %v326, %v325
  %v454 = vpack.c.b16 %v328, %v327
  %v455 = vpack.c.b16 %v330, %v329
  %v456 = vpack.c.b16 %v332, %v331
  %v457 = vpack.c.b16 %v334, %v333
  %v458 = vpack.c.b16 %v336, %v335
  %v459 = vpack.c.b16 %v338, %v337
  %v460 = vpack.c.b16 %v340, %v339
  %v461 = vpack.c.b16 %v342, %v341
  %v462 = vpack.c.b16 %v344, %v343
  %v463 = vpack.c.b16 %v346, %v345
  %v464 = vpack.c.b16 %v348, %v347
  %v465 = vpack.c.b16 %v350, %v349
  %v466 = vpack.c.b16 %v352, %v351
  %v467 = vpack.c.b16 %v354, %v353
  %v468 = vpack.c.b16 %v356, %v355
  %v469 = vpack.c.b16 %v358, %v357
  %v470 = vpack.c.b16 %v360, %v359
  %v471 = vpack.c.b16 %v362, %v361
  %v472 = vpack.c.b16 %v364, %v363
  %v473 = vpack.c.b16 %v366, %v365
  %v474 = vpack.c.b16 %v368, %v367
  %v475 = vpack.c.b16 %v370, %v369
  %v476 = vpack.c.b16 %v372, %v371
  %v477 = vpack.c.b16 %v374, %v373
  %v478 = vpack.c.b16 %v376, %v375
  %v479 = vpack.c.b16 %v378, %v377
  %v480 = vpack.c.b16 %v380, %v379
  %v481 = vpack.c.b16 %v382, %v381
  %v482 = vpack.c.b16 %v384, %v383
  %v483 = vpack.c.b16 %v386, %v385
  %v484 = vpack.c.b16 %v388, %v387
  %v485 = vpack.c.b16 %v390, %v389
  %v486 = vpack.c.b16 %v392, %v391
  %v487 = vpack.c.b16 %v394, %v393
  %v488 = vpack.c.b16 %v396, %v395
  %v489 = vpack.c.b16 %v398, %v397
  %v490 = vpack.c.b16 %v400, %v399
  %v491 = vpack.c.b16 %v402, %v401
  %v492 = vpack.c.b16 %v404, %v403
  %v493 = vpack.c.b16 %v406, %v405
  %v494 = vpack.c.b16 %v408, %v407
  %v495 = vpack.c.b16 %v410, %v409
  %v496 = vpack.c.b16 %v412, %v411
  %v497 = vpack.c.b16 %v414, %v413
  %v498 = vpack.c.b16 %v416, %v415
  %v499 = vpack.c.b16 %v418, %v417
  %v500 = vpack.c.b16 %v420, %v419
  %v501 = vpack.c.b16 %v422, %v421
  %v502 = vpack.c.b16 %v424, %v423
  %v503 = vpack.c.b16 %v426, %v425
  %v504 = vpack.c.b16 %v428, %v427
  %v505 = vpack.c.b16 %v430, %v429
  %v506 = vpack.c.b16 %v432, %v431
  %v507 = vpack.c.b16 %v434, %v433
  %v508 = vpack.c.b16 %v436, %v435
  %v509 = vpack.c.b16 %v438, %v437
  %v510 = vpack.c.b16 %v440, %v439
  %v511 = vpack.c.b16 %v442, %v441
  %v512 = vpack.c.b16 %v444, %v443
  %v513 = vpack.c.b16 %v446, %v445
  %v514 = vpack.c.b16 %v448, %v447
  %v515 = vpack.c.b16 %v450, %v449
  %v516 = vpack.c.b16 %v452, %v451
  %581 = vmatprep.subr.bf16.mxu0 0
  %582 = vmatpush1.bf16.msra.mxu0 %v453
  %583 = vmatprep.subr.bf16.mxu0 0
  %584 = vmatpush1.bf16.msra.mxu0 %v454
  %585 = vmatprep.subr.bf16.mxu0 0
  %586 = vmatpush1.bf16.msra.mxu0 %v455
  %587 = vmatprep.subr.bf16.mxu0 0
  %588 = vmatpush1.bf16.msra.mxu0 %v456
  %589 = vmatprep.subr.bf16.mxu0 0
  %590 = vmatpush1.bf16.msra.mxu0 %v457
  %591 = vmatprep.subr.bf16.mxu0 0
  %592 = vmatpush1.bf16.msra.mxu0 %v458
  %593 = vmatprep.subr.bf16.mxu0 0
  %594 = vmatpush1.bf16.msra.mxu0 %v459
  %595 = vmatprep.subr.bf16.mxu0 0
  %596 = vmatpush1.bf16.msra.mxu0 %v460
  %597 = vmatprep.subr.bf16.mxu0 0
  %598 = vmatpush1.bf16.msra.mxu0 %v461
  %599 = vmatprep.subr.bf16.mxu0 0
  %600 = vmatpush1.bf16.msra.mxu0 %v462
  %601 = vmatprep.subr.bf16.mxu0 0
  %602 = vmatpush1.bf16.msra.mxu0 %v463
  %603 = vmatprep.subr.bf16.mxu0 0
  %604 = vmatpush1.bf16.msra.mxu0 %v464
  %605 = vmatprep.subr.bf16.mxu0 0
  %606 = vmatpush1.bf16.msra.mxu0 %v465
  %607 = vmatprep.subr.bf16.mxu0 0
  %608 = vmatpush1.bf16.msra.mxu0 %v466
  %609 = vmatprep.subr.bf16.mxu0 0
  %610 = vmatpush1.bf16.msra.mxu0 %v467
  %611 = vmatprep.subr.bf16.mxu0 0
  %612 = vmatpush1.bf16.msra.mxu0 %v468
  %613 = vmatprep.mubr.bf16.mxu0 %v182
  %614 = vmatmul.mubr.bf16.gmra.mrb[0].mxu0 %v181
  %v615 = vpop.f32.mrb[0].mxu0
  %v616 = vadd.f32 %v167, %v615
  %v617 = vpop.f32.mrb[0].mxu0
  %v618 = vpop.f32.mrb[0].mxu0
  %v619 = vpop.f32.mrb[0].mxu0
  %620 = vdwg.mxu0
  %621 = vmatprep.subr.bf16.mxu0 0
  %622 = vmatpush1.bf16.msra.mxu0 %v469
  %623 = vmatprep.subr.bf16.mxu0 0
  %624 = vmatpush1.bf16.msra.mxu0 %v470
  %625 = vmatprep.subr.bf16.mxu0 0
  %626 = vmatpush1.bf16.msra.mxu0 %v471
  %627 = vmatprep.subr.bf16.mxu0 0
  %628 = vmatpush1.bf16.msra.mxu0 %v472
  %629 = vmatprep.subr.bf16.mxu0 0
  %630 = vmatpush1.bf16.msra.mxu0 %v473
  %631 = vmatprep.subr.bf16.mxu0 0
  %632 = vmatpush1.bf16.msra.mxu0 %v474
  %633 = vmatprep.subr.bf16.mxu0 0
  %634 = vmatpush1.bf16.msra.mxu0 %v475
  %635 = vmatprep.subr.bf16.mxu0 0
  %636 = vmatpush1.bf16.msra.mxu0 %v476
  %637 = vmatprep.subr.bf16.mxu0 0
  %638 = vmatpush1.bf16.msra.mxu0 %v477
  %639 = vmatprep.subr.bf16.mxu0 0
  %640 = vmatpush1.bf16.msra.mxu0 %v478
  %641 = vmatprep.subr.bf16.mxu0 0
  %642 = vmatpush1.bf16.msra.mxu0 %v479
  %643 = vmatprep.subr.bf16.mxu0 0
  %644 = vmatpush1.bf16.msra.mxu0 %v480
  %645 = vmatprep.subr.bf16.mxu0 0
  %646 = vmatpush1.bf16.msra.mxu0 %v481
  %647 = vmatprep.subr.bf16.mxu0 0
  %648 = vmatpush1.bf16.msra.mxu0 %v482
  %649 = vmatprep.subr.bf16.mxu0 0
  %650 = vmatpush1.bf16.msra.mxu0 %v483
  %651 = vmatprep.subr.bf16.mxu0 0
  %652 = vmatpush1.bf16.msra.mxu0 %v484
  %653 = vmatprep.mubr.bf16.mxu0 %v184
  %654 = vmatmul.mubr.bf16.gmra.mrb[0].mxu0 %v183
  %v655 = vpop.f32.mrb[0].mxu0
  %v656 = vadd.f32 %v616, %v655
  %v657 = vpop.f32.mrb[0].mxu0
  %v658 = vpop.f32.mrb[0].mxu0
  %v659 = vpop.f32.mrb[0].mxu0
  %660 = vdwg.mxu0
  %661 = vmatprep.subr.bf16.mxu0 0
  %662 = vmatpush1.bf16.msra.mxu0 %v485
  %663 = vmatprep.subr.bf16.mxu0 0
  %664 = vmatpush1.bf16.msra.mxu0 %v486
  %665 = vmatprep.subr.bf16.mxu0 0
  %666 = vmatpush1.bf16.msra.mxu0 %v487
  %667 = vmatprep.subr.bf16.mxu0 0
  %668 = vmatpush1.bf16.msra.mxu0 %v488
  %669 = vmatprep.subr.bf16.mxu0 0
  %670 = vmatpush1.bf16.msra.mxu0 %v489
  %671 = vmatprep.subr.bf16.mxu0 0
  %672 = vmatpush1.bf16.msra.mxu0 %v490
  %673 = vmatprep.subr.bf16.mxu0 0
  %674 = vmatpush1.bf16.msra.mxu0 %v491
  %675 = vmatprep.subr.bf16.mxu0 0
  %676 = vmatpush1.bf16.msra.mxu0 %v492
  %677 = vmatprep.subr.bf16.mxu0 0
  %678 = vmatpush1.bf16.msra.mxu0 %v493
  %679 = vmatprep.subr.bf16.mxu0 0
  %680 = vmatpush1.bf16.msra.mxu0 %v494
  %681 = vmatprep.subr.bf16.mxu0 0
  %682 = vmatpush1.bf16.msra.mxu0 %v495
  %683 = vmatprep.subr.bf16.mxu0 0
  %684 = vmatpush1.bf16.msra.mxu0 %v496
  %685 = vmatprep.subr.bf16.mxu0 0
  %686 = vmatpush1.bf16.msra.mxu0 %v497
  %687 = vmatprep.subr.bf16.mxu0 0
  %688 = vmatpush1.bf16.msra.mxu0 %v498
  %689 = vmatprep.subr.bf16.mxu0 0
  %690 = vmatpush1.bf16.msra.mxu0 %v499
  %691 = vmatprep.subr.bf16.mxu0 0
  %692 = vmatpush1.bf16.msra.mxu0 %v500
  %693 = vmatprep.mubr.bf16.mxu0 %v186
  %694 = vmatmul.mubr.bf16.gmra.mrb[0].mxu0 %v185
  %v695 = vpop.f32.mrb[0].mxu0
  %v696 = vadd.f32 %v656, %v695
  %v697 = vpop.f32.mrb[0].mxu0
  %v698 = vpop.f32.mrb[0].mxu0
  %v699 = vpop.f32.mrb[0].mxu0
  %700 = vdwg.mxu0
  %701 = vmatprep.subr.bf16.mxu0 0
  %702 = vmatpush1.bf16.msra.mxu0 %v501
  %703 = vmatprep.subr.bf16.mxu0 0
  %704 = vmatpush1.bf16.msra.mxu0 %v502
  %705 = vmatprep.subr.bf16.mxu0 0
  %706 = vmatpush1.bf16.msra.mxu0 %v503
  %707 = vmatprep.subr.bf16.mxu0 0
  %708 = vmatpush1.bf16.msra.mxu0 %v504
  %709 = vmatprep.subr.bf16.mxu0 0
  %710 = vmatpush1.bf16.msra.mxu0 %v505
  %711 = vmatprep.subr.bf16.mxu0 0
  %712 = vmatpush1.bf16.msra.mxu0 %v506
  %713 = vmatprep.subr.bf16.mxu0 0
  %714 = vmatpush1.bf16.msra.mxu0 %v507
  %715 = vmatprep.subr.bf16.mxu0 0
  %716 = vmatpush1.bf16.msra.mxu0 %v508
  %717 = vmatprep.subr.bf16.mxu0 0
  %718 = vmatpush1.bf16.msra.mxu0 %v509
  %719 = vmatprep.subr.bf16.mxu0 0
  %720 = vmatpush1.bf16.msra.mxu0 %v510
  %721 = vmatprep.subr.bf16.mxu0 0
  %722 = vmatpush1.bf16.msra.mxu0 %v511
  %723 = vmatprep.subr.bf16.mxu0 0
  %724 = vmatpush1.bf16.msra.mxu0 %v512
  %725 = vmatprep.subr.bf16.mxu0 0
  %726 = vmatpush1.bf16.msra.mxu0 %v513
  %727 = vmatprep.subr.bf16.mxu0 0
  %728 = vmatpush1.bf16.msra.mxu0 %v514
  %729 = vmatprep.subr.bf16.mxu0 0
  %730 = vmatpush1.bf16.msra.mxu0 %v515
  %731 = vmatprep.subr.bf16.mxu0 0
  %732 = vmatpush1.bf16.msra.mxu0 %v516
  %733 = vmatprep.mubr.bf16.mxu0 %v188
  %734 = vmatmul.mubr.bf16.gmra.mrb[0].mxu0 %v187
  %v735 = vpop.f32.mrb[0].mxu0
  %v736 = vadd.f32 %v696, %v735
  %v737 = vpop.f32.mrb[0].mxu0
  %v738 = vpop.f32.mrb[0].mxu0
  %v739 = vpop.f32.mrb[0].mxu0
  %740 = vdwg.mxu0
  %v741 = vmax.f32 %v736, 0.0
  %v742 = vpack.c.bf16 %v741, %v741
  %743 = vst [vmem:[%s7] sm:$0xf] %v742
  %v744 = vld [vmem:[%s3] sm:$0xf]
  %v745 = vld [vmem:[%s3 + $0x4] sm:$0xf]
  %v746 = vld [vmem:[%s3 + $0x8] sm:$0xf]
  %v747 = vld [vmem:[%s3 + $0xc] sm:$0xf]
  %v748 = vld [vmem:[%s3 + $0x10] sm:$0xf]
  %v749 = vld [vmem:[%s3 + $0x14] sm:$0xf]
  %v750 = vld [vmem:[%s3 + $0x18] sm:$0xf]
  %v751 = vld [vmem:[%s3 + $0x1c] sm:$0xf]
  %v752 = vld [vmem:[%s3 + $0x20] sm:$0xf]
  %v753 = vld [vmem:[%s3 + $0x24] sm:$0xf]
  %v754 = vld [vmem:[%s3 + $0x28] sm:$0xf]
  %v755 = vld [vmem:[%s3 + $0x2c] sm:$0xf]
  %v756 = vld [vmem:[%s3 + $0x30] sm:$0xf]
  %v757 = vld [vmem:[%s3 + $0x34] sm:$0xf]
  %v758 = vld [vmem:[%s3 + $0x38] sm:$0xf]
  %v759 = vld [vmem:[%s3 + $0x3c] sm:$0xf]
  %v760 = vld [vmem:[%s4] sm:$0x1]
  %v762 = vlaneseq
  %v763 = vshrl.u32 %v762, 7
  %v764 = vsub.s32 0, %v763
  %v765 = vrot.slane %v760, %v764
  %v783 = vunpack.c.l.b16 %v744
  %v784 = vunpack.c.l.b16 %v745
  %v785 = vunpack.c.l.b16 %v746
  %v786 = vunpack.c.l.b16 %v747
  %v787 = vunpack.c.l.b16 %v748
  %v788 = vunpack.c.l.b16 %v749
  %v789 = vunpack.c.l.b16 %v750
  %v790 = vunpack.c.l.b16 %v751
  %v791 = vunpack.c.l.b16 %v752
  %v792 = vunpack.c.l.b16 %v753
  %v793 = vunpack.c.l.b16 %v754
  %v794 = vunpack.c.l.b16 %v755
  %v795 = vunpack.c.l.b16 %v756
  %v796 = vunpack.c.l.b16 %v757
  %v797 = vunpack.c.l.b16 %v758
  %v798 = vunpack.c.l.b16 %v759
  %v799 = vpack.c.b16 %v784, %v783
  %v800 = vpack.c.b16 %v786, %v785
  %v801 = vpack.c.b16 %v788, %v787
  %v802 = vpack.c.b16 %v790, %v789
  %v803 = vpack.c.b16 %v792, %v791
  %v804 = vpack.c.b16 %v794, %v793
  %v805 = vpack.c.b16 %v796, %v795
  %v806 = vpack.c.b16 %v798, %v797
  %815 = vmatprep.subr.bf16.mxu0 0
  %816 = vmatpush1.bf16.msra.mxu0 %v799
  %817 = vmatprep.subr.bf16.mxu0 0
  %818 = vmatpush1.bf16.msra.mxu0 %v800
  %819 = vmatprep.subr.bf16.mxu0 0
  %820 = vmatpush1.bf16.msra.mxu0 %v801
  %821 = vmatprep.subr.bf16.mxu0 0
  %822 = vmatpush1.bf16.msra.mxu0 %v802
  %823 = vmatprep.subr.bf16.mxu0 0
  %824 = vmatpush1.bf16.msra.mxu0 %v803
  %825 = vmatprep.subr.bf16.mxu0 0
  %826 = vmatpush1.bf16.msra.mxu0 %v804
  %827 = vmatprep.subr.bf16.mxu0 0
  %828 = vmatpush1.bf16.msra.mxu0 %v805
  %829 = vmatprep.subr.bf16.mxu0 0
  %830 = vmatpush1.bf16.msra.mxu0 %v806
  %831 = vmatprep.subr.bf16.mxu0 0
  %832 = vmatpush1.bf16.msra.mxu0 0
  %833 = vmatprep.subr.bf16.mxu0 0
  %834 = vmatpush1.bf16.msra.mxu0 0
  %835 = vmatprep.subr.bf16.mxu0 0
  %836 = vmatpush1.bf16.msra.mxu0 0
  %837 = vmatprep.subr.bf16.mxu0 0
  %838 = vmatpush1.bf16.msra.mxu0 0
  %839 = vmatprep.subr.bf16.mxu0 0
  %840 = vmatpush1.bf16.msra.mxu0 0
  %841 = vmatprep.subr.bf16.mxu0 0
  %842 = vmatpush1.bf16.msra.mxu0 0
  %843 = vmatprep.subr.bf16.mxu0 0
  %844 = vmatpush1.bf16.msra.mxu0 0
  %845 = vmatprep.subr.bf16.mxu0 0
  %846 = vmatpush1.bf16.msra.mxu0 0
  %847 = vmatprep.mubr.bf16.mxu0 0
  %848 = vmatmul.mubr.bf16.gmra.mrb[0].mxu0 %v742
  %v849 = vpop.f32.mrb[0].mxu0
  %v850 = vadd.f32 %v765, %v849
  %v851 = vpop.f32.mrb[0].mxu0
  %v852 = vpop.f32.mrb[0].mxu0
  %v853 = vpop.f32.mrb[0].mxu0
  %854 = vdwg.mxu0
  %855 = vst [vmem:[%s8] sm:$0xff] %v850
  %v856 = vpack.c.bf16 %v850, %v850
  %v857 = vld [vmem:[%s5] sm:$0xf]
  %v858 = vld [vmem:[%s5 + $0x4] sm:$0xf]
  %v859 = vld [vmem:[%s5 + $0x8] sm:$0xf]
  %v860 = vld [vmem:[%s5 + $0xc] sm:$0xf]
  %v861 = vld [vmem:[%s5 + $0x10] sm:$0xf]
  %v862 = vld [vmem:[%s5 + $0x14] sm:$0xf]
  %v863 = vld [vmem:[%s5 + $0x18] sm:$0xf]
  %v864 = vld [vmem:[%s5 + $0x1c] sm:$0xf]
  %v865 = vld [vmem:[%s5 + $0x20] sm:$0xf]
  %v866 = vld [vmem:[%s5 + $0x24] sm:$0xf]
  %v867 = vld [vmem:[%s5 + $0x28] sm:$0xf]
  %v868 = vld [vmem:[%s5 + $0x2c] sm:$0xf]
  %v869 = vld [vmem:[%s5 + $0x30] sm:$0xf]
  %v870 = vld [vmem:[%s5 + $0x34] sm:$0xf]
  %v871 = vld [vmem:[%s5 + $0x38] sm:$0xf]
  %v872 = vld [vmem:[%s5 + $0x3c] sm:$0xf]
  %v873 = vld [vmem:[%s6] sm:$0x1]
  %v875 = vlaneseq
  %v876 = vshrl.u32 %v875, 7
  %v877 = vsub.s32 0, %v876
  %v878 = vrot.slane %v873, %v877
  %v896 = vunpack.c.l.b16 %v857
  %v897 = vunpack.c.l.b16 %v858
  %v898 = vunpack.c.l.b16 %v859
  %v899 = vunpack.c.l.b16 %v860
  %v900 = vunpack.c.l.b16 %v861
  %v901 = vunpack.c.l.b16 %v862
  %v902 = vunpack.c.l.b16 %v863
  %v903 = vunpack.c.l.b16 %v864
  %v904 = vunpack.c.l.b16 %v865
  %v905 = vunpack.c.l.b16 %v866
  %v906 = vunpack.c.l.b16 %v867
  %v907 = vunpack.c.l.b16 %v868
  %v908 = vunpack.c.l.b16 %v869
  %v909 = vunpack.c.l.b16 %v870
  %v910 = vunpack.c.l.b16 %v871
  %v911 = vunpack.c.l.b16 %v872
  %v912 = vpack.c.b16 %v897, %v896
  %v913 = vpack.c.b16 %v899, %v898
  %v914 = vpack.c.b16 %v901, %v900
  %v915 = vpack.c.b16 %v903, %v902
  %v916 = vpack.c.b16 %v905, %v904
  %v917 = vpack.c.b16 %v907, %v906
  %v918 = vpack.c.b16 %v909, %v908
  %v919 = vpack.c.b16 %v911, %v910
  %928 = vmatprep.subr.bf16.mxu0 0
  %929 = vmatpush1.bf16.msra.mxu0 %v912
  %930 = vmatprep.subr.bf16.mxu0 0
  %931 = vmatpush1.bf16.msra.mxu0 %v913
  %932 = vmatprep.subr.bf16.mxu0 0
  %933 = vmatpush1.bf16.msra.mxu0 %v914
  %934 = vmatprep.subr.bf16.mxu0 0
  %935 = vmatpush1.bf16.msra.mxu0 %v915
  %936 = vmatprep.subr.bf16.mxu0 0
  %937 = vmatpush1.bf16.msra.mxu0 %v916
  %938 = vmatprep.subr.bf16.mxu0 0
  %939 = vmatpush1.bf16.msra.mxu0 %v917
  %940 = vmatprep.subr.bf16.mxu0 0
  %941 = vmatpush1.bf16.msra.mxu0 %v918
  %942 = vmatprep.subr.bf16.mxu0 0
  %943 = vmatpush1.bf16.msra.mxu0 %v919
  %944 = vmatprep.subr.bf16.mxu0 0
  %945 = vmatpush1.bf16.msra.mxu0 0
  %946 = vmatprep.subr.bf16.mxu0 0
  %947 = vmatpush1.bf16.msra.mxu0 0
  %948 = vmatprep.subr.bf16.mxu0 0
  %949 = vmatpush1.bf16.msra.mxu0 0
  %950 = vmatprep.subr.bf16.mxu0 0
  %951 = vmatpush1.bf16.msra.mxu0 0
  %952 = vmatprep.subr.bf16.mxu0 0
  %953 = vmatpush1.bf16.msra.mxu0 0
  %954 = vmatprep.subr.bf16.mxu0 0
  %955 = vmatpush1.bf16.msra.mxu0 0
  %956 = vmatprep.subr.bf16.mxu0 0
  %957 = vmatpush1.bf16.msra.mxu0 0
  %958 = vmatprep.subr.bf16.mxu0 0
  %959 = vmatpush1.bf16.msra.mxu0 0
  %960 = vmatprep.mubr.bf16.mxu0 0
  %961 = vmatmul.mubr.bf16.gmra.mrb[0].mxu0 %v856
  %v962 = vpop.f32.mrb[0].mxu0
  %v963 = vadd.f32 %v878, %v962
  %v964 = vpop.f32.mrb[0].mxu0
  %v965 = vpop.f32.mrb[0].mxu0
  %v966 = vpop.f32.mrb[0].mxu0
  %967 = vdwg.mxu0
  %968 = vst [vmem:[%s9] sm:$0xff] %v963
  // Predicated region
  $region30: #{jvp__.3} parent=0 // pred_check
    _
  $region31: #{jvp__.3} parent=0 // pred_check_branch
    %970 = sbr.rel (0) target = $region33
  $region32: #{jvp__.3} parent=0 // pred_region
    _
  $region33: #{jvp__.3} parent=0 // pred_fallthru
    _
  // Predicated region
  $region34: #{jvp__.3} parent=0 // pred_check
    _
  $region35: #{jvp__.3} parent=0 // pred_check_branch
    %972 = sbr.rel (0) target = $region37
  $region36: #{jvp__.3} parent=0 // pred_region
    _
  $region37: #{jvp__.3} parent=0 // pred_fallthru
    _
  // Predicated region
  $region38: #{jvp__.3} parent=0 // pred_check
    _
  $region39: #{jvp__.3} parent=0 // pred_check_branch
    %974 = sbr.rel (0) target = $region41
  $region40: #{jvp__.3} parent=0 // pred_region
    _
  $region41: #{jvp__.3} parent=0 // pred_fallthru
    _
  // Predicated region
  $region42: #{jvp__.3} parent=0 // pred_check
    _
  $region43: #{jvp__.3} parent=0 // pred_check_branch
    %976 = sbr.rel (0) target = $region45
  $region44: #{jvp__.3} parent=0 // pred_region
    _
  $region45: #{jvp__.3} parent=0 // pred_fallthru
    _
  // Predicated region
  $region46: #{jvp__.3} parent=0 // pred_check
    _
  $region47: #{jvp__.3} parent=0 // pred_check_branch
    %978 = sbr.rel (0) target = $region49
  $region48: #{jvp__.3} parent=0 // pred_region
    _
  $region49: #{jvp__.3} parent=0 // pred_fallthru
    _
  // Predicated region
  $region50: #{jvp__.3} parent=0 // pred_check
    _
  $region51: #{jvp__.3} parent=0 // pred_check_branch
    %980 = sbr.rel (0) target = $region53
  $region52: #{jvp__.3} parent=0 // pred_region
    _
  $region53: #{jvp__.3} parent=0 // pred_fallthru
    _

// kernel: transport_jac_forward.8
$region0: #{transport_jac_forward.8}
  #allocation0 [shape = 'u32[]', space=smem, size = 0x4, offset = 0x4, fixed_abs, tag = 'smem constant byte address 0x4 - core index']
  #allocation1 [shape = 'u32[144,128]{1,0:T(1,128)}', space=vmem, size = 0x12000, scoped, tag = 'internal scratch']
  %s0 = inlined_call_operand.vmem [shape: bf16[8,1024], index: 0, kind: input, shape index: {}]
  %s1 = inlined_call_operand.vmem [shape: bf16[1024,128], index: 1, kind: input, shape index: {}]
  %s2 = inlined_call_operand.vmem [shape: f32[1,128], index: 2, kind: input, shape index: {}]
  %s3 = inlined_call_operand.vmem [shape: bf16[128,128], index: 3, kind: input, shape index: {}]
  %s4 = inlined_call_operand.vmem [shape: f32[1,128], index: 4, kind: input, shape index: {}]
  %s5 = inlined_call_operand.vmem [shape: bf16[128,128], index: 5, kind: input, shape index: {}]
  %s6 = inlined_call_operand.vmem [shape: f32[1,128], index: 6, kind: input, shape index: {}]
  %s7 = inlined_call_operand.vmem [shape: bf16[8,128], index: 7, kind: output, shape index: {0}]
  %s8 = inlined_call_operand.vmem [shape: f32[8,128], index: 8, kind: output, shape index: {1}]
  %s9 = inlined_call_operand.hbm [shape: f32[8,128], index: 9, kind: output, shape index: {2}]
  %10 = xla_tuple %s7, %s8, %s9
  %s11 = sld [smem:[#allocation0]]
  $region54: #{transport_jac_forward.8} parent=0
    _
  %s13 = ssub.s32 1, %s11
  %s14 = scalar_select 0, %s13, %s11
  $region1: #{transport_jac_forward.8} parent=0
    #allocation2 [shape = 'u8[4096]{0}', space=vmem, size = 0x1000, scoped, tag = 'output window, operand 2, single buffered']
    #allocation3 [shape = 's32[1]{0}', space=sflag, size = 0x4, scoped, tag = 'scoped memory for transport_jac_forward.8']
    %15 = vsyncpa [#allocation3], 0
    // Predicated region
    $region2: #{transport_jac_forward.8} parent=1 // pred_check
      _
    $region3: #{transport_jac_forward.8} parent=1 // pred_check_branch
      %17 = sbr.rel (0) target = $region5
    $region4: #{transport_jac_forward.8} parent=1 // pred_region
      _
    $region5: #{transport_jac_forward.8} parent=1 // pred_fallthru
      _
    // Predicated region
    $region6: #{transport_jac_forward.8} parent=1 // pred_check
      _
    $region7: #{transport_jac_forward.8} parent=1 // pred_check_branch
      %19 = sbr.rel (0) target = $region9
    $region8: #{transport_jac_forward.8} parent=1 // pred_region
      _
    $region9: #{transport_jac_forward.8} parent=1 // pred_fallthru
      _
    // Predicated region
    $region10: #{transport_jac_forward.8} parent=1 // pred_check
      _
    $region11: #{transport_jac_forward.8} parent=1 // pred_check_branch
      %21 = sbr.rel (0) target = $region13
    $region12: #{transport_jac_forward.8} parent=1 // pred_region
      _
    $region13: #{transport_jac_forward.8} parent=1 // pred_fallthru
      _
    // Predicated region
    $region14: #{transport_jac_forward.8} parent=1 // pred_check
      _
    $region15: #{transport_jac_forward.8} parent=1 // pred_check_branch
      %23 = sbr.rel (0) target = $region17
    $region16: #{transport_jac_forward.8} parent=1 // pred_region
      _
    $region17: #{transport_jac_forward.8} parent=1 // pred_fallthru
      _
    // Predicated region
    $region18: #{transport_jac_forward.8} parent=1 // pred_check
      _
    $region19: #{transport_jac_forward.8} parent=1 // pred_check_branch
      %25 = sbr.rel (0) target = $region21
    $region20: #{transport_jac_forward.8} parent=1 // pred_region
      _
    $region21: #{transport_jac_forward.8} parent=1 // pred_fallthru
      _
    // Predicated region
    $region22: #{transport_jac_forward.8} parent=1 // pred_check
      _
    $region23: #{transport_jac_forward.8} parent=1 // pred_check_branch
      %27 = sbr.rel (0) target = $region25
    $region24: #{transport_jac_forward.8} parent=1 // pred_region
      _
    $region25: #{transport_jac_forward.8} parent=1 // pred_fallthru
      _
    // Predicated region
    $region26: #{transport_jac_forward.8} parent=1 // pred_check
      _
    $region27: #{transport_jac_forward.8} parent=1 // pred_check_branch
      %29 = sbr.rel (0) target = $region29
    $region28: #{transport_jac_forward.8} parent=1 // pred_region
      _
    $region29: #{transport_jac_forward.8} parent=1 // pred_fallthru
      _
    %v31 = vld [vmem:[%s0] sm:$0xff]
    %v32 = vld [vmem:[%s0 + $0x8] sm:$0xff]
    %v33 = vld [vmem:[%s0 + $0x10] sm:$0xff]
    %v34 = vld [vmem:[%s0 + $0x18] sm:$0xff]
    %v35 = vld [vmem:[%s1] sm:$0xf]
    %v36 = vld [vmem:[%s1 + $0x4] sm:$0xf]
    %v37 = vld [vmem:[%s1 + $0x8] sm:$0xf]
    %v38 = vld [vmem:[%s1 + $0xc] sm:$0xf]
    %v39 = vld [vmem:[%s1 + $0x10] sm:$0xf]
    %v40 = vld [vmem:[%s1 + $0x14] sm:$0xf]
    %v41 = vld [vmem:[%s1 + $0x18] sm:$0xf]
    %v42 = vld [vmem:[%s1 + $0x1c] sm:$0xf]
    %v43 = vld [vmem:[%s1 + $0x20] sm:$0xf]
    %v44 = vld [vmem:[%s1 + $0x24] sm:$0xf]
    %v45 = vld [vmem:[%s1 + $0x28] sm:$0xf]
    %v46 = vld [vmem:[%s1 + $0x2c] sm:$0xf]
    %v47 = vld [vmem:[%s1 + $0x30] sm:$0xf]
    %v48 = vld [vmem:[%s1 + $0x34] sm:$0xf]
    %v49 = vld [vmem:[%s1 + $0x38] sm:$0xf]
    %v50 = vld [vmem:[%s1 + $0x3c] sm:$0xf]
    %v51 = vld [vmem:[%s1 + $0x40] sm:$0xf]
    %v52 = vld [vmem:[%s1 + $0x44] sm:$0xf]
    %v53 = vld [vmem:[%s1 + $0x48] sm:$0xf]
    %v54 = vld [vmem:[%s1 + $0x4c] sm:$0xf]
    %v55 = vld [vmem:[%s1 + $0x50] sm:$0xf]
    %v56 = vld [vmem:[%s1 + $0x54] sm:$0xf]
    %v57 = vld [vmem:[%s1 + $0x58] sm:$0xf]
    %v58 = vld [vmem:[%s1 + $0x5c] sm:$0xf]
    %v59 = vld [vmem:[%s1 + $0x60] sm:$0xf]
    %v60 = vld [vmem:[%s1 + $0x64] sm:$0xf]
    %v61 = vld [vmem:[%s1 + $0x68] sm:$0xf]
    %v62 = vld [vmem:[%s1 + $0x6c] sm:$0xf]
    %v63 = vld [vmem:[%s1 + $0x70] sm:$0xf]
    %v64 = vld [vmem:[%s1 + $0x74] sm:$0xf]
    %v65 = vld [vmem:[%s1 + $0x78] sm:$0xf]
    %v66 = vld [vmem:[%s1 + $0x7c] sm:$0xf]
    %v67 = vld [vmem:[%s1 + $0x80] sm:$0xf]
    %v68 = vld [vmem:[%s1 + $0x84] sm:$0xf]
    %v69 = vld [vmem:[%s1 + $0x88] sm:$0xf]
    %v70 = vld [vmem:[%s1 + $0x8c] sm:$0xf]
    %v71 = vld [vmem:[%s1 + $0x90] sm:$0xf]
    %v72 = vld [vmem:[%s1 + $0x94] sm:$0xf]
    %v73 = vld [vmem:[%s1 + $0x98] sm:$0xf]
    %v74 = vld [vmem:[%s1 + $0x9c] sm:$0xf]
    %v75 = vld [vmem:[%s1 + $0xa0] sm:$0xf]
    %v76 = vld [vmem:[%s1 + $0xa4] sm:$0xf]
    %v77 = vld [vmem:[%s1 + $0xa8] sm:$0xf]
    %v78 = vld [vmem:[%s1 + $0xac] sm:$0xf]
    %v79 = vld [vmem:[%s1 + $0xb0] sm:$0xf]
    %v80 = vld [vmem:[%s1 + $0xb4] sm:$0xf]
    %v81 = vld [vmem:[%s1 + $0xb8] sm:$0xf]
    %v82 = vld [vmem:[%s1 + $0xbc] sm:$0xf]
    %v83 = vld [vmem:[%s1 + $0xc0] sm:$0xf]
    %v84 = vld [vmem:[%s1 + $0xc4] sm:$0xf]
    %v85 = vld [vmem:[%s1 + $0xc8] sm:$0xf]
    %v86 = vld [vmem:[%s1 + $0xcc] sm:$0xf]
    %v87 = vld [vmem:[%s1 + $0xd0] sm:$0xf]
    %v88 = vld [vmem:[%s1 + $0xd4] sm:$0xf]
    %v89 = vld [vmem:[%s1 + $0xd8] sm:$0xf]
    %v90 = vld [vmem:[%s1 + $0xdc] sm:$0xf]
    %v91 = vld [vmem:[%s1 + $0xe0] sm:$0xf]
    %v92 = vld [vmem:[%s1 + $0xe4] sm:$0xf]
    %v93 = vld [vmem:[%s1 + $0xe8] sm:$0xf]
    %v94 = vld [vmem:[%s1 + $0xec] sm:$0xf]
    %v95 = vld [vmem:[%s1 + $0xf0] sm:$0xf]
    %v96 = vld [vmem:[%s1 + $0xf4] sm:$0xf]
    %v97 = vld [vmem:[%s1 + $0xf8] sm:$0xf]
    %v98 = vld [vmem:[%s1 + $0xfc] sm:$0xf]
    %v99 = vld [vmem:[%s1 + $0x100] sm:$0xf]
    %v100 = vld [vmem:[%s1 + $0x104] sm:$0xf]
    %v101 = vld [vmem:[%s1 + $0x108] sm:$0xf]
    %v102 = vld [vmem:[%s1 + $0x10c] sm:$0xf]
    %v103 = vld [vmem:[%s1 + $0x110] sm:$0xf]
    %v104 = vld [vmem:[%s1 + $0x114] sm:$0xf]
    %v105 = vld [vmem:[%s1 + $0x118] sm:$0xf]
    %v106 = vld [vmem:[%s1 + $0x11c] sm:$0xf]
    %v107 = vld [vmem:[%s1 + $0x120] sm:$0xf]
    %v108 = vld [vmem:[%s1 + $0x124] sm:$0xf]
    %v109 = vld [vmem:[%s1 + $0x128] sm:$0xf]
    %v110 = vld [vmem:[%s1 + $0x12c] sm:$0xf]
    %v111 = vld [vmem:[%s1 + $0x130] sm:$0xf]
    %v112 = vld [vmem:[%s1 + $0x134] sm:$0xf]
    %v113 = vld [vmem:[%s1 + $0x138] sm:$0xf]
    %v114 = vld [vmem:[%s1 + $0x13c] sm:$0xf]
    %v115 = vld [vmem:[%s1 + $0x140] sm:$0xf]
    %v116 = vld [vmem:[%s1 + $0x144] sm:$0xf]
    %v117 = vld [vmem:[%s1 + $0x148] sm:$0xf]
    %v118 = vld [vmem:[%s1 + $0x14c] sm:$0xf]
    %v119 = vld [vmem:[%s1 + $0x150] sm:$0xf]
    %v120 = vld [vmem:[%s1 + $0x154] sm:$0xf]
    %v121 = vld [vmem:[%s1 + $0x158] sm:$0xf]
    %v122 = vld [vmem:[%s1 + $0x15c] sm:$0xf]
    %v123 = vld [vmem:[%s1 + $0x160] sm:$0xf]
    %v124 = vld [vmem:[%s1 + $0x164] sm:$0xf]
    %v125 = vld [vmem:[%s1 + $0x168] sm:$0xf]
    %v126 = vld [vmem:[%s1 + $0x16c] sm:$0xf]
    %v127 = vld [vmem:[%s1 + $0x170] sm:$0xf]
    %v128 = vld [vmem:[%s1 + $0x174] sm:$0xf]
    %v129 = vld [vmem:[%s1 + $0x178] sm:$0xf]
    %v130 = vld [vmem:[%s1 + $0x17c] sm:$0xf]
    %v131 = vld [vmem:[%s1 + $0x180] sm:$0xf]
    %v132 = vld [vmem:[%s1 + $0x184] sm:$0xf]
    %v133 = vld [vmem:[%s1 + $0x188] sm:$0xf]
    %v134 = vld [vmem:[%s1 + $0x18c] sm:$0xf]
    %v135 = vld [vmem:[%s1 + $0x190] sm:$0xf]
    %v136 = vld [vmem:[%s1 + $0x194] sm:$0xf]
    %v137 = vld [vmem:[%s1 + $0x198] sm:$0xf]
    %v138 = vld [vmem:[%s1 + $0x19c] sm:$0xf]
    %v139 = vld [vmem:[%s1 + $0x1a0] sm:$0xf]
    %v140 = vld [vmem:[%s1 + $0x1a4] sm:$0xf]
    %v141 = vld [vmem:[%s1 + $0x1a8] sm:$0xf]
    %v142 = vld [vmem:[%s1 + $0x1ac] sm:$0xf]
    %v143 = vld [vmem:[%s1 + $0x1b0] sm:$0xf]
    %v144 = vld [vmem:[%s1 + $0x1b4] sm:$0xf]
    %v145 = vld [vmem:[%s1 + $0x1b8] sm:$0xf]
    %v146 = vld [vmem:[%s1 + $0x1bc] sm:$0xf]
    %v147 = vld [vmem:[%s1 + $0x1c0] sm:$0xf]
    %v148 = vld [vmem:[%s1 + $0x1c4] sm:$0xf]
    %v149 = vld [vmem:[%s1 + $0x1c8] sm:$0xf]
    %v150 = vld [vmem:[%s1 + $0x1cc] sm:$0xf]
    %v151 = vld [vmem:[%s1 + $0x1d0] sm:$0xf]
    %v152 = vld [vmem:[%s1 + $0x1d4] sm:$0xf]
    %v153 = vld [vmem:[%s1 + $0x1d8] sm:$0xf]
    %v154 = vld [vmem:[%s1 + $0x1dc] sm:$0xf]
    %v155 = vld [vmem:[%s1 + $0x1e0] sm:$0xf]
    %v156 = vld [vmem:[%s1 + $0x1e4] sm:$0xf]
    %v157 = vld [vmem:[%s1 + $0x1e8] sm:$0xf]
    %v158 = vld [vmem:[%s1 + $0x1ec] sm:$0xf]
    %v159 = vld [vmem:[%s1 + $0x1f0] sm:$0xf]
    %v160 = vld [vmem:[%s1 + $0x1f4] sm:$0xf]
    %v161 = vld [vmem:[%s1 + $0x1f8] sm:$0xf]
    %v162 = vld [vmem:[%s1 + $0x1fc] sm:$0xf]
    %v163 = vld [vmem:[%s2] sm:$0x1]
    %v165 = vlaneseq
    %v166 = vshrl.u32 %v165, 7
    %v167 = vsub.s32 0, %v166
    %v168 = vrot.slane %v163, %v167
    %v174 = vunpack.c.l.b16 %v31
    %v175 = vunpack.c.h.b16 %v31
    %v176 = vunpack.c.l.b16 %v32
    %v177 = vunpack.c.h.b16 %v32
    %v178 = vunpack.c.l.b16 %v33
    %v179 = vunpack.c.h.b16 %v33
    %v180 = vunpack.c.l.b16 %v34
    %v181 = vunpack.c.h.b16 %v34
    %v182 = vpack.c.b16 %v174, %v174
    %v183 = vpack.c.b16 %v175, %v175
    %v184 = vpack.c.b16 %v176, %v176
    %v185 = vpack.c.b16 %v177, %v177
    %v186 = vpack.c.b16 %v178, %v178
    %v187 = vpack.c.b16 %v179, %v179
    %v188 = vpack.c.b16 %v180, %v180
    %v189 = vpack.c.b16 %v181, %v181
    %v326 = vunpack.c.l.b16 %v35
    %v327 = vunpack.c.l.b16 %v36
    %v328 = vunpack.c.l.b16 %v37
    %v329 = vunpack.c.l.b16 %v38
    %v330 = vunpack.c.l.b16 %v39
    %v331 = vunpack.c.l.b16 %v40
    %v332 = vunpack.c.l.b16 %v41
    %v333 = vunpack.c.l.b16 %v42
    %v334 = vunpack.c.l.b16 %v43
    %v335 = vunpack.c.l.b16 %v44
    %v336 = vunpack.c.l.b16 %v45
    %v337 = vunpack.c.l.b16 %v46
    %v338 = vunpack.c.l.b16 %v47
    %v339 = vunpack.c.l.b16 %v48
    %v340 = vunpack.c.l.b16 %v49
    %v341 = vunpack.c.l.b16 %v50
    %v342 = vunpack.c.l.b16 %v51
    %v343 = vunpack.c.l.b16 %v52
    %v344 = vunpack.c.l.b16 %v53
    %v345 = vunpack.c.l.b16 %v54
    %v346 = vunpack.c.l.b16 %v55
    %v347 = vunpack.c.l.b16 %v56
    %v348 = vunpack.c.l.b16 %v57
    %v349 = vunpack.c.l.b16 %v58
    %v350 = vunpack.c.l.b16 %v59
    %v351 = vunpack.c.l.b16 %v60
    %v352 = vunpack.c.l.b16 %v61
    %v353 = vunpack.c.l.b16 %v62
    %v354 = vunpack.c.l.b16 %v63
    %v355 = vunpack.c.l.b16 %v64
    %v356 = vunpack.c.l.b16 %v65
    %v357 = vunpack.c.l.b16 %v66
    %v358 = vunpack.c.l.b16 %v67
    %v359 = vunpack.c.l.b16 %v68
    %v360 = vunpack.c.l.b16 %v69
    %v361 = vunpack.c.l.b16 %v70
    %v362 = vunpack.c.l.b16 %v71
    %v363 = vunpack.c.l.b16 %v72
    %v364 = vunpack.c.l.b16 %v73
    %v365 = vunpack.c.l.b16 %v74
    %v366 = vunpack.c.l.b16 %v75
    %v367 = vunpack.c.l.b16 %v76
    %v368 = vunpack.c.l.b16 %v77
    %v369 = vunpack.c.l.b16 %v78
    %v370 = vunpack.c.l.b16 %v79
    %v371 = vunpack.c.l.b16 %v80
    %v372 = vunpack.c.l.b16 %v81
    %v373 = vunpack.c.l.b16 %v82
    %v374 = vunpack.c.l.b16 %v83
    %v375 = vunpack.c.l.b16 %v84
    %v376 = vunpack.c.l.b16 %v85
    %v377 = vunpack.c.l.b16 %v86
    %v378 = vunpack.c.l.b16 %v87
    %v379 = vunpack.c.l.b16 %v88
    %v380 = vunpack.c.l.b16 %v89
    %v381 = vunpack.c.l.b16 %v90
    %v382 = vunpack.c.l.b16 %v91
    %v383 = vunpack.c.l.b16 %v92
    %v384 = vunpack.c.l.b16 %v93
    %v385 = vunpack.c.l.b16 %v94
    %v386 = vunpack.c.l.b16 %v95
    %v387 = vunpack.c.l.b16 %v96
    %v388 = vunpack.c.l.b16 %v97
    %v389 = vunpack.c.l.b16 %v98
    %v390 = vunpack.c.l.b16 %v99
    %v391 = vunpack.c.l.b16 %v100
    %v392 = vunpack.c.l.b16 %v101
    %v393 = vunpack.c.l.b16 %v102
    %v394 = vunpack.c.l.b16 %v103
    %v395 = vunpack.c.l.b16 %v104
    %v396 = vunpack.c.l.b16 %v105
    %v397 = vunpack.c.l.b16 %v106
    %v398 = vunpack.c.l.b16 %v107
    %v399 = vunpack.c.l.b16 %v108
    %v400 = vunpack.c.l.b16 %v109
    %v401 = vunpack.c.l.b16 %v110
    %v402 = vunpack.c.l.b16 %v111
    %v403 = vunpack.c.l.b16 %v112
    %v404 = vunpack.c.l.b16 %v113
    %v405 = vunpack.c.l.b16 %v114
    %v406 = vunpack.c.l.b16 %v115
    %v407 = vunpack.c.l.b16 %v116
    %v408 = vunpack.c.l.b16 %v117
    %v409 = vunpack.c.l.b16 %v118
    %v410 = vunpack.c.l.b16 %v119
    %v411 = vunpack.c.l.b16 %v120
    %v412 = vunpack.c.l.b16 %v121
    %v413 = vunpack.c.l.b16 %v122
    %v414 = vunpack.c.l.b16 %v123
    %v415 = vunpack.c.l.b16 %v124
    %v416 = vunpack.c.l.b16 %v125
    %v417 = vunpack.c.l.b16 %v126
    %v418 = vunpack.c.l.b16 %v127
    %v419 = vunpack.c.l.b16 %v128
    %v420 = vunpack.c.l.b16 %v129
    %v421 = vunpack.c.l.b16 %v130
    %v422 = vunpack.c.l.b16 %v131
    %v423 = vunpack.c.l.b16 %v132
    %v424 = vunpack.c.l.b16 %v133
    %v425 = vunpack.c.l.b16 %v134
    %v426 = vunpack.c.l.b16 %v135
    %v427 = vunpack.c.l.b16 %v136
    %v428 = vunpack.c.l.b16 %v137
    %v429 = vunpack.c.l.b16 %v138
    %v430 = vunpack.c.l.b16 %v139
    %v431 = vunpack.c.l.b16 %v140
    %v432 = vunpack.c.l.b16 %v141
    %v433 = vunpack.c.l.b16 %v142
    %v434 = vunpack.c.l.b16 %v143
    %v435 = vunpack.c.l.b16 %v144
    %v436 = vunpack.c.l.b16 %v145
    %v437 = vunpack.c.l.b16 %v146
    %v438 = vunpack.c.l.b16 %v147
    %v439 = vunpack.c.l.b16 %v148
    %v440 = vunpack.c.l.b16 %v149
    %v441 = vunpack.c.l.b16 %v150
    %v442 = vunpack.c.l.b16 %v151
    %v443 = vunpack.c.l.b16 %v152
    %v444 = vunpack.c.l.b16 %v153
    %v445 = vunpack.c.l.b16 %v154
    %v446 = vunpack.c.l.b16 %v155
    %v447 = vunpack.c.l.b16 %v156
    %v448 = vunpack.c.l.b16 %v157
    %v449 = vunpack.c.l.b16 %v158
    %v450 = vunpack.c.l.b16 %v159
    %v451 = vunpack.c.l.b16 %v160
    %v452 = vunpack.c.l.b16 %v161
    %v453 = vunpack.c.l.b16 %v162
    %v454 = vpack.c.b16 %v327, %v326
    %v455 = vpack.c.b16 %v329, %v328
    %v456 = vpack.c.b16 %v331, %v330
    %v457 = vpack.c.b16 %v333, %v332
    %v458 = vpack.c.b16 %v335, %v334
    %v459 = vpack.c.b16 %v337, %v336
    %v460 = vpack.c.b16 %v339, %v338
    %v461 = vpack.c.b16 %v341, %v340
    %v462 = vpack.c.b16 %v343, %v342
    %v463 = vpack.c.b16 %v345, %v344
    %v464 = vpack.c.b16 %v347, %v346
    %v465 = vpack.c.b16 %v349, %v348
    %v466 = vpack.c.b16 %v351, %v350
    %v467 = vpack.c.b16 %v353, %v352
    %v468 = vpack.c.b16 %v355, %v354
    %v469 = vpack.c.b16 %v357, %v356
    %v470 = vpack.c.b16 %v359, %v358
    %v471 = vpack.c.b16 %v361, %v360
    %v472 = vpack.c.b16 %v363, %v362
    %v473 = vpack.c.b16 %v365, %v364
    %v474 = vpack.c.b16 %v367, %v366
    %v475 = vpack.c.b16 %v369, %v368
    %v476 = vpack.c.b16 %v371, %v370
    %v477 = vpack.c.b16 %v373, %v372
    %v478 = vpack.c.b16 %v375, %v374
    %v479 = vpack.c.b16 %v377, %v376
    %v480 = vpack.c.b16 %v379, %v378
    %v481 = vpack.c.b16 %v381, %v380
    %v482 = vpack.c.b16 %v383, %v382
    %v483 = vpack.c.b16 %v385, %v384
    %v484 = vpack.c.b16 %v387, %v386
    %v485 = vpack.c.b16 %v389, %v388
    %v486 = vpack.c.b16 %v391, %v390
    %v487 = vpack.c.b16 %v393, %v392
    %v488 = vpack.c.b16 %v395, %v394
    %v489 = vpack.c.b16 %v397, %v396
    %v490 = vpack.c.b16 %v399, %v398
    %v491 = vpack.c.b16 %v401, %v400
    %v492 = vpack.c.b16 %v403, %v402
    %v493 = vpack.c.b16 %v405, %v404
    %v494 = vpack.c.b16 %v407, %v406
    %v495 = vpack.c.b16 %v409, %v408
    %v496 = vpack.c.b16 %v411, %v410
    %v497 = vpack.c.b16 %v413, %v412
    %v498 = vpack.c.b16 %v415, %v414
    %v499 = vpack.c.b16 %v417, %v416
    %v500 = vpack.c.b16 %v419, %v418
    %v501 = vpack.c.b16 %v421, %v420
    %v502 = vpack.c.b16 %v423, %v422
    %v503 = vpack.c.b16 %v425, %v424
    %v504 = vpack.c.b16 %v427, %v426
    %v505 = vpack.c.b16 %v429, %v428
    %v506 = vpack.c.b16 %v431, %v430
    %v507 = vpack.c.b16 %v433, %v432
    %v508 = vpack.c.b16 %v435, %v434
    %v509 = vpack.c.b16 %v437, %v436
    %v510 = vpack.c.b16 %v439, %v438
    %v511 = vpack.c.b16 %v441, %v440
    %v512 = vpack.c.b16 %v443, %v442
    %v513 = vpack.c.b16 %v445, %v444
    %v514 = vpack.c.b16 %v447, %v446
    %v515 = vpack.c.b16 %v449, %v448
    %v516 = vpack.c.b16 %v451, %v450
    %v517 = vpack.c.b16 %v453, %v452
    %582 = vmatprep.subr.bf16.mxu0 0
    %583 = vmatpush1.bf16.msra.mxu0 %v454
    %584 = vmatprep.subr.bf16.mxu0 0
    %585 = vmatpush1.bf16.msra.mxu0 %v455
    %586 = vmatprep.subr.bf16.mxu0 0
    %587 = vmatpush1.bf16.msra.mxu0 %v456
    %588 = vmatprep.subr.bf16.mxu0 0
    %589 = vmatpush1.bf16.msra.mxu0 %v457
    %590 = vmatprep.subr.bf16.mxu0 0
    %591 = vmatpush1.bf16.msra.mxu0 %v458
    %592 = vmatprep.subr.bf16.mxu0 0
    %593 = vmatpush1.bf16.msra.mxu0 %v459
    %594 = vmatprep.subr.bf16.mxu0 0
    %595 = vmatpush1.bf16.msra.mxu0 %v460
    %596 = vmatprep.subr.bf16.mxu0 0
    %597 = vmatpush1.bf16.msra.mxu0 %v461
    %598 = vmatprep.subr.bf16.mxu0 0
    %599 = vmatpush1.bf16.msra.mxu0 %v462
    %600 = vmatprep.subr.bf16.mxu0 0
    %601 = vmatpush1.bf16.msra.mxu0 %v463
    %602 = vmatprep.subr.bf16.mxu0 0
    %603 = vmatpush1.bf16.msra.mxu0 %v464
    %604 = vmatprep.subr.bf16.mxu0 0
    %605 = vmatpush1.bf16.msra.mxu0 %v465
    %606 = vmatprep.subr.bf16.mxu0 0
    %607 = vmatpush1.bf16.msra.mxu0 %v466
    %608 = vmatprep.subr.bf16.mxu0 0
    %609 = vmatpush1.bf16.msra.mxu0 %v467
    %610 = vmatprep.subr.bf16.mxu0 0
    %611 = vmatpush1.bf16.msra.mxu0 %v468
    %612 = vmatprep.subr.bf16.mxu0 0
    %613 = vmatpush1.bf16.msra.mxu0 %v469
    %614 = vmatprep.mubr.bf16.mxu0 %v183
    %615 = vmatmul.mubr.bf16.gmra.mrb[0].mxu0 %v182
    %v616 = vpop.f32.mrb[0].mxu0
    %v617 = vadd.f32 %v168, %v616
    %v618 = vpop.f32.mrb[0].mxu0
    %v619 = vpop.f32.mrb[0].mxu0
    %v620 = vpop.f32.mrb[0].mxu0
    %621 = vdwg.mxu0
    %622 = vmatprep.subr.bf16.mxu0 0
    %623 = vmatpush1.bf16.msra.mxu0 %v470
    %624 = vmatprep.subr.bf16.mxu0 0
    %625 = vmatpush1.bf16.msra.mxu0 %v471
    %626 = vmatprep.subr.bf16.mxu0 0
    %627 = vmatpush1.bf16.msra.mxu0 %v472
    %628 = vmatprep.subr.bf16.mxu0 0
    %629 = vmatpush1.bf16.msra.mxu0 %v473
    %630 = vmatprep.subr.bf16.mxu0 0
    %631 = vmatpush1.bf16.msra.mxu0 %v474
    %632 = vmatprep.subr.bf16.mxu0 0
    %633 = vmatpush1.bf16.msra.mxu0 %v475
    %634 = vmatprep.subr.bf16.mxu0 0
    %635 = vmatpush1.bf16.msra.mxu0 %v476
    %636 = vmatprep.subr.bf16.mxu0 0
    %637 = vmatpush1.bf16.msra.mxu0 %v477
    %638 = vmatprep.subr.bf16.mxu0 0
    %639 = vmatpush1.bf16.msra.mxu0 %v478
    %640 = vmatprep.subr.bf16.mxu0 0
    %641 = vmatpush1.bf16.msra.mxu0 %v479
    %642 = vmatprep.subr.bf16.mxu0 0
    %643 = vmatpush1.bf16.msra.mxu0 %v480
    %644 = vmatprep.subr.bf16.mxu0 0
    %645 = vmatpush1.bf16.msra.mxu0 %v481
    %646 = vmatprep.subr.bf16.mxu0 0
    %647 = vmatpush1.bf16.msra.mxu0 %v482
    %648 = vmatprep.subr.bf16.mxu0 0
    %649 = vmatpush1.bf16.msra.mxu0 %v483
    %650 = vmatprep.subr.bf16.mxu0 0
    %651 = vmatpush1.bf16.msra.mxu0 %v484
    %652 = vmatprep.subr.bf16.mxu0 0
    %653 = vmatpush1.bf16.msra.mxu0 %v485
    %654 = vmatprep.mubr.bf16.mxu0 %v185
    %655 = vmatmul.mubr.bf16.gmra.mrb[0].mxu0 %v184
    %v656 = vpop.f32.mrb[0].mxu0
    %v657 = vadd.f32 %v617, %v656
    %v658 = vpop.f32.mrb[0].mxu0
    %v659 = vpop.f32.mrb[0].mxu0
    %v660 = vpop.f32.mrb[0].mxu0
    %661 = vdwg.mxu0
    %662 = vmatprep.subr.bf16.mxu0 0
    %663 = vmatpush1.bf16.msra.mxu0 %v486
    %664 = vmatprep.subr.bf16.mxu0 0
    %665 = vmatpush1.bf16.msra.mxu0 %v487
    %666 = vmatprep.subr.bf16.mxu0 0
    %667 = vmatpush1.bf16.msra.mxu0 %v488
    %668 = vmatprep.subr.bf16.mxu0 0
    %669 = vmatpush1.bf16.msra.mxu0 %v489
    %670 = vmatprep.subr.bf16.mxu0 0
    %671 = vmatpush1.bf16.msra.mxu0 %v490
    %672 = vmatprep.subr.bf16.mxu0 0
    %673 = vmatpush1.bf16.msra.mxu0 %v491
    %674 = vmatprep.subr.bf16.mxu0 0
    %675 = vmatpush1.bf16.msra.mxu0 %v492
    %676 = vmatprep.subr.bf16.mxu0 0
    %677 = vmatpush1.bf16.msra.mxu0 %v493
    %678 = vmatprep.subr.bf16.mxu0 0
    %679 = vmatpush1.bf16.msra.mxu0 %v494
    %680 = vmatprep.subr.bf16.mxu0 0
    %681 = vmatpush1.bf16.msra.mxu0 %v495
    %682 = vmatprep.subr.bf16.mxu0 0
    %683 = vmatpush1.bf16.msra.mxu0 %v496
    %684 = vmatprep.subr.bf16.mxu0 0
    %685 = vmatpush1.bf16.msra.mxu0 %v497
    %686 = vmatprep.subr.bf16.mxu0 0
    %687 = vmatpush1.bf16.msra.mxu0 %v498
    %688 = vmatprep.subr.bf16.mxu0 0
    %689 = vmatpush1.bf16.msra.mxu0 %v499
    %690 = vmatprep.subr.bf16.mxu0 0
    %691 = vmatpush1.bf16.msra.mxu0 %v500
    %692 = vmatprep.subr.bf16.mxu0 0
    %693 = vmatpush1.bf16.msra.mxu0 %v501
    %694 = vmatprep.mubr.bf16.mxu0 %v187
    %695 = vmatmul.mubr.bf16.gmra.mrb[0].mxu0 %v186
    %v696 = vpop.f32.mrb[0].mxu0
    %v697 = vadd.f32 %v657, %v696
    %v698 = vpop.f32.mrb[0].mxu0
    %v699 = vpop.f32.mrb[0].mxu0
    %v700 = vpop.f32.mrb[0].mxu0
    %701 = vdwg.mxu0
    %702 = vmatprep.subr.bf16.mxu0 0
    %703 = vmatpush1.bf16.msra.mxu0 %v502
    %704 = vmatprep.subr.bf16.mxu0 0
    %705 = vmatpush1.bf16.msra.mxu0 %v503
    %706 = vmatprep.subr.bf16.mxu0 0
    %707 = vmatpush1.bf16.msra.mxu0 %v504
    %708 = vmatprep.subr.bf16.mxu0 0
    %709 = vmatpush1.bf16.msra.mxu0 %v505
    %710 = vmatprep.subr.bf16.mxu0 0
    %711 = vmatpush1.bf16.msra.mxu0 %v506
    %712 = vmatprep.subr.bf16.mxu0 0
    %713 = vmatpush1.bf16.msra.mxu0 %v507
    %714 = vmatprep.subr.bf16.mxu0 0
    %715 = vmatpush1.bf16.msra.mxu0 %v508
    %716 = vmatprep.subr.bf16.mxu0 0
    %717 = vmatpush1.bf16.msra.mxu0 %v509
    %718 = vmatprep.subr.bf16.mxu0 0
    %719 = vmatpush1.bf16.msra.mxu0 %v510
    %720 = vmatprep.subr.bf16.mxu0 0
    %721 = vmatpush1.bf16.msra.mxu0 %v511
    %722 = vmatprep.subr.bf16.mxu0 0
    %723 = vmatpush1.bf16.msra.mxu0 %v512
    %724 = vmatprep.subr.bf16.mxu0 0
    %725 = vmatpush1.bf16.msra.mxu0 %v513
    %726 = vmatprep.subr.bf16.mxu0 0
    %727 = vmatpush1.bf16.msra.mxu0 %v514
    %728 = vmatprep.subr.bf16.mxu0 0
    %729 = vmatpush1.bf16.msra.mxu0 %v515
    %730 = vmatprep.subr.bf16.mxu0 0
    %731 = vmatpush1.bf16.msra.mxu0 %v516
    %732 = vmatprep.subr.bf16.mxu0 0
    %733 = vmatpush1.bf16.msra.mxu0 %v517
    %734 = vmatprep.mubr.bf16.mxu0 %v189
    %735 = vmatmul.mubr.bf16.gmra.mrb[0].mxu0 %v188
    %v736 = vpop.f32.mrb[0].mxu0
    %v737 = vadd.f32 %v697, %v736
    %v738 = vpop.f32.mrb[0].mxu0
    %v739 = vpop.f32.mrb[0].mxu0
    %v740 = vpop.f32.mrb[0].mxu0
    %741 = vdwg.mxu0
    %v742 = vmax.f32 %v737, 0.0
    %v743 = vpack.c.bf16 %v742, %v742
    %744 = vst [vmem:[%s7] sm:$0xf] %v743
    %v745 = vld [vmem:[%s3] sm:$0xf]
    %v746 = vld [vmem:[%s3 + $0x4] sm:$0xf]
    %v747 = vld [vmem:[%s3 + $0x8] sm:$0xf]
    %v748 = vld [vmem:[%s3 + $0xc] sm:$0xf]
    %v749 = vld [vmem:[%s3 + $0x10] sm:$0xf]
    %v750 = vld [vmem:[%s3 + $0x14] sm:$0xf]
    %v751 = vld [vmem:[%s3 + $0x18] sm:$0xf]
    %v752 = vld [vmem:[%s3 + $0x1c] sm:$0xf]
    %v753 = vld [vmem:[%s3 + $0x20] sm:$0xf]
    %v754 = vld [vmem:[%s3 + $0x24] sm:$0xf]
    %v755 = vld [vmem:[%s3 + $0x28] sm:$0xf]
    %v756 = vld [vmem:[%s3 + $0x2c] sm:$0xf]
    %v757 = vld [vmem:[%s3 + $0x30] sm:$0xf]
    %v758 = vld [vmem:[%s3 + $0x34] sm:$0xf]
    %v759 = vld [vmem:[%s3 + $0x38] sm:$0xf]
    %v760 = vld [vmem:[%s3 + $0x3c] sm:$0xf]
    %v761 = vld [vmem:[%s4] sm:$0x1]
    %v763 = vlaneseq
    %v764 = vshrl.u32 %v763, 7
    %v765 = vsub.s32 0, %v764
    %v766 = vrot.slane %v761, %v765
    %v784 = vunpack.c.l.b16 %v745
    %v785 = vunpack.c.l.b16 %v746
    %v786 = vunpack.c.l.b16 %v747
    %v787 = vunpack.c.l.b16 %v748
    %v788 = vunpack.c.l.b16 %v749
    %v789 = vunpack.c.l.b16 %v750
    %v790 = vunpack.c.l.b16 %v751
    %v791 = vunpack.c.l.b16 %v752
    %v792 = vunpack.c.l.b16 %v753
    %v793 = vunpack.c.l.b16 %v754
    %v794 = vunpack.c.l.b16 %v755
    %v795 = vunpack.c.l.b16 %v756
    %v796 = vunpack.c.l.b16 %v757
    %v797 = vunpack.c.l.b16 %v758
    %v798 = vunpack.c.l.b16 %v759
    %v799 = vunpack.c.l.b16 %v760
    %v800 = vpack.c.b16 %v785, %v784
    %v801 = vpack.c.b16 %v787, %v786
    %v802 = vpack.c.b16 %v789, %v788
    %v803 = vpack.c.b16 %v791, %v790
    %v804 = vpack.c.b16 %v793, %v792
    %v805 = vpack.c.b16 %v795, %v794
    %v806 = vpack.c.b16 %v797, %v796
    %v807 = vpack.c.b16 %v799, %v798
    %816 = vmatprep.subr.bf16.mxu0 0
    %817 = vmatpush1.bf16.msra.mxu0 %v800
    %818 = vmatprep.subr.bf16.mxu0 0
    %819 = vmatpush1.bf16.msra.mxu0 %v801
    %820 = vmatprep.subr.bf16.mxu0 0
    %821 = vmatpush1.bf16.msra.mxu0 %v802
    %822 = vmatprep.subr.bf16.mxu0 0
    %823 = vmatpush1.bf16.msra.mxu0 %v803
    %824 = vmatprep.subr.bf16.mxu0 0
    %825 = vmatpush1.bf16.msra.mxu0 %v804
    %826 = vmatprep.subr.bf16.mxu0 0
    %827 = vmatpush1.bf16.msra.mxu0 %v805
    %828 = vmatprep.subr.bf16.mxu0 0
    %829 = vmatpush1.bf16.msra.mxu0 %v806
    %830 = vmatprep.subr.bf16.mxu0 0
    %831 = vmatpush1.bf16.msra.mxu0 %v807
    %832 = vmatprep.subr.bf16.mxu0 0
    %833 = vmatpush1.bf16.msra.mxu0 0
    %834 = vmatprep.subr.bf16.mxu0 0
    %835 = vmatpush1.bf16.msra.mxu0 0
    %836 = vmatprep.subr.bf16.mxu0 0
    %837 = vmatpush1.bf16.msra.mxu0 0
    %838 = vmatprep.subr.bf16.mxu0 0
    %839 = vmatpush1.bf16.msra.mxu0 0
    %840 = vmatprep.subr.bf16.mxu0 0
    %841 = vmatpush1.bf16.msra.mxu0 0
    %842 = vmatprep.subr.bf16.mxu0 0
    %843 = vmatpush1.bf16.msra.mxu0 0
    %844 = vmatprep.subr.bf16.mxu0 0
    %845 = vmatpush1.bf16.msra.mxu0 0
    %846 = vmatprep.subr.bf16.mxu0 0
    %847 = vmatpush1.bf16.msra.mxu0 0
    %848 = vmatprep.mubr.bf16.mxu0 0
    %849 = vmatmul.mubr.bf16.gmra.mrb[0].mxu0 %v743
    %v850 = vpop.f32.mrb[0].mxu0
    %v851 = vadd.f32 %v766, %v850
    %v852 = vpop.f32.mrb[0].mxu0
    %v853 = vpop.f32.mrb[0].mxu0
    %v854 = vpop.f32.mrb[0].mxu0
    %855 = vdwg.mxu0
    %856 = vst [vmem:[%s8] sm:$0xff] %v851
    %v857 = vpack.c.bf16 %v851, %v851
    %v858 = vld [vmem:[%s5] sm:$0xf]
    %v859 = vld [vmem:[%s5 + $0x4] sm:$0xf]
    %v860 = vld [vmem:[%s5 + $0x8] sm:$0xf]
    %v861 = vld [vmem:[%s5 + $0xc] sm:$0xf]
    %v862 = vld [vmem:[%s5 + $0x10] sm:$0xf]
    %v863 = vld [vmem:[%s5 + $0x14] sm:$0xf]
    %v864 = vld [vmem:[%s5 + $0x18] sm:$0xf]
    %v865 = vld [vmem:[%s5 + $0x1c] sm:$0xf]
    %v866 = vld [vmem:[%s5 + $0x20] sm:$0xf]
    %v867 = vld [vmem:[%s5 + $0x24] sm:$0xf]
    %v868 = vld [vmem:[%s5 + $0x28] sm:$0xf]
    %v869 = vld [vmem:[%s5 + $0x2c] sm:$0xf]
    %v870 = vld [vmem:[%s5 + $0x30] sm:$0xf]
    %v871 = vld [vmem:[%s5 + $0x34] sm:$0xf]
    %v872 = vld [vmem:[%s5 + $0x38] sm:$0xf]
    %v873 = vld [vmem:[%s5 + $0x3c] sm:$0xf]
    %v874 = vld [vmem:[%s6] sm:$0x1]
    %v876 = vlaneseq
    %v877 = vshrl.u32 %v876, 7
    %v878 = vsub.s32 0, %v877
    %v879 = vrot.slane %v874, %v878
    %v897 = vunpack.c.l.b16 %v858
    %v898 = vunpack.c.l.b16 %v859
    %v899 = vunpack.c.l.b16 %v860
    %v900 = vunpack.c.l.b16 %v861
    %v901 = vunpack.c.l.b16 %v862
    %v902 = vunpack.c.l.b16 %v863
    %v903 = vunpack.c.l.b16 %v864
    %v904 = vunpack.c.l.b16 %v865
    %v905 = vunpack.c.l.b16 %v866
    %v906 = vunpack.c.l.b16 %v867
    %v907 = vunpack.c.l.b16 %v868
    %v908 = vunpack.c.l.b16 %v869
    %v909 = vunpack.c.l.b16 %v870
    %v910 = vunpack.c.l.b16 %v871
    %v911 = vunpack.c.l.b16 %v872
    %v912 = vunpack.c.l.b16 %v873
    %v913 = vpack.c.b16 %v898, %v897
    %v914 = vpack.c.b16 %v900, %v899
    %v915 = vpack.c.b16 %v902, %v901
    %v916 = vpack.c.b16 %v904, %v903
    %v917 = vpack.c.b16 %v906, %v905
    %v918 = vpack.c.b16 %v908, %v907
    %v919 = vpack.c.b16 %v910, %v909
    %v920 = vpack.c.b16 %v912, %v911
    %929 = vmatprep.subr.bf16.mxu0 0
    %930 = vmatpush1.bf16.msra.mxu0 %v913
    %931 = vmatprep.subr.bf16.mxu0 0
    %932 = vmatpush1.bf16.msra.mxu0 %v914
    %933 = vmatprep.subr.bf16.mxu0 0
    %934 = vmatpush1.bf16.msra.mxu0 %v915
    %935 = vmatprep.subr.bf16.mxu0 0
    %936 = vmatpush1.bf16.msra.mxu0 %v916
    %937 = vmatprep.subr.bf16.mxu0 0
    %938 = vmatpush1.bf16.msra.mxu0 %v917
    %939 = vmatprep.subr.bf16.mxu0 0
    %940 = vmatpush1.bf16.msra.mxu0 %v918
    %941 = vmatprep.subr.bf16.mxu0 0
    %942 = vmatpush1.bf16.msra.mxu0 %v919
    %943 = vmatprep.subr.bf16.mxu0 0
    %944 = vmatpush1.bf16.msra.mxu0 %v920
    %945 = vmatprep.subr.bf16.mxu0 0
    %946 = vmatpush1.bf16.msra.mxu0 0
    %947 = vmatprep.subr.bf16.mxu0 0
    %948 = vmatpush1.bf16.msra.mxu0 0
    %949 = vmatprep.subr.bf16.mxu0 0
    %950 = vmatpush1.bf16.msra.mxu0 0
    %951 = vmatprep.subr.bf16.mxu0 0
    %952 = vmatpush1.bf16.msra.mxu0 0
    %953 = vmatprep.subr.bf16.mxu0 0
    %954 = vmatpush1.bf16.msra.mxu0 0
    %955 = vmatprep.subr.bf16.mxu0 0
    %956 = vmatpush1.bf16.msra.mxu0 0
    %957 = vmatprep.subr.bf16.mxu0 0
    %958 = vmatpush1.bf16.msra.mxu0 0
    %959 = vmatprep.subr.bf16.mxu0 0
    %960 = vmatpush1.bf16.msra.mxu0 0
    %961 = vmatprep.mubr.bf16.mxu0 0
    %962 = vmatmul.mubr.bf16.gmra.mrb[0].mxu0 %v857
    %v963 = vpop.f32.mrb[0].mxu0
    %v964 = vadd.f32 %v879, %v963
    %v965 = vpop.f32.mrb[0].mxu0
    %v966 = vpop.f32.mrb[0].mxu0
    %v967 = vpop.f32.mrb[0].mxu0
    %968 = vdwg.mxu0
    %969 = vst [vmem:[#allocation2] sm:$0xff] %v964
    // Predicated region
    $region30: #{transport_jac_forward.8} parent=1 // pred_check
      _
    $region31: #{transport_jac_forward.8} parent=1 // pred_check_branch
      %971 = sbr.rel (0) target = $region33
    $region32: #{transport_jac_forward.8} parent=1 // pred_region
      _
    $region33: #{transport_jac_forward.8} parent=1 // pred_fallthru
      _
    // Predicated region
    $region34: #{transport_jac_forward.8} parent=1 // pred_check
      _
    $region35: #{transport_jac_forward.8} parent=1 // pred_check_branch
      %973 = sbr.rel (0) target = $region37
    $region36: #{transport_jac_forward.8} parent=1 // pred_region
      _
    $region37: #{transport_jac_forward.8} parent=1 // pred_fallthru
      _
    // Predicated region
    $region38: #{transport_jac_forward.8} parent=1 // pred_check
      _
    $region39: #{transport_jac_forward.8} parent=1 // pred_check_branch
      %975 = sbr.rel (0) target = $region41
    $region40: #{transport_jac_forward.8} parent=1 // pred_region
      %s977 = ssub.s32 128, 128
      %978 = vsyncadd [#allocation3], %s977
      %s980 = sshll.u32 [#allocation2], 4
      %s981 = int_to_ptr.vmem [resolvable:$true] %s980
      %983 = dma.vmem_to_hbm [thread:$0]  %s981, 128, %s9, [#allocation3]
    $region41: #{transport_jac_forward.8} parent=1 // pred_fallthru
      _
    // Predicated region
    $region42: #{transport_jac_forward.8} parent=1 // pred_check
      _
    $region43: #{transport_jac_forward.8} parent=1 // pred_check_branch
      %985 = sbr.rel (0) target = $region45
    $region44: #{transport_jac_forward.8} parent=1 // pred_region
      _
    $region45: #{transport_jac_forward.8} parent=1 // pred_fallthru
      _
    // Predicated region
    $region46: #{transport_jac_forward.8} parent=1 // pred_check
      _
    $region47: #{transport_jac_forward.8} parent=1 // pred_check_branch
      %987 = sbr.rel (0) target = $region49
    $region48: #{transport_jac_forward.8} parent=1 // pred_region
      _
    $region49: #{transport_jac_forward.8} parent=1 // pred_fallthru
      _
    // Predicated region
    $region50: #{transport_jac_forward.8} parent=1 // pred_check
      _
    $region51: #{transport_jac_forward.8} parent=1 // pred_check_branch
      %989 = sbr.rel (0) target = $region53
    $region52: #{transport_jac_forward.8} parent=1 // pred_region
      %990 = dma.done [#allocation3], 128
    $region53: #{transport_jac_forward.8} parent=1 // pred_fallthru
      _
    %991 = vsyncpa [#allocation3], 1

// kernel: transport_jac_forward.7
$region0: #{transport_jac_forward.7}
  #allocation0 [shape = 'u32[]', space=smem, size = 0x4, offset = 0x4, fixed_abs, tag = 'smem constant byte address 0x4 - core index']
  #allocation1 [shape = 'u32[144,128]{1,0:T(1,128)}', space=vmem, size = 0x12000, scoped, tag = 'internal scratch']
  %s0 = inlined_call_operand.vmem [shape: f32[8,128], index: 0, kind: input, shape index: {}]
  %s1 = inlined_call_operand.vmem [shape: f32[8,128], index: 1, kind: input, shape index: {}]
  %s2 = inlined_call_operand.vmem [shape: f32[1,128], index: 2, kind: input, shape index: {}]
  %s3 = inlined_call_operand.hbm [shape: f32[1,1], index: 3, kind: output, shape index: {}]
  %s4 = sld [smem:[#allocation0]]
  $region22: #{transport_jac_forward.7} parent=0
    _
  %s6 = ssub.s32 1, %s4
  %s7 = scalar_select 0, %s6, %s4
  $region1: #{transport_jac_forward.7} parent=0
    #allocation2 [shape = 'u8[512]{0}', space=vmem, size = 0x400, scoped, tag = 'output window, operand 0, single buffered']
    #allocation3 [shape = 's32[1]{0}', space=sflag, size = 0x4, scoped, tag = 'scoped memory for transport_jac_forward.7']
    %8 = vsyncpa [#allocation3], 0
    // Predicated region
    $region2: #{transport_jac_forward.7} parent=1 // pred_check
      _
    $region3: #{transport_jac_forward.7} parent=1 // pred_check_branch
      %10 = sbr.rel (0) target = $region5
    $region4: #{transport_jac_forward.7} parent=1 // pred_region
      _
    $region5: #{transport_jac_forward.7} parent=1 // pred_fallthru
      _
    // Predicated region
    $region6: #{transport_jac_forward.7} parent=1 // pred_check
      _
    $region7: #{transport_jac_forward.7} parent=1 // pred_check_branch
      %12 = sbr.rel (0) target = $region9
    $region8: #{transport_jac_forward.7} parent=1 // pred_region
      _
    $region9: #{transport_jac_forward.7} parent=1 // pred_fallthru
      _
    // Predicated region
    $region10: #{transport_jac_forward.7} parent=1 // pred_check
      _
    $region11: #{transport_jac_forward.7} parent=1 // pred_check_branch
      %14 = sbr.rel (0) target = $region13
    $region12: #{transport_jac_forward.7} parent=1 // pred_region
      _
    $region13: #{transport_jac_forward.7} parent=1 // pred_fallthru
      _
    %v15 = vld [vmem:[%s0] sm:$0xff]
    %v16 = vld [vmem:[%s2] sm:$0x1]
    %vm17 = vcmp.gt.f32.partialorder %v16, 0.5
    %v18 = vsel %vm17, 1, 0
    %v19 = vlaneseq
    %v20 = vshrl.u32 %v19, 7
    %v21 = vsub.s32 0, %v20
    %v22 = vrot.slane %v18, %v21
    %vm23 = vcmp.eq.s32.totalorder %v22, 1
    %v24 = vsel %vm23, %v15, -1e+30
    %25 = vmax.xlane.f32.xlu0 %v24
    %v26 = vpop.xlane.xlu0 %25
    %v27 = vsub.f32 %v24, %v26
    %v28 = vmul.f32 %v27, 1.442695
    %v29 = vpow.pop %v28
    %30 = vadd.xlane.f32.xlu0 %v29
    %v31 = vpop.xlane.xlu0 %30
    %v32 = vlog2.pop %v31
    %v33 = vmul.f32 %v32, 0.6931472
    %v34 = vadd.f32 %v26, %v33
    %v35 = vld [vmem:[%s1] sm:$0xff]
    %v36 = vmul.f32 %v15, %v35
    %37 = vadd.xlane.f32.xlu0 %v36
    %v38 = vpop.xlane.xlu0 %37
    %v39 = vsub.f32 %v34, %v38
    %v40 = vrot.slane %v39, 4
    %v41 = vadd.f32 %v39, %v40
    %v42 = vrot.slane %v41, 2
    %v43 = vadd.f32 %v41, %v42
    %v44 = vrot.slane %v43, 1
    %v45 = vadd.f32 %v43, %v44
    %v46 = vmul.f32 %v45, 0.125
    %vm47 = vcmask 0
    %48 = vst.msk [vmem:[#allocation2] sm:$0x1] %vm47, %v46
    // Predicated region
    $region14: #{transport_jac_forward.7} parent=1 // pred_check
      _
    $region15: #{transport_jac_forward.7} parent=1 // pred_check_branch
      %50 = sbr.rel (0) target = $region17
    $region16: #{transport_jac_forward.7} parent=1 // pred_region
      %s52 = ssub.s32 16, 16
      %53 = vsyncadd [#allocation3], %s52
      %s55 = sshll.u32 [#allocation2], 4
      %s56 = int_to_ptr.vmem [resolvable:$true] %s55
      %58 = dma.vmem_to_hbm [thread:$0]  %s56, 16, %s3, [#allocation3]
    $region17: #{transport_jac_forward.7} parent=1 // pred_fallthru
      _
    // Predicated region
    $region18: #{transport_jac_forward.7} parent=1 // pred_check
      _
    $region19: #{transport_jac_forward.7} parent=1 // pred_check_branch
      %60 = sbr.rel (0) target = $region21
    $region20: #{transport_jac_forward.7} parent=1 // pred_region
      %61 = dma.done [#allocation3], 16
    $region21: #{transport_jac_forward.7} parent=1 // pred_fallthru
      _
    %62 = vsyncpa [#allocation3], 1

// kernel: transport_jac_forward.9
$region0: #{transport_jac_forward.9}
  #allocation0 [shape = 'u32[]', space=smem, size = 0x4, offset = 0x4, fixed_abs, tag = 'smem constant byte address 0x4 - core index']
  #allocation1 [shape = 'u32[144,128]{1,0:T(1,128)}', space=vmem, size = 0x12000, scoped, tag = 'internal scratch']
  %s0 = inlined_call_operand.vmem [shape: bf16[16,128], index: 0, kind: input, shape index: {}]
  %s1 = inlined_call_operand.vmem [shape: bf16[128,128], index: 1, kind: input, shape index: {}]
  %s2 = inlined_call_operand.vmem [shape: f32[16,128], index: 2, kind: output, shape index: {}]
  %s3 = sld [smem:[#allocation0]]
  $region18: #{transport_jac_forward.9} parent=0
    _
  %s5 = ssub.s32 1, %s3
  %s6 = scalar_select 0, %s5, %s3
  // Predicated region
  $region2: #{transport_jac_forward.9} parent=0 // pred_check
    _
  $region3: #{transport_jac_forward.9} parent=0 // pred_check_branch
    %8 = sbr.rel (0) target = $region5
  $region4: #{transport_jac_forward.9} parent=0 // pred_region
    _
  $region5: #{transport_jac_forward.9} parent=0 // pred_fallthru
    _
  // Predicated region
  $region6: #{transport_jac_forward.9} parent=0 // pred_check
    _
  $region7: #{transport_jac_forward.9} parent=0 // pred_check_branch
    %10 = sbr.rel (0) target = $region9
  $region8: #{transport_jac_forward.9} parent=0 // pred_region
    _
  $region9: #{transport_jac_forward.9} parent=0 // pred_fallthru
    _
  %v12 = vld [vmem:[%s0] sm:$0xf]
  %v13 = vld [vmem:[%s0 + $0x4] sm:$0xf]
  %v14 = vld [vmem:[%s1] sm:$0xf]
  %v15 = vld [vmem:[%s1 + $0x4] sm:$0xf]
  %v16 = vld [vmem:[%s1 + $0x8] sm:$0xf]
  %v17 = vld [vmem:[%s1 + $0xc] sm:$0xf]
  %v18 = vld [vmem:[%s1 + $0x10] sm:$0xf]
  %v19 = vld [vmem:[%s1 + $0x14] sm:$0xf]
  %v20 = vld [vmem:[%s1 + $0x18] sm:$0xf]
  %v21 = vld [vmem:[%s1 + $0x1c] sm:$0xf]
  %v22 = vld [vmem:[%s1 + $0x20] sm:$0xf]
  %v23 = vld [vmem:[%s1 + $0x24] sm:$0xf]
  %v24 = vld [vmem:[%s1 + $0x28] sm:$0xf]
  %v25 = vld [vmem:[%s1 + $0x2c] sm:$0xf]
  %v26 = vld [vmem:[%s1 + $0x30] sm:$0xf]
  %v27 = vld [vmem:[%s1 + $0x34] sm:$0xf]
  %v28 = vld [vmem:[%s1 + $0x38] sm:$0xf]
  %v29 = vld [vmem:[%s1 + $0x3c] sm:$0xf]
  %v32 = vunpack.c.l.b16 %v12
  %v33 = vunpack.c.l.b16 %v13
  %v34 = vpack.c.b16 %v33, %v32
  %v52 = vunpack.c.l.b16 %v14
  %v53 = vunpack.c.l.b16 %v15
  %v54 = vunpack.c.l.b16 %v16
  %v55 = vunpack.c.l.b16 %v17
  %v56 = vunpack.c.l.b16 %v18
  %v57 = vunpack.c.l.b16 %v19
  %v58 = vunpack.c.l.b16 %v20
  %v59 = vunpack.c.l.b16 %v21
  %v60 = vunpack.c.l.b16 %v22
  %v61 = vunpack.c.l.b16 %v23
  %v62 = vunpack.c.l.b16 %v24
  %v63 = vunpack.c.l.b16 %v25
  %v64 = vunpack.c.l.b16 %v26
  %v65 = vunpack.c.l.b16 %v27
  %v66 = vunpack.c.l.b16 %v28
  %v67 = vunpack.c.l.b16 %v29
  %v68 = vpack.c.b16 %v53, %v52
  %v69 = vpack.c.b16 %v55, %v54
  %v70 = vpack.c.b16 %v57, %v56
  %v71 = vpack.c.b16 %v59, %v58
  %v72 = vpack.c.b16 %v61, %v60
  %v73 = vpack.c.b16 %v63, %v62
  %v74 = vpack.c.b16 %v65, %v64
  %v75 = vpack.c.b16 %v67, %v66
  %84 = vmatprep.subr.bf16.mxu0 0
  %85 = vmatpush1.bf16.msra.mxu0 %v68
  %86 = vmatprep.subr.bf16.mxu0 0
  %87 = vmatpush1.bf16.msra.mxu0 %v69
  %88 = vmatprep.subr.bf16.mxu0 0
  %89 = vmatpush1.bf16.msra.mxu0 %v70
  %90 = vmatprep.subr.bf16.mxu0 0
  %91 = vmatpush1.bf16.msra.mxu0 %v71
  %92 = vmatprep.subr.bf16.mxu0 0
  %93 = vmatpush1.bf16.msra.mxu0 %v72
  %94 = vmatprep.subr.bf16.mxu0 0
  %95 = vmatpush1.bf16.msra.mxu0 %v73
  %96 = vmatprep.subr.bf16.mxu0 0
  %97 = vmatpush1.bf16.msra.mxu0 %v74
  %98 = vmatprep.subr.bf16.mxu0 0
  %99 = vmatpush1.bf16.msra.mxu0 %v75
  %100 = vmatprep.subr.bf16.mxu0 0
  %101 = vmatpush1.bf16.msra.mxu0 0
  %102 = vmatprep.subr.bf16.mxu0 0
  %103 = vmatpush1.bf16.msra.mxu0 0
  %104 = vmatprep.subr.bf16.mxu0 0
  %105 = vmatpush1.bf16.msra.mxu0 0
  %106 = vmatprep.subr.bf16.mxu0 0
  %107 = vmatpush1.bf16.msra.mxu0 0
  %108 = vmatprep.subr.bf16.mxu0 0
  %109 = vmatpush1.bf16.msra.mxu0 0
  %110 = vmatprep.subr.bf16.mxu0 0
  %111 = vmatpush1.bf16.msra.mxu0 0
  %112 = vmatprep.subr.bf16.mxu0 0
  %113 = vmatpush1.bf16.msra.mxu0 0
  %114 = vmatprep.subr.bf16.mxu0 0
  %115 = vmatpush1.bf16.msra.mxu0 0
  %116 = vmatprep.mubr.bf16.mxu0 0
  %117 = vmatmul.mubr.bf16.gmra.mrb[0].mxu0 %v34
  %v118 = vpop.f32.mrb[0].mxu0
  %v119 = vadd.f32 0.0, %v118
  %v120 = vpop.f32.mrb[0].mxu0
  %v121 = vpop.f32.mrb[0].mxu0
  %v122 = vadd.f32 0.0, %v121
  %v123 = vpop.f32.mrb[0].mxu0
  %124 = vdwg.mxu0
  %125 = vst [vmem:[%s2] sm:$0xff] %v119
  %126 = vst [vmem:[%s2 + $0x8] sm:$0xff] %v122
  // Predicated region
  $region10: #{transport_jac_forward.9} parent=0 // pred_check
    _
  $region11: #{transport_jac_forward.9} parent=0 // pred_check_branch
    %128 = sbr.rel (0) target = $region13
  $region12: #{transport_jac_forward.9} parent=0 // pred_region
    _
  $region13: #{transport_jac_forward.9} parent=0 // pred_fallthru
    _
  // Predicated region
  $region14: #{transport_jac_forward.9} parent=0 // pred_check
    _
  $region15: #{transport_jac_forward.9} parent=0 // pred_check_branch
    %130 = sbr.rel (0) target = $region17
  $region16: #{transport_jac_forward.9} parent=0 // pred_region
    _
  $region17: #{transport_jac_forward.9} parent=0 // pred_fallthru
    _

// kernel: transport_jac_forward.6
$region0: #{transport_jac_forward.6}
  #allocation0 [shape = 'u32[]', space=smem, size = 0x4, offset = 0x4, fixed_abs, tag = 'smem constant byte address 0x4 - core index']
  #allocation1 [shape = 'u32[144,128]{1,0:T(1,128)}', space=vmem, size = 0x12000, scoped, tag = 'internal scratch']
  %s0 = inlined_call_operand.vmem [shape: bf16[8,1024], index: 0, kind: input, shape index: {}]
  %s1 = inlined_call_operand.vmem [shape: bf16[1024,128], index: 1, kind: input, shape index: {}]
  %s2 = inlined_call_operand.vmem [shape: f32[1,128], index: 2, kind: input, shape index: {}]
  %s3 = inlined_call_operand.vmem [shape: bf16[128,128], index: 3, kind: input, shape index: {}]
  %s4 = inlined_call_operand.vmem [shape: f32[1,128], index: 4, kind: input, shape index: {}]
  %s5 = inlined_call_operand.vmem [shape: bf16[128,128], index: 5, kind: input, shape index: {}]
  %s6 = inlined_call_operand.vmem [shape: f32[1,128], index: 6, kind: input, shape index: {}]
  %s7 = inlined_call_operand.hbm [shape: bf16[8,128], index: 7, kind: output, shape index: {0}]
  %s8 = inlined_call_operand.vmem [shape: f32[8,128], index: 8, kind: output, shape index: {1}]
  %s9 = inlined_call_operand.vmem [shape: f32[8,128], index: 9, kind: output, shape index: {2}]
  %10 = xla_tuple %s7, %s8, %s9
  %s11 = sld [smem:[#allocation0]]
  $region54: #{transport_jac_forward.6} parent=0
    _
  %s13 = ssub.s32 1, %s11
  %s14 = scalar_select 0, %s13, %s11
  $region1: #{transport_jac_forward.6} parent=0
    #allocation2 [shape = 'u8[2048]{0}', space=vmem, size = 0x800, scoped, tag = 'output window, operand 0, single buffered']
    #allocation3 [shape = 's32[1]{0}', space=sflag, size = 0x4, scoped, tag = 'scoped memory for transport_jac_forward.6']
    %15 = vsyncpa [#allocation3], 0
    // Predicated region
    $region2: #{transport_jac_forward.6} parent=1 // pred_check
      _
    $region3: #{transport_jac_forward.6} parent=1 // pred_check_branch
      %17 = sbr.rel (0) target = $region5
    $region4: #{transport_jac_forward.6} parent=1 // pred_region
      _
    $region5: #{transport_jac_forward.6} parent=1 // pred_fallthru
      _
    // Predicated region
    $region6: #{transport_jac_forward.6} parent=1 // pred_check
      _
    $region7: #{transport_jac_forward.6} parent=1 // pred_check_branch
      %19 = sbr.rel (0) target = $region9
    $region8: #{transport_jac_forward.6} parent=1 // pred_region
      _
    $region9: #{transport_jac_forward.6} parent=1 // pred_fallthru
      _
    // Predicated region
    $region10: #{transport_jac_forward.6} parent=1 // pred_check
      _
    $region11: #{transport_jac_forward.6} parent=1 // pred_check_branch
      %21 = sbr.rel (0) target = $region13
    $region12: #{transport_jac_forward.6} parent=1 // pred_region
      _
    $region13: #{transport_jac_forward.6} parent=1 // pred_fallthru
      _
    // Predicated region
    $region14: #{transport_jac_forward.6} parent=1 // pred_check
      _
    $region15: #{transport_jac_forward.6} parent=1 // pred_check_branch
      %23 = sbr.rel (0) target = $region17
    $region16: #{transport_jac_forward.6} parent=1 // pred_region
      _
    $region17: #{transport_jac_forward.6} parent=1 // pred_fallthru
      _
    // Predicated region
    $region18: #{transport_jac_forward.6} parent=1 // pred_check
      _
    $region19: #{transport_jac_forward.6} parent=1 // pred_check_branch
      %25 = sbr.rel (0) target = $region21
    $region20: #{transport_jac_forward.6} parent=1 // pred_region
      _
    $region21: #{transport_jac_forward.6} parent=1 // pred_fallthru
      _
    // Predicated region
    $region22: #{transport_jac_forward.6} parent=1 // pred_check
      _
    $region23: #{transport_jac_forward.6} parent=1 // pred_check_branch
      %27 = sbr.rel (0) target = $region25
    $region24: #{transport_jac_forward.6} parent=1 // pred_region
      _
    $region25: #{transport_jac_forward.6} parent=1 // pred_fallthru
      _
    // Predicated region
    $region26: #{transport_jac_forward.6} parent=1 // pred_check
      _
    $region27: #{transport_jac_forward.6} parent=1 // pred_check_branch
      %29 = sbr.rel (0) target = $region29
    $region28: #{transport_jac_forward.6} parent=1 // pred_region
      _
    $region29: #{transport_jac_forward.6} parent=1 // pred_fallthru
      _
    %v31 = vld [vmem:[%s0] sm:$0xff]
    %v32 = vld [vmem:[%s0 + $0x8] sm:$0xff]
    %v33 = vld [vmem:[%s0 + $0x10] sm:$0xff]
    %v34 = vld [vmem:[%s0 + $0x18] sm:$0xff]
    %v35 = vld [vmem:[%s1] sm:$0xf]
    %v36 = vld [vmem:[%s1 + $0x4] sm:$0xf]
    %v37 = vld [vmem:[%s1 + $0x8] sm:$0xf]
    %v38 = vld [vmem:[%s1 + $0xc] sm:$0xf]
    %v39 = vld [vmem:[%s1 + $0x10] sm:$0xf]
    %v40 = vld [vmem:[%s1 + $0x14] sm:$0xf]
    %v41 = vld [vmem:[%s1 + $0x18] sm:$0xf]
    %v42 = vld [vmem:[%s1 + $0x1c] sm:$0xf]
    %v43 = vld [vmem:[%s1 + $0x20] sm:$0xf]
    %v44 = vld [vmem:[%s1 + $0x24] sm:$0xf]
    %v45 = vld [vmem:[%s1 + $0x28] sm:$0xf]
    %v46 = vld [vmem:[%s1 + $0x2c] sm:$0xf]
    %v47 = vld [vmem:[%s1 + $0x30] sm:$0xf]
    %v48 = vld [vmem:[%s1 + $0x34] sm:$0xf]
    %v49 = vld [vmem:[%s1 + $0x38] sm:$0xf]
    %v50 = vld [vmem:[%s1 + $0x3c] sm:$0xf]
    %v51 = vld [vmem:[%s1 + $0x40] sm:$0xf]
    %v52 = vld [vmem:[%s1 + $0x44] sm:$0xf]
    %v53 = vld [vmem:[%s1 + $0x48] sm:$0xf]
    %v54 = vld [vmem:[%s1 + $0x4c] sm:$0xf]
    %v55 = vld [vmem:[%s1 + $0x50] sm:$0xf]
    %v56 = vld [vmem:[%s1 + $0x54] sm:$0xf]
    %v57 = vld [vmem:[%s1 + $0x58] sm:$0xf]
    %v58 = vld [vmem:[%s1 + $0x5c] sm:$0xf]
    %v59 = vld [vmem:[%s1 + $0x60] sm:$0xf]
    %v60 = vld [vmem:[%s1 + $0x64] sm:$0xf]
    %v61 = vld [vmem:[%s1 + $0x68] sm:$0xf]
    %v62 = vld [vmem:[%s1 + $0x6c] sm:$0xf]
    %v63 = vld [vmem:[%s1 + $0x70] sm:$0xf]
    %v64 = vld [vmem:[%s1 + $0x74] sm:$0xf]
    %v65 = vld [vmem:[%s1 + $0x78] sm:$0xf]
    %v66 = vld [vmem:[%s1 + $0x7c] sm:$0xf]
    %v67 = vld [vmem:[%s1 + $0x80] sm:$0xf]
    %v68 = vld [vmem:[%s1 + $0x84] sm:$0xf]
    %v69 = vld [vmem:[%s1 + $0x88] sm:$0xf]
    %v70 = vld [vmem:[%s1 + $0x8c] sm:$0xf]
    %v71 = vld [vmem:[%s1 + $0x90] sm:$0xf]
    %v72 = vld [vmem:[%s1 + $0x94] sm:$0xf]
    %v73 = vld [vmem:[%s1 + $0x98] sm:$0xf]
    %v74 = vld [vmem:[%s1 + $0x9c] sm:$0xf]
    %v75 = vld [vmem:[%s1 + $0xa0] sm:$0xf]
    %v76 = vld [vmem:[%s1 + $0xa4] sm:$0xf]
    %v77 = vld [vmem:[%s1 + $0xa8] sm:$0xf]
    %v78 = vld [vmem:[%s1 + $0xac] sm:$0xf]
    %v79 = vld [vmem:[%s1 + $0xb0] sm:$0xf]
    %v80 = vld [vmem:[%s1 + $0xb4] sm:$0xf]
    %v81 = vld [vmem:[%s1 + $0xb8] sm:$0xf]
    %v82 = vld [vmem:[%s1 + $0xbc] sm:$0xf]
    %v83 = vld [vmem:[%s1 + $0xc0] sm:$0xf]
    %v84 = vld [vmem:[%s1 + $0xc4] sm:$0xf]
    %v85 = vld [vmem:[%s1 + $0xc8] sm:$0xf]
    %v86 = vld [vmem:[%s1 + $0xcc] sm:$0xf]
    %v87 = vld [vmem:[%s1 + $0xd0] sm:$0xf]
    %v88 = vld [vmem:[%s1 + $0xd4] sm:$0xf]
    %v89 = vld [vmem:[%s1 + $0xd8] sm:$0xf]
    %v90 = vld [vmem:[%s1 + $0xdc] sm:$0xf]
    %v91 = vld [vmem:[%s1 + $0xe0] sm:$0xf]
    %v92 = vld [vmem:[%s1 + $0xe4] sm:$0xf]
    %v93 = vld [vmem:[%s1 + $0xe8] sm:$0xf]
    %v94 = vld [vmem:[%s1 + $0xec] sm:$0xf]
    %v95 = vld [vmem:[%s1 + $0xf0] sm:$0xf]
    %v96 = vld [vmem:[%s1 + $0xf4] sm:$0xf]
    %v97 = vld [vmem:[%s1 + $0xf8] sm:$0xf]
    %v98 = vld [vmem:[%s1 + $0xfc] sm:$0xf]
    %v99 = vld [vmem:[%s1 + $0x100] sm:$0xf]
    %v100 = vld [vmem:[%s1 + $0x104] sm:$0xf]
    %v101 = vld [vmem:[%s1 + $0x108] sm:$0xf]
    %v102 = vld [vmem:[%s1 + $0x10c] sm:$0xf]
    %v103 = vld [vmem:[%s1 + $0x110] sm:$0xf]
    %v104 = vld [vmem:[%s1 + $0x114] sm:$0xf]
    %v105 = vld [vmem:[%s1 + $0x118] sm:$0xf]
    %v106 = vld [vmem:[%s1 + $0x11c] sm:$0xf]
    %v107 = vld [vmem:[%s1 + $0x120] sm:$0xf]
    %v108 = vld [vmem:[%s1 + $0x124] sm:$0xf]
    %v109 = vld [vmem:[%s1 + $0x128] sm:$0xf]
    %v110 = vld [vmem:[%s1 + $0x12c] sm:$0xf]
    %v111 = vld [vmem:[%s1 + $0x130] sm:$0xf]
    %v112 = vld [vmem:[%s1 + $0x134] sm:$0xf]
    %v113 = vld [vmem:[%s1 + $0x138] sm:$0xf]
    %v114 = vld [vmem:[%s1 + $0x13c] sm:$0xf]
    %v115 = vld [vmem:[%s1 + $0x140] sm:$0xf]
    %v116 = vld [vmem:[%s1 + $0x144] sm:$0xf]
    %v117 = vld [vmem:[%s1 + $0x148] sm:$0xf]
    %v118 = vld [vmem:[%s1 + $0x14c] sm:$0xf]
    %v119 = vld [vmem:[%s1 + $0x150] sm:$0xf]
    %v120 = vld [vmem:[%s1 + $0x154] sm:$0xf]
    %v121 = vld [vmem:[%s1 + $0x158] sm:$0xf]
    %v122 = vld [vmem:[%s1 + $0x15c] sm:$0xf]
    %v123 = vld [vmem:[%s1 + $0x160] sm:$0xf]
    %v124 = vld [vmem:[%s1 + $0x164] sm:$0xf]
    %v125 = vld [vmem:[%s1 + $0x168] sm:$0xf]
    %v126 = vld [vmem:[%s1 + $0x16c] sm:$0xf]
    %v127 = vld [vmem:[%s1 + $0x170] sm:$0xf]
    %v128 = vld [vmem:[%s1 + $0x174] sm:$0xf]
    %v129 = vld [vmem:[%s1 + $0x178] sm:$0xf]
    %v130 = vld [vmem:[%s1 + $0x17c] sm:$0xf]
    %v131 = vld [vmem:[%s1 + $0x180] sm:$0xf]
    %v132 = vld [vmem:[%s1 + $0x184] sm:$0xf]
    %v133 = vld [vmem:[%s1 + $0x188] sm:$0xf]
    %v134 = vld [vmem:[%s1 + $0x18c] sm:$0xf]
    %v135 = vld [vmem:[%s1 + $0x190] sm:$0xf]
    %v136 = vld [vmem:[%s1 + $0x194] sm:$0xf]
    %v137 = vld [vmem:[%s1 + $0x198] sm:$0xf]
    %v138 = vld [vmem:[%s1 + $0x19c] sm:$0xf]
    %v139 = vld [vmem:[%s1 + $0x1a0] sm:$0xf]
    %v140 = vld [vmem:[%s1 + $0x1a4] sm:$0xf]
    %v141 = vld [vmem:[%s1 + $0x1a8] sm:$0xf]
    %v142 = vld [vmem:[%s1 + $0x1ac] sm:$0xf]
    %v143 = vld [vmem:[%s1 + $0x1b0] sm:$0xf]
    %v144 = vld [vmem:[%s1 + $0x1b4] sm:$0xf]
    %v145 = vld [vmem:[%s1 + $0x1b8] sm:$0xf]
    %v146 = vld [vmem:[%s1 + $0x1bc] sm:$0xf]
    %v147 = vld [vmem:[%s1 + $0x1c0] sm:$0xf]
    %v148 = vld [vmem:[%s1 + $0x1c4] sm:$0xf]
    %v149 = vld [vmem:[%s1 + $0x1c8] sm:$0xf]
    %v150 = vld [vmem:[%s1 + $0x1cc] sm:$0xf]
    %v151 = vld [vmem:[%s1 + $0x1d0] sm:$0xf]
    %v152 = vld [vmem:[%s1 + $0x1d4] sm:$0xf]
    %v153 = vld [vmem:[%s1 + $0x1d8] sm:$0xf]
    %v154 = vld [vmem:[%s1 + $0x1dc] sm:$0xf]
    %v155 = vld [vmem:[%s1 + $0x1e0] sm:$0xf]
    %v156 = vld [vmem:[%s1 + $0x1e4] sm:$0xf]
    %v157 = vld [vmem:[%s1 + $0x1e8] sm:$0xf]
    %v158 = vld [vmem:[%s1 + $0x1ec] sm:$0xf]
    %v159 = vld [vmem:[%s1 + $0x1f0] sm:$0xf]
    %v160 = vld [vmem:[%s1 + $0x1f4] sm:$0xf]
    %v161 = vld [vmem:[%s1 + $0x1f8] sm:$0xf]
    %v162 = vld [vmem:[%s1 + $0x1fc] sm:$0xf]
    %v163 = vld [vmem:[%s2] sm:$0x1]
    %v165 = vlaneseq
    %v166 = vshrl.u32 %v165, 7
    %v167 = vsub.s32 0, %v166
    %v168 = vrot.slane %v163, %v167
    %v174 = vunpack.c.l.b16 %v31
    %v175 = vunpack.c.h.b16 %v31
    %v176 = vunpack.c.l.b16 %v32
    %v177 = vunpack.c.h.b16 %v32
    %v178 = vunpack.c.l.b16 %v33
    %v179 = vunpack.c.h.b16 %v33
    %v180 = vunpack.c.l.b16 %v34
    %v181 = vunpack.c.h.b16 %v34
    %v182 = vpack.c.b16 %v174, %v174
    %v183 = vpack.c.b16 %v175, %v175
    %v184 = vpack.c.b16 %v176, %v176
    %v185 = vpack.c.b16 %v177, %v177
    %v186 = vpack.c.b16 %v178, %v178
    %v187 = vpack.c.b16 %v179, %v179
    %v188 = vpack.c.b16 %v180, %v180
    %v189 = vpack.c.b16 %v181, %v181
    %v326 = vunpack.c.l.b16 %v35
    %v327 = vunpack.c.l.b16 %v36
    %v328 = vunpack.c.l.b16 %v37
    %v329 = vunpack.c.l.b16 %v38
    %v330 = vunpack.c.l.b16 %v39
    %v331 = vunpack.c.l.b16 %v40
    %v332 = vunpack.c.l.b16 %v41
    %v333 = vunpack.c.l.b16 %v42
    %v334 = vunpack.c.l.b16 %v43
    %v335 = vunpack.c.l.b16 %v44
    %v336 = vunpack.c.l.b16 %v45
    %v337 = vunpack.c.l.b16 %v46
    %v338 = vunpack.c.l.b16 %v47
    %v339 = vunpack.c.l.b16 %v48
    %v340 = vunpack.c.l.b16 %v49
    %v341 = vunpack.c.l.b16 %v50
    %v342 = vunpack.c.l.b16 %v51
    %v343 = vunpack.c.l.b16 %v52
    %v344 = vunpack.c.l.b16 %v53
    %v345 = vunpack.c.l.b16 %v54
    %v346 = vunpack.c.l.b16 %v55
    %v347 = vunpack.c.l.b16 %v56
    %v348 = vunpack.c.l.b16 %v57
    %v349 = vunpack.c.l.b16 %v58
    %v350 = vunpack.c.l.b16 %v59
    %v351 = vunpack.c.l.b16 %v60
    %v352 = vunpack.c.l.b16 %v61
    %v353 = vunpack.c.l.b16 %v62
    %v354 = vunpack.c.l.b16 %v63
    %v355 = vunpack.c.l.b16 %v64
    %v356 = vunpack.c.l.b16 %v65
    %v357 = vunpack.c.l.b16 %v66
    %v358 = vunpack.c.l.b16 %v67
    %v359 = vunpack.c.l.b16 %v68
    %v360 = vunpack.c.l.b16 %v69
    %v361 = vunpack.c.l.b16 %v70
    %v362 = vunpack.c.l.b16 %v71
    %v363 = vunpack.c.l.b16 %v72
    %v364 = vunpack.c.l.b16 %v73
    %v365 = vunpack.c.l.b16 %v74
    %v366 = vunpack.c.l.b16 %v75
    %v367 = vunpack.c.l.b16 %v76
    %v368 = vunpack.c.l.b16 %v77
    %v369 = vunpack.c.l.b16 %v78
    %v370 = vunpack.c.l.b16 %v79
    %v371 = vunpack.c.l.b16 %v80
    %v372 = vunpack.c.l.b16 %v81
    %v373 = vunpack.c.l.b16 %v82
    %v374 = vunpack.c.l.b16 %v83
    %v375 = vunpack.c.l.b16 %v84
    %v376 = vunpack.c.l.b16 %v85
    %v377 = vunpack.c.l.b16 %v86
    %v378 = vunpack.c.l.b16 %v87
    %v379 = vunpack.c.l.b16 %v88
    %v380 = vunpack.c.l.b16 %v89
    %v381 = vunpack.c.l.b16 %v90
    %v382 = vunpack.c.l.b16 %v91
    %v383 = vunpack.c.l.b16 %v92
    %v384 = vunpack.c.l.b16 %v93
    %v385 = vunpack.c.l.b16 %v94
    %v386 = vunpack.c.l.b16 %v95
    %v387 = vunpack.c.l.b16 %v96
    %v388 = vunpack.c.l.b16 %v97
    %v389 = vunpack.c.l.b16 %v98
    %v390 = vunpack.c.l.b16 %v99
    %v391 = vunpack.c.l.b16 %v100
    %v392 = vunpack.c.l.b16 %v101
    %v393 = vunpack.c.l.b16 %v102
    %v394 = vunpack.c.l.b16 %v103
    %v395 = vunpack.c.l.b16 %v104
    %v396 = vunpack.c.l.b16 %v105
    %v397 = vunpack.c.l.b16 %v106
    %v398 = vunpack.c.l.b16 %v107
    %v399 = vunpack.c.l.b16 %v108
    %v400 = vunpack.c.l.b16 %v109
    %v401 = vunpack.c.l.b16 %v110
    %v402 = vunpack.c.l.b16 %v111
    %v403 = vunpack.c.l.b16 %v112
    %v404 = vunpack.c.l.b16 %v113
    %v405 = vunpack.c.l.b16 %v114
    %v406 = vunpack.c.l.b16 %v115
    %v407 = vunpack.c.l.b16 %v116
    %v408 = vunpack.c.l.b16 %v117
    %v409 = vunpack.c.l.b16 %v118
    %v410 = vunpack.c.l.b16 %v119
    %v411 = vunpack.c.l.b16 %v120
    %v412 = vunpack.c.l.b16 %v121
    %v413 = vunpack.c.l.b16 %v122
    %v414 = vunpack.c.l.b16 %v123
    %v415 = vunpack.c.l.b16 %v124
    %v416 = vunpack.c.l.b16 %v125
    %v417 = vunpack.c.l.b16 %v126
    %v418 = vunpack.c.l.b16 %v127
    %v419 = vunpack.c.l.b16 %v128
    %v420 = vunpack.c.l.b16 %v129
    %v421 = vunpack.c.l.b16 %v130
    %v422 = vunpack.c.l.b16 %v131
    %v423 = vunpack.c.l.b16 %v132
    %v424 = vunpack.c.l.b16 %v133
    %v425 = vunpack.c.l.b16 %v134
    %v426 = vunpack.c.l.b16 %v135
    %v427 = vunpack.c.l.b16 %v136
    %v428 = vunpack.c.l.b16 %v137
    %v429 = vunpack.c.l.b16 %v138
    %v430 = vunpack.c.l.b16 %v139
    %v431 = vunpack.c.l.b16 %v140
    %v432 = vunpack.c.l.b16 %v141
    %v433 = vunpack.c.l.b16 %v142
    %v434 = vunpack.c.l.b16 %v143
    %v435 = vunpack.c.l.b16 %v144
    %v436 = vunpack.c.l.b16 %v145
    %v437 = vunpack.c.l.b16 %v146
    %v438 = vunpack.c.l.b16 %v147
    %v439 = vunpack.c.l.b16 %v148
    %v440 = vunpack.c.l.b16 %v149
    %v441 = vunpack.c.l.b16 %v150
    %v442 = vunpack.c.l.b16 %v151
    %v443 = vunpack.c.l.b16 %v152
    %v444 = vunpack.c.l.b16 %v153
    %v445 = vunpack.c.l.b16 %v154
    %v446 = vunpack.c.l.b16 %v155
    %v447 = vunpack.c.l.b16 %v156
    %v448 = vunpack.c.l.b16 %v157
    %v449 = vunpack.c.l.b16 %v158
    %v450 = vunpack.c.l.b16 %v159
    %v451 = vunpack.c.l.b16 %v160
    %v452 = vunpack.c.l.b16 %v161
    %v453 = vunpack.c.l.b16 %v162
    %v454 = vpack.c.b16 %v327, %v326
    %v455 = vpack.c.b16 %v329, %v328
    %v456 = vpack.c.b16 %v331, %v330
    %v457 = vpack.c.b16 %v333, %v332
    %v458 = vpack.c.b16 %v335, %v334
    %v459 = vpack.c.b16 %v337, %v336
    %v460 = vpack.c.b16 %v339, %v338
    %v461 = vpack.c.b16 %v341, %v340
    %v462 = vpack.c.b16 %v343, %v342
    %v463 = vpack.c.b16 %v345, %v344
    %v464 = vpack.c.b16 %v347, %v346
    %v465 = vpack.c.b16 %v349, %v348
    %v466 = vpack.c.b16 %v351, %v350
    %v467 = vpack.c.b16 %v353, %v352
    %v468 = vpack.c.b16 %v355, %v354
    %v469 = vpack.c.b16 %v357, %v356
    %v470 = vpack.c.b16 %v359, %v358
    %v471 = vpack.c.b16 %v361, %v360
    %v472 = vpack.c.b16 %v363, %v362
    %v473 = vpack.c.b16 %v365, %v364
    %v474 = vpack.c.b16 %v367, %v366
    %v475 = vpack.c.b16 %v369, %v368
    %v476 = vpack.c.b16 %v371, %v370
    %v477 = vpack.c.b16 %v373, %v372
    %v478 = vpack.c.b16 %v375, %v374
    %v479 = vpack.c.b16 %v377, %v376
    %v480 = vpack.c.b16 %v379, %v378
    %v481 = vpack.c.b16 %v381, %v380
    %v482 = vpack.c.b16 %v383, %v382
    %v483 = vpack.c.b16 %v385, %v384
    %v484 = vpack.c.b16 %v387, %v386
    %v485 = vpack.c.b16 %v389, %v388
    %v486 = vpack.c.b16 %v391, %v390
    %v487 = vpack.c.b16 %v393, %v392
    %v488 = vpack.c.b16 %v395, %v394
    %v489 = vpack.c.b16 %v397, %v396
    %v490 = vpack.c.b16 %v399, %v398
    %v491 = vpack.c.b16 %v401, %v400
    %v492 = vpack.c.b16 %v403, %v402
    %v493 = vpack.c.b16 %v405, %v404
    %v494 = vpack.c.b16 %v407, %v406
    %v495 = vpack.c.b16 %v409, %v408
    %v496 = vpack.c.b16 %v411, %v410
    %v497 = vpack.c.b16 %v413, %v412
    %v498 = vpack.c.b16 %v415, %v414
    %v499 = vpack.c.b16 %v417, %v416
    %v500 = vpack.c.b16 %v419, %v418
    %v501 = vpack.c.b16 %v421, %v420
    %v502 = vpack.c.b16 %v423, %v422
    %v503 = vpack.c.b16 %v425, %v424
    %v504 = vpack.c.b16 %v427, %v426
    %v505 = vpack.c.b16 %v429, %v428
    %v506 = vpack.c.b16 %v431, %v430
    %v507 = vpack.c.b16 %v433, %v432
    %v508 = vpack.c.b16 %v435, %v434
    %v509 = vpack.c.b16 %v437, %v436
    %v510 = vpack.c.b16 %v439, %v438
    %v511 = vpack.c.b16 %v441, %v440
    %v512 = vpack.c.b16 %v443, %v442
    %v513 = vpack.c.b16 %v445, %v444
    %v514 = vpack.c.b16 %v447, %v446
    %v515 = vpack.c.b16 %v449, %v448
    %v516 = vpack.c.b16 %v451, %v450
    %v517 = vpack.c.b16 %v453, %v452
    %582 = vmatprep.subr.bf16.mxu0 0
    %583 = vmatpush1.bf16.msra.mxu0 %v454
    %584 = vmatprep.subr.bf16.mxu0 0
    %585 = vmatpush1.bf16.msra.mxu0 %v455
    %586 = vmatprep.subr.bf16.mxu0 0
    %587 = vmatpush1.bf16.msra.mxu0 %v456
    %588 = vmatprep.subr.bf16.mxu0 0
    %589 = vmatpush1.bf16.msra.mxu0 %v457
    %590 = vmatprep.subr.bf16.mxu0 0
    %591 = vmatpush1.bf16.msra.mxu0 %v458
    %592 = vmatprep.subr.bf16.mxu0 0
    %593 = vmatpush1.bf16.msra.mxu0 %v459
    %594 = vmatprep.subr.bf16.mxu0 0
    %595 = vmatpush1.bf16.msra.mxu0 %v460
    %596 = vmatprep.subr.bf16.mxu0 0
    %597 = vmatpush1.bf16.msra.mxu0 %v461
    %598 = vmatprep.subr.bf16.mxu0 0
    %599 = vmatpush1.bf16.msra.mxu0 %v462
    %600 = vmatprep.subr.bf16.mxu0 0
    %601 = vmatpush1.bf16.msra.mxu0 %v463
    %602 = vmatprep.subr.bf16.mxu0 0
    %603 = vmatpush1.bf16.msra.mxu0 %v464
    %604 = vmatprep.subr.bf16.mxu0 0
    %605 = vmatpush1.bf16.msra.mxu0 %v465
    %606 = vmatprep.subr.bf16.mxu0 0
    %607 = vmatpush1.bf16.msra.mxu0 %v466
    %608 = vmatprep.subr.bf16.mxu0 0
    %609 = vmatpush1.bf16.msra.mxu0 %v467
    %610 = vmatprep.subr.bf16.mxu0 0
    %611 = vmatpush1.bf16.msra.mxu0 %v468
    %612 = vmatprep.subr.bf16.mxu0 0
    %613 = vmatpush1.bf16.msra.mxu0 %v469
    %614 = vmatprep.mubr.bf16.mxu0 %v183
    %615 = vmatmul.mubr.bf16.gmra.mrb[0].mxu0 %v182
    %v616 = vpop.f32.mrb[0].mxu0
    %v617 = vadd.f32 %v168, %v616
    %v618 = vpop.f32.mrb[0].mxu0
    %v619 = vpop.f32.mrb[0].mxu0
    %v620 = vpop.f32.mrb[0].mxu0
    %621 = vdwg.mxu0
    %622 = vmatprep.subr.bf16.mxu0 0
    %623 = vmatpush1.bf16.msra.mxu0 %v470
    %624 = vmatprep.subr.bf16.mxu0 0
    %625 = vmatpush1.bf16.msra.mxu0 %v471
    %626 = vmatprep.subr.bf16.mxu0 0
    %627 = vmatpush1.bf16.msra.mxu0 %v472
    %628 = vmatprep.subr.bf16.mxu0 0
    %629 = vmatpush1.bf16.msra.mxu0 %v473
    %630 = vmatprep.subr.bf16.mxu0 0
    %631 = vmatpush1.bf16.msra.mxu0 %v474
    %632 = vmatprep.subr.bf16.mxu0 0
    %633 = vmatpush1.bf16.msra.mxu0 %v475
    %634 = vmatprep.subr.bf16.mxu0 0
    %635 = vmatpush1.bf16.msra.mxu0 %v476
    %636 = vmatprep.subr.bf16.mxu0 0
    %637 = vmatpush1.bf16.msra.mxu0 %v477
    %638 = vmatprep.subr.bf16.mxu0 0
    %639 = vmatpush1.bf16.msra.mxu0 %v478
    %640 = vmatprep.subr.bf16.mxu0 0
    %641 = vmatpush1.bf16.msra.mxu0 %v479
    %642 = vmatprep.subr.bf16.mxu0 0
    %643 = vmatpush1.bf16.msra.mxu0 %v480
    %644 = vmatprep.subr.bf16.mxu0 0
    %645 = vmatpush1.bf16.msra.mxu0 %v481
    %646 = vmatprep.subr.bf16.mxu0 0
    %647 = vmatpush1.bf16.msra.mxu0 %v482
    %648 = vmatprep.subr.bf16.mxu0 0
    %649 = vmatpush1.bf16.msra.mxu0 %v483
    %650 = vmatprep.subr.bf16.mxu0 0
    %651 = vmatpush1.bf16.msra.mxu0 %v484
    %652 = vmatprep.subr.bf16.mxu0 0
    %653 = vmatpush1.bf16.msra.mxu0 %v485
    %654 = vmatprep.mubr.bf16.mxu0 %v185
    %655 = vmatmul.mubr.bf16.gmra.mrb[0].mxu0 %v184
    %v656 = vpop.f32.mrb[0].mxu0
    %v657 = vadd.f32 %v617, %v656
    %v658 = vpop.f32.mrb[0].mxu0
    %v659 = vpop.f32.mrb[0].mxu0
    %v660 = vpop.f32.mrb[0].mxu0
    %661 = vdwg.mxu0
    %662 = vmatprep.subr.bf16.mxu0 0
    %663 = vmatpush1.bf16.msra.mxu0 %v486
    %664 = vmatprep.subr.bf16.mxu0 0
    %665 = vmatpush1.bf16.msra.mxu0 %v487
    %666 = vmatprep.subr.bf16.mxu0 0
    %667 = vmatpush1.bf16.msra.mxu0 %v488
    %668 = vmatprep.subr.bf16.mxu0 0
    %669 = vmatpush1.bf16.msra.mxu0 %v489
    %670 = vmatprep.subr.bf16.mxu0 0
    %671 = vmatpush1.bf16.msra.mxu0 %v490
    %672 = vmatprep.subr.bf16.mxu0 0
    %673 = vmatpush1.bf16.msra.mxu0 %v491
    %674 = vmatprep.subr.bf16.mxu0 0
    %675 = vmatpush1.bf16.msra.mxu0 %v492
    %676 = vmatprep.subr.bf16.mxu0 0
    %677 = vmatpush1.bf16.msra.mxu0 %v493
    %678 = vmatprep.subr.bf16.mxu0 0
    %679 = vmatpush1.bf16.msra.mxu0 %v494
    %680 = vmatprep.subr.bf16.mxu0 0
    %681 = vmatpush1.bf16.msra.mxu0 %v495
    %682 = vmatprep.subr.bf16.mxu0 0
    %683 = vmatpush1.bf16.msra.mxu0 %v496
    %684 = vmatprep.subr.bf16.mxu0 0
    %685 = vmatpush1.bf16.msra.mxu0 %v497
    %686 = vmatprep.subr.bf16.mxu0 0
    %687 = vmatpush1.bf16.msra.mxu0 %v498
    %688 = vmatprep.subr.bf16.mxu0 0
    %689 = vmatpush1.bf16.msra.mxu0 %v499
    %690 = vmatprep.subr.bf16.mxu0 0
    %691 = vmatpush1.bf16.msra.mxu0 %v500
    %692 = vmatprep.subr.bf16.mxu0 0
    %693 = vmatpush1.bf16.msra.mxu0 %v501
    %694 = vmatprep.mubr.bf16.mxu0 %v187
    %695 = vmatmul.mubr.bf16.gmra.mrb[0].mxu0 %v186
    %v696 = vpop.f32.mrb[0].mxu0
    %v697 = vadd.f32 %v657, %v696
    %v698 = vpop.f32.mrb[0].mxu0
    %v699 = vpop.f32.mrb[0].mxu0
    %v700 = vpop.f32.mrb[0].mxu0
    %701 = vdwg.mxu0
    %702 = vmatprep.subr.bf16.mxu0 0
    %703 = vmatpush1.bf16.msra.mxu0 %v502
    %704 = vmatprep.subr.bf16.mxu0 0
    %705 = vmatpush1.bf16.msra.mxu0 %v503
    %706 = vmatprep.subr.bf16.mxu0 0
    %707 = vmatpush1.bf16.msra.mxu0 %v504
    %708 = vmatprep.subr.bf16.mxu0 0
    %709 = vmatpush1.bf16.msra.mxu0 %v505
    %710 = vmatprep.subr.bf16.mxu0 0
    %711 = vmatpush1.bf16.msra.mxu0 %v506
    %712 = vmatprep.subr.bf16.mxu0 0
    %713 = vmatpush1.bf16.msra.mxu0 %v507
    %714 = vmatprep.subr.bf16.mxu0 0
    %715 = vmatpush1.bf16.msra.mxu0 %v508
    %716 = vmatprep.subr.bf16.mxu0 0
    %717 = vmatpush1.bf16.msra.mxu0 %v509
    %718 = vmatprep.subr.bf16.mxu0 0
    %719 = vmatpush1.bf16.msra.mxu0 %v510
    %720 = vmatprep.subr.bf16.mxu0 0
    %721 = vmatpush1.bf16.msra.mxu0 %v511
    %722 = vmatprep.subr.bf16.mxu0 0
    %723 = vmatpush1.bf16.msra.mxu0 %v512
    %724 = vmatprep.subr.bf16.mxu0 0
    %725 = vmatpush1.bf16.msra.mxu0 %v513
    %726 = vmatprep.subr.bf16.mxu0 0
    %727 = vmatpush1.bf16.msra.mxu0 %v514
    %728 = vmatprep.subr.bf16.mxu0 0
    %729 = vmatpush1.bf16.msra.mxu0 %v515
    %730 = vmatprep.subr.bf16.mxu0 0
    %731 = vmatpush1.bf16.msra.mxu0 %v516
    %732 = vmatprep.subr.bf16.mxu0 0
    %733 = vmatpush1.bf16.msra.mxu0 %v517
    %734 = vmatprep.mubr.bf16.mxu0 %v189
    %735 = vmatmul.mubr.bf16.gmra.mrb[0].mxu0 %v188
    %v736 = vpop.f32.mrb[0].mxu0
    %v737 = vadd.f32 %v697, %v736
    %v738 = vpop.f32.mrb[0].mxu0
    %v739 = vpop.f32.mrb[0].mxu0
    %v740 = vpop.f32.mrb[0].mxu0
    %741 = vdwg.mxu0
    %v742 = vmax.f32 %v737, 0.0
    %v743 = vpack.c.bf16 %v742, %v742
    %744 = vst [vmem:[#allocation2] sm:$0xf] %v743
    %v745 = vld [vmem:[%s3] sm:$0xf]
    %v746 = vld [vmem:[%s3 + $0x4] sm:$0xf]
    %v747 = vld [vmem:[%s3 + $0x8] sm:$0xf]
    %v748 = vld [vmem:[%s3 + $0xc] sm:$0xf]
    %v749 = vld [vmem:[%s3 + $0x10] sm:$0xf]
    %v750 = vld [vmem:[%s3 + $0x14] sm:$0xf]
    %v751 = vld [vmem:[%s3 + $0x18] sm:$0xf]
    %v752 = vld [vmem:[%s3 + $0x1c] sm:$0xf]
    %v753 = vld [vmem:[%s3 + $0x20] sm:$0xf]
    %v754 = vld [vmem:[%s3 + $0x24] sm:$0xf]
    %v755 = vld [vmem:[%s3 + $0x28] sm:$0xf]
    %v756 = vld [vmem:[%s3 + $0x2c] sm:$0xf]
    %v757 = vld [vmem:[%s3 + $0x30] sm:$0xf]
    %v758 = vld [vmem:[%s3 + $0x34] sm:$0xf]
    %v759 = vld [vmem:[%s3 + $0x38] sm:$0xf]
    %v760 = vld [vmem:[%s3 + $0x3c] sm:$0xf]
    %v761 = vld [vmem:[%s4] sm:$0x1]
    %v763 = vlaneseq
    %v764 = vshrl.u32 %v763, 7
    %v765 = vsub.s32 0, %v764
    %v766 = vrot.slane %v761, %v765
    %v784 = vunpack.c.l.b16 %v745
    %v785 = vunpack.c.l.b16 %v746
    %v786 = vunpack.c.l.b16 %v747
    %v787 = vunpack.c.l.b16 %v748
    %v788 = vunpack.c.l.b16 %v749
    %v789 = vunpack.c.l.b16 %v750
    %v790 = vunpack.c.l.b16 %v751
    %v791 = vunpack.c.l.b16 %v752
    %v792 = vunpack.c.l.b16 %v753
    %v793 = vunpack.c.l.b16 %v754
    %v794 = vunpack.c.l.b16 %v755
    %v795 = vunpack.c.l.b16 %v756
    %v796 = vunpack.c.l.b16 %v757
    %v797 = vunpack.c.l.b16 %v758
    %v798 = vunpack.c.l.b16 %v759
    %v799 = vunpack.c.l.b16 %v760
    %v800 = vpack.c.b16 %v785, %v784
    %v801 = vpack.c.b16 %v787, %v786
    %v802 = vpack.c.b16 %v789, %v788
    %v803 = vpack.c.b16 %v791, %v790
    %v804 = vpack.c.b16 %v793, %v792
    %v805 = vpack.c.b16 %v795, %v794
    %v806 = vpack.c.b16 %v797, %v796
    %v807 = vpack.c.b16 %v799, %v798
    %816 = vmatprep.subr.bf16.mxu0 0
    %817 = vmatpush1.bf16.msra.mxu0 %v800
    %818 = vmatprep.subr.bf16.mxu0 0
    %819 = vmatpush1.bf16.msra.mxu0 %v801
    %820 = vmatprep.subr.bf16.mxu0 0
    %821 = vmatpush1.bf16.msra.mxu0 %v802
    %822 = vmatprep.subr.bf16.mxu0 0
    %823 = vmatpush1.bf16.msra.mxu0 %v803
    %824 = vmatprep.subr.bf16.mxu0 0
    %825 = vmatpush1.bf16.msra.mxu0 %v804
    %826 = vmatprep.subr.bf16.mxu0 0
    %827 = vmatpush1.bf16.msra.mxu0 %v805
    %828 = vmatprep.subr.bf16.mxu0 0
    %829 = vmatpush1.bf16.msra.mxu0 %v806
    %830 = vmatprep.subr.bf16.mxu0 0
    %831 = vmatpush1.bf16.msra.mxu0 %v807
    %832 = vmatprep.subr.bf16.mxu0 0
    %833 = vmatpush1.bf16.msra.mxu0 0
    %834 = vmatprep.subr.bf16.mxu0 0
    %835 = vmatpush1.bf16.msra.mxu0 0
    %836 = vmatprep.subr.bf16.mxu0 0
    %837 = vmatpush1.bf16.msra.mxu0 0
    %838 = vmatprep.subr.bf16.mxu0 0
    %839 = vmatpush1.bf16.msra.mxu0 0
    %840 = vmatprep.subr.bf16.mxu0 0
    %841 = vmatpush1.bf16.msra.mxu0 0
    %842 = vmatprep.subr.bf16.mxu0 0
    %843 = vmatpush1.bf16.msra.mxu0 0
    %844 = vmatprep.subr.bf16.mxu0 0
    %845 = vmatpush1.bf16.msra.mxu0 0
    %846 = vmatprep.subr.bf16.mxu0 0
    %847 = vmatpush1.bf16.msra.mxu0 0
    %848 = vmatprep.mubr.bf16.mxu0 0
    %849 = vmatmul.mubr.bf16.gmra.mrb[0].mxu0 %v743
    %v850 = vpop.f32.mrb[0].mxu0
    %v851 = vadd.f32 %v766, %v850
    %v852 = vpop.f32.mrb[0].mxu0
    %v853 = vpop.f32.mrb[0].mxu0
    %v854 = vpop.f32.mrb[0].mxu0
    %855 = vdwg.mxu0
    %856 = vst [vmem:[%s8] sm:$0xff] %v851
    %v857 = vpack.c.bf16 %v851, %v851
    %v858 = vld [vmem:[%s5] sm:$0xf]
    %v859 = vld [vmem:[%s5 + $0x4] sm:$0xf]
    %v860 = vld [vmem:[%s5 + $0x8] sm:$0xf]
    %v861 = vld [vmem:[%s5 + $0xc] sm:$0xf]
    %v862 = vld [vmem:[%s5 + $0x10] sm:$0xf]
    %v863 = vld [vmem:[%s5 + $0x14] sm:$0xf]
    %v864 = vld [vmem:[%s5 + $0x18] sm:$0xf]
    %v865 = vld [vmem:[%s5 + $0x1c] sm:$0xf]
    %v866 = vld [vmem:[%s5 + $0x20] sm:$0xf]
    %v867 = vld [vmem:[%s5 + $0x24] sm:$0xf]
    %v868 = vld [vmem:[%s5 + $0x28] sm:$0xf]
    %v869 = vld [vmem:[%s5 + $0x2c] sm:$0xf]
    %v870 = vld [vmem:[%s5 + $0x30] sm:$0xf]
    %v871 = vld [vmem:[%s5 + $0x34] sm:$0xf]
    %v872 = vld [vmem:[%s5 + $0x38] sm:$0xf]
    %v873 = vld [vmem:[%s5 + $0x3c] sm:$0xf]
    %v874 = vld [vmem:[%s6] sm:$0x1]
    %v876 = vlaneseq
    %v877 = vshrl.u32 %v876, 7
    %v878 = vsub.s32 0, %v877
    %v879 = vrot.slane %v874, %v878
    %v897 = vunpack.c.l.b16 %v858
    %v898 = vunpack.c.l.b16 %v859
    %v899 = vunpack.c.l.b16 %v860
    %v900 = vunpack.c.l.b16 %v861
    %v901 = vunpack.c.l.b16 %v862
    %v902 = vunpack.c.l.b16 %v863
    %v903 = vunpack.c.l.b16 %v864
    %v904 = vunpack.c.l.b16 %v865
    %v905 = vunpack.c.l.b16 %v866
    %v906 = vunpack.c.l.b16 %v867
    %v907 = vunpack.c.l.b16 %v868
    %v908 = vunpack.c.l.b16 %v869
    %v909 = vunpack.c.l.b16 %v870
    %v910 = vunpack.c.l.b16 %v871
    %v911 = vunpack.c.l.b16 %v872
    %v912 = vunpack.c.l.b16 %v873
    %v913 = vpack.c.b16 %v898, %v897
    %v914 = vpack.c.b16 %v900, %v899
    %v915 = vpack.c.b16 %v902, %v901
    %v916 = vpack.c.b16 %v904, %v903
    %v917 = vpack.c.b16 %v906, %v905
    %v918 = vpack.c.b16 %v908, %v907
    %v919 = vpack.c.b16 %v910, %v909
    %v920 = vpack.c.b16 %v912, %v911
    %929 = vmatprep.subr.bf16.mxu0 0
    %930 = vmatpush1.bf16.msra.mxu0 %v913
    %931 = vmatprep.subr.bf16.mxu0 0
    %932 = vmatpush1.bf16.msra.mxu0 %v914
    %933 = vmatprep.subr.bf16.mxu0 0
    %934 = vmatpush1.bf16.msra.mxu0 %v915
    %935 = vmatprep.subr.bf16.mxu0 0
    %936 = vmatpush1.bf16.msra.mxu0 %v916
    %937 = vmatprep.subr.bf16.mxu0 0
    %938 = vmatpush1.bf16.msra.mxu0 %v917
    %939 = vmatprep.subr.bf16.mxu0 0
    %940 = vmatpush1.bf16.msra.mxu0 %v918
    %941 = vmatprep.subr.bf16.mxu0 0
    %942 = vmatpush1.bf16.msra.mxu0 %v919
    %943 = vmatprep.subr.bf16.mxu0 0
    %944 = vmatpush1.bf16.msra.mxu0 %v920
    %945 = vmatprep.subr.bf16.mxu0 0
    %946 = vmatpush1.bf16.msra.mxu0 0
    %947 = vmatprep.subr.bf16.mxu0 0
    %948 = vmatpush1.bf16.msra.mxu0 0
    %949 = vmatprep.subr.bf16.mxu0 0
    %950 = vmatpush1.bf16.msra.mxu0 0
    %951 = vmatprep.subr.bf16.mxu0 0
    %952 = vmatpush1.bf16.msra.mxu0 0
    %953 = vmatprep.subr.bf16.mxu0 0
    %954 = vmatpush1.bf16.msra.mxu0 0
    %955 = vmatprep.subr.bf16.mxu0 0
    %956 = vmatpush1.bf16.msra.mxu0 0
    %957 = vmatprep.subr.bf16.mxu0 0
    %958 = vmatpush1.bf16.msra.mxu0 0
    %959 = vmatprep.subr.bf16.mxu0 0
    %960 = vmatpush1.bf16.msra.mxu0 0
    %961 = vmatprep.mubr.bf16.mxu0 0
    %962 = vmatmul.mubr.bf16.gmra.mrb[0].mxu0 %v857
    %v963 = vpop.f32.mrb[0].mxu0
    %v964 = vadd.f32 %v879, %v963
    %v965 = vpop.f32.mrb[0].mxu0
    %v966 = vpop.f32.mrb[0].mxu0
    %v967 = vpop.f32.mrb[0].mxu0
    %968 = vdwg.mxu0
    %969 = vst [vmem:[%s9] sm:$0xff] %v964
    // Predicated region
    $region30: #{transport_jac_forward.6} parent=1 // pred_check
      _
    $region31: #{transport_jac_forward.6} parent=1 // pred_check_branch
      %971 = sbr.rel (0) target = $region33
    $region32: #{transport_jac_forward.6} parent=1 // pred_region
      %s973 = ssub.s32 64, 64
      %974 = vsyncadd [#allocation3], %s973
      %s976 = sshll.u32 [#allocation2], 4
      %s977 = int_to_ptr.vmem [resolvable:$true] %s976
      %979 = dma.vmem_to_hbm [thread:$0]  %s977, 64, %s7, [#allocation3]
    $region33: #{transport_jac_forward.6} parent=1 // pred_fallthru
      _
    // Predicated region
    $region34: #{transport_jac_forward.6} parent=1 // pred_check
      _
    $region35: #{transport_jac_forward.6} parent=1 // pred_check_branch
      %981 = sbr.rel (0) target = $region37
    $region36: #{transport_jac_forward.6} parent=1 // pred_region
      _
    $region37: #{transport_jac_forward.6} parent=1 // pred_fallthru
      _
    // Predicated region
    $region38: #{transport_jac_forward.6} parent=1 // pred_check
      _
    $region39: #{transport_jac_forward.6} parent=1 // pred_check_branch
      %983 = sbr.rel (0) target = $region41
    $region40: #{transport_jac_forward.6} parent=1 // pred_region
      _
    $region41: #{transport_jac_forward.6} parent=1 // pred_fallthru
      _
    // Predicated region
    $region42: #{transport_jac_forward.6} parent=1 // pred_check
      _
    $region43: #{transport_jac_forward.6} parent=1 // pred_check_branch
      %985 = sbr.rel (0) target = $region45
    $region44: #{transport_jac_forward.6} parent=1 // pred_region
      %986 = dma.done [#allocation3], 64
    $region45: #{transport_jac_forward.6} parent=1 // pred_fallthru
      _
    // Predicated region
    $region46: #{transport_jac_forward.6} parent=1 // pred_check
      _
    $region47: #{transport_jac_forward.6} parent=1 // pred_check_branch
      %988 = sbr.rel (0) target = $region49
    $region48: #{transport_jac_forward.6} parent=1 // pred_region
      _
    $region49: #{transport_jac_forward.6} parent=1 // pred_fallthru
      _
    // Predicated region
    $region50: #{transport_jac_forward.6} parent=1 // pred_check
      _
    $region51: #{transport_jac_forward.6} parent=1 // pred_check_branch
      %990 = sbr.rel (0) target = $region53
    $region52: #{transport_jac_forward.6} parent=1 // pred_region
      _
    $region53: #{transport_jac_forward.6} parent=1 // pred_fallthru
      _
    %991 = vsyncpa [#allocation3], 1

// kernel: transport_jac_forward.10
$region0: #{transport_jac_forward.10}
  #allocation0 [shape = 'u32[]', space=smem, size = 0x4, offset = 0x4, fixed_abs, tag = 'smem constant byte address 0x4 - core index']
  #allocation1 [shape = 'u32[144,128]{1,0:T(1,128)}', space=vmem, size = 0x12000, scoped, tag = 'internal scratch']
  %s0 = inlined_call_operand.vmem [shape: f32[8,128], index: 0, kind: input, shape index: {}]
  %s1 = inlined_call_operand.vmem [shape: f32[8,128], index: 1, kind: input, shape index: {}]
  %s2 = inlined_call_operand.vmem [shape: f32[1,128], index: 2, kind: output, shape index: {}]
  %s3 = sld [smem:[#allocation0]]
  $region18: #{transport_jac_forward.10} parent=0
    _
  %s5 = ssub.s32 1, %s3
  %s6 = scalar_select 0, %s5, %s3
  // Predicated region
  $region2: #{transport_jac_forward.10} parent=0 // pred_check
    _
  $region3: #{transport_jac_forward.10} parent=0 // pred_check_branch
    %8 = sbr.rel (0) target = $region5
  $region4: #{transport_jac_forward.10} parent=0 // pred_region
    _
  $region5: #{transport_jac_forward.10} parent=0 // pred_fallthru
    _
  // Predicated region
  $region6: #{transport_jac_forward.10} parent=0 // pred_check
    _
  $region7: #{transport_jac_forward.10} parent=0 // pred_check_branch
    %10 = sbr.rel (0) target = $region9
  $region8: #{transport_jac_forward.10} parent=0 // pred_region
    _
  $region9: #{transport_jac_forward.10} parent=0 // pred_fallthru
    _
  %v11 = vld [vmem:[%s0] sm:$0xff]
  %v12 = vld [vmem:[%s1] sm:$0xff]
  %v13 = vsub.f32 %v11, %v12
  %v14 = vmul.f32 %v13, %v13
  %v15 = vrot.slane %v14, 4
  %v16 = vadd.f32 %v14, %v15
  %v17 = vrot.slane %v16, 2
  %v18 = vadd.f32 %v16, %v17
  %v19 = vrot.slane %v18, 1
  %v20 = vadd.f32 %v18, %v19
  %v21 = vrcp.pop 8.0
  %v22 = vmul.f32 %v20, %v21
  %23 = vst [vmem:[%s2] sm:$0x1] %v22
  // Predicated region
  $region10: #{transport_jac_forward.10} parent=0 // pred_check
    _
  $region11: #{transport_jac_forward.10} parent=0 // pred_check_branch
    %25 = sbr.rel (0) target = $region13
  $region12: #{transport_jac_forward.10} parent=0 // pred_region
    _
  $region13: #{transport_jac_forward.10} parent=0 // pred_fallthru
    _
  // Predicated region
  $region14: #{transport_jac_forward.10} parent=0 // pred_check
    _
  $region15: #{transport_jac_forward.10} parent=0 // pred_check_branch
    %27 = sbr.rel (0) target = $region17
  $region16: #{transport_jac_forward.10} parent=0 // pred_region
    _
  $region17: #{transport_jac_forward.10} parent=0 // pred_fallthru
    _

// kernel: transport_jac_forward.11
$region0: #{transport_jac_forward.11}
  #allocation0 [shape = 'u32[]', space=smem, size = 0x4, offset = 0x4, fixed_abs, tag = 'smem constant byte address 0x4 - core index']
  #allocation1 [shape = 'u32[144,128]{1,0:T(1,128)}', space=vmem, size = 0x12000, scoped, tag = 'internal scratch']
  %s0 = inlined_call_operand.vmem [shape: bf16[8,128], index: 0, kind: input, shape index: {}]
  %s1 = inlined_call_operand.vmem [shape: bf16[8,128], index: 1, kind: input, shape index: {}]
  %s2 = inlined_call_operand.vmem [shape: bf16[1024,128], index: 2, kind: input, shape index: {}]
  %s3 = inlined_call_operand.vmem [shape: bf16[128,128], index: 3, kind: input, shape index: {}]
  %s4 = inlined_call_operand.hbm [shape: f32[1,1], index: 4, kind: output, shape index: {}]
  %s5 = sld [smem:[#allocation0]]
  $region26: #{transport_jac_forward.11} parent=0
    _
  %s7 = ssub.s32 1, %s5
  %s8 = scalar_select 0, %s7, %s5
  $region1: #{transport_jac_forward.11} parent=0
    #allocation2 [shape = 'u8[512]{0}', space=vmem, size = 0x400, scoped, tag = 'output window, operand 0, single buffered']
    #allocation3 [shape = 's32[1]{0}', space=sflag, size = 0x4, scoped, tag = 'scoped memory for transport_jac_forward.11']
    %9 = vsyncpa [#allocation3], 0
    // Predicated region
    $region2: #{transport_jac_forward.11} parent=1 // pred_check
      _
    $region3: #{transport_jac_forward.11} parent=1 // pred_check_branch
      %11 = sbr.rel (0) target = $region5
    $region4: #{transport_jac_forward.11} parent=1 // pred_region
      _
    $region5: #{transport_jac_forward.11} parent=1 // pred_fallthru
      _
    // Predicated region
    $region6: #{transport_jac_forward.11} parent=1 // pred_check
      _
    $region7: #{transport_jac_forward.11} parent=1 // pred_check_branch
      %13 = sbr.rel (0) target = $region9
    $region8: #{transport_jac_forward.11} parent=1 // pred_region
      _
    $region9: #{transport_jac_forward.11} parent=1 // pred_fallthru
      _
    // Predicated region
    $region10: #{transport_jac_forward.11} parent=1 // pred_check
      _
    $region11: #{transport_jac_forward.11} parent=1 // pred_check_branch
      %15 = sbr.rel (0) target = $region13
    $region12: #{transport_jac_forward.11} parent=1 // pred_region
      _
    $region13: #{transport_jac_forward.11} parent=1 // pred_fallthru
      _
    // Predicated region
    $region14: #{transport_jac_forward.11} parent=1 // pred_check
      _
    $region15: #{transport_jac_forward.11} parent=1 // pred_check_branch
      %17 = sbr.rel (0) target = $region17
    $region16: #{transport_jac_forward.11} parent=1 // pred_region
      _
    $region17: #{transport_jac_forward.11} parent=1 // pred_fallthru
      _
    %v21 = vld [vmem:[%s0] sm:$0xf]
    %v22 = vld [vmem:[%s3] sm:$0xf]
    %v23 = vld [vmem:[%s3 + $0x4] sm:$0xf]
    %v24 = vld [vmem:[%s3 + $0x8] sm:$0xf]
    %v25 = vld [vmem:[%s3 + $0xc] sm:$0xf]
    %v26 = vld [vmem:[%s3 + $0x10] sm:$0xf]
    %v27 = vld [vmem:[%s3 + $0x14] sm:$0xf]
    %v28 = vld [vmem:[%s3 + $0x18] sm:$0xf]
    %v29 = vld [vmem:[%s3 + $0x1c] sm:$0xf]
    %v30 = vld [vmem:[%s3 + $0x20] sm:$0xf]
    %v31 = vld [vmem:[%s3 + $0x24] sm:$0xf]
    %v32 = vld [vmem:[%s3 + $0x28] sm:$0xf]
    %v33 = vld [vmem:[%s3 + $0x2c] sm:$0xf]
    %v34 = vld [vmem:[%s3 + $0x30] sm:$0xf]
    %v35 = vld [vmem:[%s3 + $0x34] sm:$0xf]
    %v36 = vld [vmem:[%s3 + $0x38] sm:$0xf]
    %v37 = vld [vmem:[%s3 + $0x3c] sm:$0xf]
    %v54 = vunpack.c.l.b16 %v22
    %v55 = vunpack.c.l.b16 %v23
    %v56 = vunpack.c.l.b16 %v24
    %v57 = vunpack.c.l.b16 %v25
    %v58 = vunpack.c.l.b16 %v26
    %v59 = vunpack.c.l.b16 %v27
    %v60 = vunpack.c.l.b16 %v28
    %v61 = vunpack.c.l.b16 %v29
    %v62 = vunpack.c.l.b16 %v30
    %v63 = vunpack.c.l.b16 %v31
    %v64 = vunpack.c.l.b16 %v32
    %v65 = vunpack.c.l.b16 %v33
    %v66 = vunpack.c.l.b16 %v34
    %v67 = vunpack.c.l.b16 %v35
    %v68 = vunpack.c.l.b16 %v36
    %v69 = vunpack.c.l.b16 %v37
    %v70 = vpack.c.b16 %v55, %v54
    %v71 = vpack.c.b16 %v57, %v56
    %v72 = vpack.c.b16 %v59, %v58
    %v73 = vpack.c.b16 %v61, %v60
    %v74 = vpack.c.b16 %v63, %v62
    %v75 = vpack.c.b16 %v65, %v64
    %v76 = vpack.c.b16 %v67, %v66
    %v77 = vpack.c.b16 %v69, %v68
    %86 = vmatprep.subr.bf16.mxu0 0
    %87 = vmatpush1.bf16.xpose.msra.mxu0 %v70
    %88 = vmatprep.subr.bf16.mxu0 0
    %89 = vmatpush1.bf16.xpose.msra.mxu0 %v71
    %90 = vmatprep.subr.bf16.mxu0 0
    %91 = vmatpush1.bf16.xpose.msra.mxu0 %v72
    %92 = vmatprep.subr.bf16.mxu0 0
    %93 = vmatpush1.bf16.xpose.msra.mxu0 %v73
    %94 = vmatprep.subr.bf16.mxu0 0
    %95 = vmatpush1.bf16.xpose.msra.mxu0 %v74
    %96 = vmatprep.subr.bf16.mxu0 0
    %97 = vmatpush1.bf16.xpose.msra.mxu0 %v75
    %98 = vmatprep.subr.bf16.mxu0 0
    %99 = vmatpush1.bf16.xpose.msra.mxu0 %v76
    %100 = vmatprep.subr.bf16.mxu0 0
    %101 = vmatpush1.bf16.xpose.msra.mxu0 %v77
    %102 = vmatprep.subr.bf16.mxu0 0
    %103 = vmatpush1.bf16.xpose.msra.mxu0 0
    %104 = vmatprep.subr.bf16.mxu0 0
    %105 = vmatpush1.bf16.xpose.msra.mxu0 0
    %106 = vmatprep.subr.bf16.mxu0 0
    %107 = vmatpush1.bf16.xpose.msra.mxu0 0
    %108 = vmatprep.subr.bf16.mxu0 0
    %109 = vmatpush1.bf16.xpose.msra.mxu0 0
    %110 = vmatprep.subr.bf16.mxu0 0
    %111 = vmatpush1.bf16.xpose.msra.mxu0 0
    %112 = vmatprep.subr.bf16.mxu0 0
    %113 = vmatpush1.bf16.xpose.msra.mxu0 0
    %114 = vmatprep.subr.bf16.mxu0 0
    %115 = vmatpush1.bf16.xpose.msra.mxu0 0
    %116 = vmatprep.subr.bf16.mxu0 0
    %117 = vmatpush1.bf16.xpose.msra.mxu0 0
    %118 = vmatprep.mubr.bf16.mxu0 0
    %119 = vmatmul.mubr.bf16.gmra.mrb[0].mxu0 %v21
    %v120 = vpop.f32.mrb[0].mxu0
    %v121 = vadd.f32 0.0, %v120
    %v122 = vpop.f32.mrb[0].mxu0
    %v123 = vpop.f32.mrb[0].mxu0
    %v124 = vpop.f32.mrb[0].mxu0
    %125 = vdwg.mxu0
    %v126 = vld [vmem:[%s1] sm:$0xf]
    %vm127 = vcmp.gt.bf16.partialorder %v126, 0
    %v128 = vsel %vm127, 65537, 0
    %v129 = vunpack.c.l.b16 %v128
    %vm130 = vcmp.ne.s32.totalorder %v129, 0
    %v131 = vsel %vm130, %v121, 0.0
    %v132 = vpack.c.bf16 %v131, %v131
    %v133 = vld [vmem:[%s2] sm:$0xf]
    %v134 = vld [vmem:[%s2 + $0x4] sm:$0xf]
    %v135 = vld [vmem:[%s2 + $0x8] sm:$0xf]
    %v136 = vld [vmem:[%s2 + $0xc] sm:$0xf]
    %v137 = vld [vmem:[%s2 + $0x10] sm:$0xf]
    %v138 = vld [vmem:[%s2 + $0x14] sm:$0xf]
    %v139 = vld [vmem:[%s2 + $0x18] sm:$0xf]
    %v140 = vld [vmem:[%s2 + $0x1c] sm:$0xf]
    %v141 = vld [vmem:[%s2 + $0x20] sm:$0xf]
    %v142 = vld [vmem:[%s2 + $0x24] sm:$0xf]
    %v143 = vld [vmem:[%s2 + $0x28] sm:$0xf]
    %v144 = vld [vmem:[%s2 + $0x2c] sm:$0xf]
    %v145 = vld [vmem:[%s2 + $0x30] sm:$0xf]
    %v146 = vld [vmem:[%s2 + $0x34] sm:$0xf]
    %v147 = vld [vmem:[%s2 + $0x38] sm:$0xf]
    %v148 = vld [vmem:[%s2 + $0x3c] sm:$0xf]
    %v149 = vld [vmem:[%s2 + $0x40] sm:$0xf]
    %v150 = vld [vmem:[%s2 + $0x44] sm:$0xf]
    %v151 = vld [vmem:[%s2 + $0x48] sm:$0xf]
    %v152 = vld [vmem:[%s2 + $0x4c] sm:$0xf]
    %v153 = vld [vmem:[%s2 + $0x50] sm:$0xf]
    %v154 = vld [vmem:[%s2 + $0x54] sm:$0xf]
    %v155 = vld [vmem:[%s2 + $0x58] sm:$0xf]
    %v156 = vld [vmem:[%s2 + $0x5c] sm:$0xf]
    %v157 = vld [vmem:[%s2 + $0x60] sm:$0xf]
    %v158 = vld [vmem:[%s2 + $0x64] sm:$0xf]
    %v159 = vld [vmem:[%s2 + $0x68] sm:$0xf]
    %v160 = vld [vmem:[%s2 + $0x6c] sm:$0xf]
    %v161 = vld [vmem:[%s2 + $0x70] sm:$0xf]
    %v162 = vld [vmem:[%s2 + $0x74] sm:$0xf]
    %v163 = vld [vmem:[%s2 + $0x78] sm:$0xf]
    %v164 = vld [vmem:[%s2 + $0x7c] sm:$0xf]
    %v165 = vld [vmem:[%s2 + $0x80] sm:$0xf]
    %v166 = vld [vmem:[%s2 + $0x84] sm:$0xf]
    %v167 = vld [vmem:[%s2 + $0x88] sm:$0xf]
    %v168 = vld [vmem:[%s2 + $0x8c] sm:$0xf]
    %v169 = vld [vmem:[%s2 + $0x90] sm:$0xf]
    %v170 = vld [vmem:[%s2 + $0x94] sm:$0xf]
    %v171 = vld [vmem:[%s2 + $0x98] sm:$0xf]
    %v172 = vld [vmem:[%s2 + $0x9c] sm:$0xf]
    %v173 = vld [vmem:[%s2 + $0xa0] sm:$0xf]
    %v174 = vld [vmem:[%s2 + $0xa4] sm:$0xf]
    %v175 = vld [vmem:[%s2 + $0xa8] sm:$0xf]
    %v176 = vld [vmem:[%s2 + $0xac] sm:$0xf]
    %v177 = vld [vmem:[%s2 + $0xb0] sm:$0xf]
    %v178 = vld [vmem:[%s2 + $0xb4] sm:$0xf]
    %v179 = vld [vmem:[%s2 + $0xb8] sm:$0xf]
    %v180 = vld [vmem:[%s2 + $0xbc] sm:$0xf]
    %v181 = vld [vmem:[%s2 + $0xc0] sm:$0xf]
    %v182 = vld [vmem:[%s2 + $0xc4] sm:$0xf]
    %v183 = vld [vmem:[%s2 + $0xc8] sm:$0xf]
    %v184 = vld [vmem:[%s2 + $0xcc] sm:$0xf]
    %v185 = vld [vmem:[%s2 + $0xd0] sm:$0xf]
    %v186 = vld [vmem:[%s2 + $0xd4] sm:$0xf]
    %v187 = vld [vmem:[%s2 + $0xd8] sm:$0xf]
    %v188 = vld [vmem:[%s2 + $0xdc] sm:$0xf]
    %v189 = vld [vmem:[%s2 + $0xe0] sm:$0xf]
    %v190 = vld [vmem:[%s2 + $0xe4] sm:$0xf]
    %v191 = vld [vmem:[%s2 + $0xe8] sm:$0xf]
    %v192 = vld [vmem:[%s2 + $0xec] sm:$0xf]
    %v193 = vld [vmem:[%s2 + $0xf0] sm:$0xf]
    %v194 = vld [vmem:[%s2 + $0xf4] sm:$0xf]
    %v195 = vld [vmem:[%s2 + $0xf8] sm:$0xf]
    %v196 = vld [vmem:[%s2 + $0xfc] sm:$0xf]
    %v197 = vld [vmem:[%s2 + $0x100] sm:$0xf]
    %v198 = vld [vmem:[%s2 + $0x104] sm:$0xf]
    %v199 = vld [vmem:[%s2 + $0x108] sm:$0xf]
    %v200 = vld [vmem:[%s2 + $0x10c] sm:$0xf]
    %v201 = vld [vmem:[%s2 + $0x110] sm:$0xf]
    %v202 = vld [vmem:[%s2 + $0x114] sm:$0xf]
    %v203 = vld [vmem:[%s2 + $0x118] sm:$0xf]
    %v204 = vld [vmem:[%s2 + $0x11c] sm:$0xf]
    %v205 = vld [vmem:[%s2 + $0x120] sm:$0xf]
    %v206 = vld [vmem:[%s2 + $0x124] sm:$0xf]
    %v207 = vld [vmem:[%s2 + $0x128] sm:$0xf]
    %v208 = vld [vmem:[%s2 + $0x12c] sm:$0xf]
    %v209 = vld [vmem:[%s2 + $0x130] sm:$0xf]
    %v210 = vld [vmem:[%s2 + $0x134] sm:$0xf]
    %v211 = vld [vmem:[%s2 + $0x138] sm:$0xf]
    %v212 = vld [vmem:[%s2 + $0x13c] sm:$0xf]
    %v213 = vld [vmem:[%s2 + $0x140] sm:$0xf]
    %v214 = vld [vmem:[%s2 + $0x144] sm:$0xf]
    %v215 = vld [vmem:[%s2 + $0x148] sm:$0xf]
    %v216 = vld [vmem:[%s2 + $0x14c] sm:$0xf]
    %v217 = vld [vmem:[%s2 + $0x150] sm:$0xf]
    %v218 = vld [vmem:[%s2 + $0x154] sm:$0xf]
    %v219 = vld [vmem:[%s2 + $0x158] sm:$0xf]
    %v220 = vld [vmem:[%s2 + $0x15c] sm:$0xf]
    %v221 = vld [vmem:[%s2 + $0x160] sm:$0xf]
    %v222 = vld [vmem:[%s2 + $0x164] sm:$0xf]
    %v223 = vld [vmem:[%s2 + $0x168] sm:$0xf]
    %v224 = vld [vmem:[%s2 + $0x16c] sm:$0xf]
    %v225 = vld [vmem:[%s2 + $0x170] sm:$0xf]
    %v226 = vld [vmem:[%s2 + $0x174] sm:$0xf]
    %v227 = vld [vmem:[%s2 + $0x178] sm:$0xf]
    %v228 = vld [vmem:[%s2 + $0x17c] sm:$0xf]
    %v229 = vld [vmem:[%s2 + $0x180] sm:$0xf]
    %v230 = vld [vmem:[%s2 + $0x184] sm:$0xf]
    %v231 = vld [vmem:[%s2 + $0x188] sm:$0xf]
    %v232 = vld [vmem:[%s2 + $0x18c] sm:$0xf]
    %v233 = vld [vmem:[%s2 + $0x190] sm:$0xf]
    %v234 = vld [vmem:[%s2 + $0x194] sm:$0xf]
    %v235 = vld [vmem:[%s2 + $0x198] sm:$0xf]
    %v236 = vld [vmem:[%s2 + $0x19c] sm:$0xf]
    %v237 = vld [vmem:[%s2 + $0x1a0] sm:$0xf]
    %v238 = vld [vmem:[%s2 + $0x1a4] sm:$0xf]
    %v239 = vld [vmem:[%s2 + $0x1a8] sm:$0xf]
    %v240 = vld [vmem:[%s2 + $0x1ac] sm:$0xf]
    %v241 = vld [vmem:[%s2 + $0x1b0] sm:$0xf]
    %v242 = vld [vmem:[%s2 + $0x1b4] sm:$0xf]
    %v243 = vld [vmem:[%s2 + $0x1b8] sm:$0xf]
    %v244 = vld [vmem:[%s2 + $0x1bc] sm:$0xf]
    %v245 = vld [vmem:[%s2 + $0x1c0] sm:$0xf]
    %v246 = vld [vmem:[%s2 + $0x1c4] sm:$0xf]
    %v247 = vld [vmem:[%s2 + $0x1c8] sm:$0xf]
    %v248 = vld [vmem:[%s2 + $0x1cc] sm:$0xf]
    %v249 = vld [vmem:[%s2 + $0x1d0] sm:$0xf]
    %v250 = vld [vmem:[%s2 + $0x1d4] sm:$0xf]
    %v251 = vld [vmem:[%s2 + $0x1d8] sm:$0xf]
    %v252 = vld [vmem:[%s2 + $0x1dc] sm:$0xf]
    %v253 = vld [vmem:[%s2 + $0x1e0] sm:$0xf]
    %v254 = vld [vmem:[%s2 + $0x1e4] sm:$0xf]
    %v255 = vld [vmem:[%s2 + $0x1e8] sm:$0xf]
    %v256 = vld [vmem:[%s2 + $0x1ec] sm:$0xf]
    %v257 = vld [vmem:[%s2 + $0x1f0] sm:$0xf]
    %v258 = vld [vmem:[%s2 + $0x1f4] sm:$0xf]
    %v259 = vld [vmem:[%s2 + $0x1f8] sm:$0xf]
    %v260 = vld [vmem:[%s2 + $0x1fc] sm:$0xf]
    %v389 = vunpack.c.l.b16 %v133
    %v390 = vunpack.c.l.b16 %v134
    %v391 = vunpack.c.l.b16 %v135
    %v392 = vunpack.c.l.b16 %v136
    %v393 = vunpack.c.l.b16 %v137
    %v394 = vunpack.c.l.b16 %v138
    %v395 = vunpack.c.l.b16 %v139
    %v396 = vunpack.c.l.b16 %v140
    %v397 = vunpack.c.l.b16 %v141
    %v398 = vunpack.c.l.b16 %v142
    %v399 = vunpack.c.l.b16 %v143
    %v400 = vunpack.c.l.b16 %v144
    %v401 = vunpack.c.l.b16 %v145
    %v402 = vunpack.c.l.b16 %v146
    %v403 = vunpack.c.l.b16 %v147
    %v404 = vunpack.c.l.b16 %v148
    %v405 = vunpack.c.l.b16 %v149
    %v406 = vunpack.c.l.b16 %v150
    %v407 = vunpack.c.l.b16 %v151
    %v408 = vunpack.c.l.b16 %v152
    %v409 = vunpack.c.l.b16 %v153
    %v410 = vunpack.c.l.b16 %v154
    %v411 = vunpack.c.l.b16 %v155
    %v412 = vunpack.c.l.b16 %v156
    %v413 = vunpack.c.l.b16 %v157
    %v414 = vunpack.c.l.b16 %v158
    %v415 = vunpack.c.l.b16 %v159
    %v416 = vunpack.c.l.b16 %v160
    %v417 = vunpack.c.l.b16 %v161
    %v418 = vunpack.c.l.b16 %v162
    %v419 = vunpack.c.l.b16 %v163
    %v420 = vunpack.c.l.b16 %v164
    %v421 = vunpack.c.l.b16 %v165
    %v422 = vunpack.c.l.b16 %v166
    %v423 = vunpack.c.l.b16 %v167
    %v424 = vunpack.c.l.b16 %v168
    %v425 = vunpack.c.l.b16 %v169
    %v426 = vunpack.c.l.b16 %v170
    %v427 = vunpack.c.l.b16 %v171
    %v428 = vunpack.c.l.b16 %v172
    %v429 = vunpack.c.l.b16 %v173
    %v430 = vunpack.c.l.b16 %v174
    %v431 = vunpack.c.l.b16 %v175
    %v432 = vunpack.c.l.b16 %v176
    %v433 = vunpack.c.l.b16 %v177
    %v434 = vunpack.c.l.b16 %v178
    %v435 = vunpack.c.l.b16 %v179
    %v436 = vunpack.c.l.b16 %v180
    %v437 = vunpack.c.l.b16 %v181
    %v438 = vunpack.c.l.b16 %v182
    %v439 = vunpack.c.l.b16 %v183
    %v440 = vunpack.c.l.b16 %v184
    %v441 = vunpack.c.l.b16 %v185
    %v442 = vunpack.c.l.b16 %v186
    %v443 = vunpack.c.l.b16 %v187
    %v444 = vunpack.c.l.b16 %v188
    %v445 = vunpack.c.l.b16 %v189
    %v446 = vunpack.c.l.b16 %v190
    %v447 = vunpack.c.l.b16 %v191
    %v448 = vunpack.c.l.b16 %v192
    %v449 = vunpack.c.l.b16 %v193
    %v450 = vunpack.c.l.b16 %v194
    %v451 = vunpack.c.l.b16 %v195
    %v452 = vunpack.c.l.b16 %v196
    %v453 = vunpack.c.l.b16 %v197
    %v454 = vunpack.c.l.b16 %v198
    %v455 = vunpack.c.l.b16 %v199
    %v456 = vunpack.c.l.b16 %v200
    %v457 = vunpack.c.l.b16 %v201
    %v458 = vunpack.c.l.b16 %v202
    %v459 = vunpack.c.l.b16 %v203
    %v460 = vunpack.c.l.b16 %v204
    %v461 = vunpack.c.l.b16 %v205
    %v462 = vunpack.c.l.b16 %v206
    %v463 = vunpack.c.l.b16 %v207
    %v464 = vunpack.c.l.b16 %v208
    %v465 = vunpack.c.l.b16 %v209
    %v466 = vunpack.c.l.b16 %v210
    %v467 = vunpack.c.l.b16 %v211
    %v468 = vunpack.c.l.b16 %v212
    %v469 = vunpack.c.l.b16 %v213
    %v470 = vunpack.c.l.b16 %v214
    %v471 = vunpack.c.l.b16 %v215
    %v472 = vunpack.c.l.b16 %v216
    %v473 = vunpack.c.l.b16 %v217
    %v474 = vunpack.c.l.b16 %v218
    %v475 = vunpack.c.l.b16 %v219
    %v476 = vunpack.c.l.b16 %v220
    %v477 = vunpack.c.l.b16 %v221
    %v478 = vunpack.c.l.b16 %v222
    %v479 = vunpack.c.l.b16 %v223
    %v480 = vunpack.c.l.b16 %v224
    %v481 = vunpack.c.l.b16 %v225
    %v482 = vunpack.c.l.b16 %v226
    %v483 = vunpack.c.l.b16 %v227
    %v484 = vunpack.c.l.b16 %v228
    %v485 = vunpack.c.l.b16 %v229
    %v486 = vunpack.c.l.b16 %v230
    %v487 = vunpack.c.l.b16 %v231
    %v488 = vunpack.c.l.b16 %v232
    %v489 = vunpack.c.l.b16 %v233
    %v490 = vunpack.c.l.b16 %v234
    %v491 = vunpack.c.l.b16 %v235
    %v492 = vunpack.c.l.b16 %v236
    %v493 = vunpack.c.l.b16 %v237
    %v494 = vunpack.c.l.b16 %v238
    %v495 = vunpack.c.l.b16 %v239
    %v496 = vunpack.c.l.b16 %v240
    %v497 = vunpack.c.l.b16 %v241
    %v498 = vunpack.c.l.b16 %v242
    %v499 = vunpack.c.l.b16 %v243
    %v500 = vunpack.c.l.b16 %v244
    %v501 = vunpack.c.l.b16 %v245
    %v502 = vunpack.c.l.b16 %v246
    %v503 = vunpack.c.l.b16 %v247
    %v504 = vunpack.c.l.b16 %v248
    %v505 = vunpack.c.l.b16 %v249
    %v506 = vunpack.c.l.b16 %v250
    %v507 = vunpack.c.l.b16 %v251
    %v508 = vunpack.c.l.b16 %v252
    %v509 = vunpack.c.l.b16 %v253
    %v510 = vunpack.c.l.b16 %v254
    %v511 = vunpack.c.l.b16 %v255
    %v512 = vunpack.c.l.b16 %v256
    %v513 = vunpack.c.l.b16 %v257
    %v514 = vunpack.c.l.b16 %v258
    %v515 = vunpack.c.l.b16 %v259
    %v516 = vunpack.c.l.b16 %v260
    %v517 = vpack.c.b16 %v390, %v389
    %v518 = vpack.c.b16 %v392, %v391
    %v519 = vpack.c.b16 %v394, %v393
    %v520 = vpack.c.b16 %v396, %v395
    %v521 = vpack.c.b16 %v398, %v397
    %v522 = vpack.c.b16 %v400, %v399
    %v523 = vpack.c.b16 %v402, %v401
    %v524 = vpack.c.b16 %v404, %v403
    %v525 = vpack.c.b16 %v406, %v405
    %v526 = vpack.c.b16 %v408, %v407
    %v527 = vpack.c.b16 %v410, %v409
    %v528 = vpack.c.b16 %v412, %v411
    %v529 = vpack.c.b16 %v414, %v413
    %v530 = vpack.c.b16 %v416, %v415
    %v531 = vpack.c.b16 %v418, %v417
    %v532 = vpack.c.b16 %v420, %v419
    %v533 = vpack.c.b16 %v422, %v421
    %v534 = vpack.c.b16 %v424, %v423
    %v535 = vpack.c.b16 %v426, %v425
    %v536 = vpack.c.b16 %v428, %v427
    %v537 = vpack.c.b16 %v430, %v429
    %v538 = vpack.c.b16 %v432, %v431
    %v539 = vpack.c.b16 %v434, %v433
    %v540 = vpack.c.b16 %v436, %v435
    %v541 = vpack.c.b16 %v438, %v437
    %v542 = vpack.c.b16 %v440, %v439
    %v543 = vpack.c.b16 %v442, %v441
    %v544 = vpack.c.b16 %v444, %v443
    %v545 = vpack.c.b16 %v446, %v445
    %v546 = vpack.c.b16 %v448, %v447
    %v547 = vpack.c.b16 %v450, %v449
    %v548 = vpack.c.b16 %v452, %v451
    %v549 = vpack.c.b16 %v454, %v453
    %v550 = vpack.c.b16 %v456, %v455
    %v551 = vpack.c.b16 %v458, %v457
    %v552 = vpack.c.b16 %v460, %v459
    %v553 = vpack.c.b16 %v462, %v461
    %v554 = vpack.c.b16 %v464, %v463
    %v555 = vpack.c.b16 %v466, %v465
    %v556 = vpack.c.b16 %v468, %v467
    %v557 = vpack.c.b16 %v470, %v469
    %v558 = vpack.c.b16 %v472, %v471
    %v559 = vpack.c.b16 %v474, %v473
    %v560 = vpack.c.b16 %v476, %v475
    %v561 = vpack.c.b16 %v478, %v477
    %v562 = vpack.c.b16 %v480, %v479
    %v563 = vpack.c.b16 %v482, %v481
    %v564 = vpack.c.b16 %v484, %v483
    %v565 = vpack.c.b16 %v486, %v485
    %v566 = vpack.c.b16 %v488, %v487
    %v567 = vpack.c.b16 %v490, %v489
    %v568 = vpack.c.b16 %v492, %v491
    %v569 = vpack.c.b16 %v494, %v493
    %v570 = vpack.c.b16 %v496, %v495
    %v571 = vpack.c.b16 %v498, %v497
    %v572 = vpack.c.b16 %v500, %v499
    %v573 = vpack.c.b16 %v502, %v501
    %v574 = vpack.c.b16 %v504, %v503
    %v575 = vpack.c.b16 %v506, %v505
    %v576 = vpack.c.b16 %v508, %v507
    %v577 = vpack.c.b16 %v510, %v509
    %v578 = vpack.c.b16 %v512, %v511
    %v579 = vpack.c.b16 %v514, %v513
    %v580 = vpack.c.b16 %v516, %v515
    %645 = vmatprep.subr.bf16.mxu0 0
    %646 = vmatpush1.bf16.xpose.msra.mxu0 %v517
    %647 = vmatprep.subr.bf16.mxu0 0
    %648 = vmatpush1.bf16.xpose.msra.mxu0 %v518
    %649 = vmatprep.subr.bf16.mxu0 0
    %650 = vmatpush1.bf16.xpose.msra.mxu0 %v519
    %651 = vmatprep.subr.bf16.mxu0 0
    %652 = vmatpush1.bf16.xpose.msra.mxu0 %v520
    %653 = vmatprep.subr.bf16.mxu0 0
    %654 = vmatpush1.bf16.xpose.msra.mxu0 %v521
    %655 = vmatprep.subr.bf16.mxu0 0
    %656 = vmatpush1.bf16.xpose.msra.mxu0 %v522
    %657 = vmatprep.subr.bf16.mxu0 0
    %658 = vmatpush1.bf16.xpose.msra.mxu0 %v523
    %659 = vmatprep.subr.bf16.mxu0 0
    %660 = vmatpush1.bf16.xpose.msra.mxu0 %v524
    %661 = vmatprep.subr.bf16.mxu0 0
    %662 = vmatpush1.bf16.xpose.msra.mxu0 %v525
    %663 = vmatprep.subr.bf16.mxu0 0
    %664 = vmatpush1.bf16.xpose.msra.mxu0 %v526
    %665 = vmatprep.subr.bf16.mxu0 0
    %666 = vmatpush1.bf16.xpose.msra.mxu0 %v527
    %667 = vmatprep.subr.bf16.mxu0 0
    %668 = vmatpush1.bf16.xpose.msra.mxu0 %v528
    %669 = vmatprep.subr.bf16.mxu0 0
    %670 = vmatpush1.bf16.xpose.msra.mxu0 %v529
    %671 = vmatprep.subr.bf16.mxu0 0
    %672 = vmatpush1.bf16.xpose.msra.mxu0 %v530
    %673 = vmatprep.subr.bf16.mxu0 0
    %674 = vmatpush1.bf16.xpose.msra.mxu0 %v531
    %675 = vmatprep.subr.bf16.mxu0 0
    %676 = vmatpush1.bf16.xpose.msra.mxu0 %v532
    %677 = vmatprep.mubr.bf16.mxu0 0
    %678 = vmatmul.mubr.bf16.gmra.mrb[0].mxu0 %v132
    %v679 = vpop.f32.mrb[0].mxu0
    %v680 = vadd.f32 0.0, %v679
    %v681 = vpop.f32.mrb[0].mxu0
    %v682 = vadd.f32 0.0, %v681
    %v683 = vpop.f32.mrb[0].mxu0
    %v684 = vpop.f32.mrb[0].mxu0
    %685 = vdwg.mxu0
    %686 = vmatprep.subr.bf16.mxu0 0
    %687 = vmatpush1.bf16.xpose.msra.mxu0 %v533
    %688 = vmatprep.subr.bf16.mxu0 0
    %689 = vmatpush1.bf16.xpose.msra.mxu0 %v534
    %690 = vmatprep.subr.bf16.mxu0 0
    %691 = vmatpush1.bf16.xpose.msra.mxu0 %v535
    %692 = vmatprep.subr.bf16.mxu0 0
    %693 = vmatpush1.bf16.xpose.msra.mxu0 %v536
    %694 = vmatprep.subr.bf16.mxu0 0
    %695 = vmatpush1.bf16.xpose.msra.mxu0 %v537
    %696 = vmatprep.subr.bf16.mxu0 0
    %697 = vmatpush1.bf16.xpose.msra.mxu0 %v538
    %698 = vmatprep.subr.bf16.mxu0 0
    %699 = vmatpush1.bf16.xpose.msra.mxu0 %v539
    %700 = vmatprep.subr.bf16.mxu0 0
    %701 = vmatpush1.bf16.xpose.msra.mxu0 %v540
    %702 = vmatprep.subr.bf16.mxu0 0
    %703 = vmatpush1.bf16.xpose.msra.mxu0 %v541
    %704 = vmatprep.subr.bf16.mxu0 0
    %705 = vmatpush1.bf16.xpose.msra.mxu0 %v542
    %706 = vmatprep.subr.bf16.mxu0 0
    %707 = vmatpush1.bf16.xpose.msra.mxu0 %v543
    %708 = vmatprep.subr.bf16.mxu0 0
    %709 = vmatpush1.bf16.xpose.msra.mxu0 %v544
    %710 = vmatprep.subr.bf16.mxu0 0
    %711 = vmatpush1.bf16.xpose.msra.mxu0 %v545
    %712 = vmatprep.subr.bf16.mxu0 0
    %713 = vmatpush1.bf16.xpose.msra.mxu0 %v546
    %714 = vmatprep.subr.bf16.mxu0 0
    %715 = vmatpush1.bf16.xpose.msra.mxu0 %v547
    %716 = vmatprep.subr.bf16.mxu0 0
    %717 = vmatpush1.bf16.xpose.msra.mxu0 %v548
    %718 = vmatprep.mubr.bf16.mxu0 0
    %719 = vmatmul.mubr.bf16.gmra.mrb[0].mxu0 %v132
    %v720 = vpop.f32.mrb[0].mxu0
    %v721 = vadd.f32 0.0, %v720
    %v722 = vpop.f32.mrb[0].mxu0
    %v723 = vadd.f32 0.0, %v722
    %v724 = vpop.f32.mrb[0].mxu0
    %v725 = vpop.f32.mrb[0].mxu0
    %726 = vdwg.mxu0
    %727 = vmatprep.subr.bf16.mxu0 0
    %728 = vmatpush1.bf16.xpose.msra.mxu0 %v549
    %729 = vmatprep.subr.bf16.mxu0 0
    %730 = vmatpush1.bf16.xpose.msra.mxu0 %v550
    %731 = vmatprep.subr.bf16.mxu0 0
    %732 = vmatpush1.bf16.xpose.msra.mxu0 %v551
    %733 = vmatprep.subr.bf16.mxu0 0
    %734 = vmatpush1.bf16.xpose.msra.mxu0 %v552
    %735 = vmatprep.subr.bf16.mxu0 0
    %736 = vmatpush1.bf16.xpose.msra.mxu0 %v553
    %737 = vmatprep.subr.bf16.mxu0 0
    %738 = vmatpush1.bf16.xpose.msra.mxu0 %v554
    %739 = vmatprep.subr.bf16.mxu0 0
    %740 = vmatpush1.bf16.xpose.msra.mxu0 %v555
    %741 = vmatprep.subr.bf16.mxu0 0
    %742 = vmatpush1.bf16.xpose.msra.mxu0 %v556
    %743 = vmatprep.subr.bf16.mxu0 0
    %744 = vmatpush1.bf16.xpose.msra.mxu0 %v557
    %745 = vmatprep.subr.bf16.mxu0 0
    %746 = vmatpush1.bf16.xpose.msra.mxu0 %v558
    %747 = vmatprep.subr.bf16.mxu0 0
    %748 = vmatpush1.bf16.xpose.msra.mxu0 %v559
    %749 = vmatprep.subr.bf16.mxu0 0
    %750 = vmatpush1.bf16.xpose.msra.mxu0 %v560
    %751 = vmatprep.subr.bf16.mxu0 0
    %752 = vmatpush1.bf16.xpose.msra.mxu0 %v561
    %753 = vmatprep.subr.bf16.mxu0 0
    %754 = vmatpush1.bf16.xpose.msra.mxu0 %v562
    %755 = vmatprep.subr.bf16.mxu0 0
    %756 = vmatpush1.bf16.xpose.msra.mxu0 %v563
    %757 = vmatprep.subr.bf16.mxu0 0
    %758 = vmatpush1.bf16.xpose.msra.mxu0 %v564
    %759 = vmatprep.mubr.bf16.mxu0 0
    %760 = vmatmul.mubr.bf16.gmra.mrb[0].mxu0 %v132
    %v761 = vpop.f32.mrb[0].mxu0
    %v762 = vadd.f32 0.0, %v761
    %v763 = vpop.f32.mrb[0].mxu0
    %v764 = vadd.f32 0.0, %v763
    %v765 = vpop.f32.mrb[0].mxu0
    %v766 = vpop.f32.mrb[0].mxu0
    %767 = vdwg.mxu0
    %768 = vmatprep.subr.bf16.mxu0 0
    %769 = vmatpush1.bf16.xpose.msra.mxu0 %v565
    %770 = vmatprep.subr.bf16.mxu0 0
    %771 = vmatpush1.bf16.xpose.msra.mxu0 %v566
    %772 = vmatprep.subr.bf16.mxu0 0
    %773 = vmatpush1.bf16.xpose.msra.mxu0 %v567
    %774 = vmatprep.subr.bf16.mxu0 0
    %775 = vmatpush1.bf16.xpose.msra.mxu0 %v568
    %776 = vmatprep.subr.bf16.mxu0 0
    %777 = vmatpush1.bf16.xpose.msra.mxu0 %v569
    %778 = vmatprep.subr.bf16.mxu0 0
    %779 = vmatpush1.bf16.xpose.msra.mxu0 %v570
    %780 = vmatprep.subr.bf16.mxu0 0
    %781 = vmatpush1.bf16.xpose.msra.mxu0 %v571
    %782 = vmatprep.subr.bf16.mxu0 0
    %783 = vmatpush1.bf16.xpose.msra.mxu0 %v572
    %784 = vmatprep.subr.bf16.mxu0 0
    %785 = vmatpush1.bf16.xpose.msra.mxu0 %v573
    %786 = vmatprep.subr.bf16.mxu0 0
    %787 = vmatpush1.bf16.xpose.msra.mxu0 %v574
    %788 = vmatprep.subr.bf16.mxu0 0
    %789 = vmatpush1.bf16.xpose.msra.mxu0 %v575
    %790 = vmatprep.subr.bf16.mxu0 0
    %791 = vmatpush1.bf16.xpose.msra.mxu0 %v576
    %792 = vmatprep.subr.bf16.mxu0 0
    %793 = vmatpush1.bf16.xpose.msra.mxu0 %v577
    %794 = vmatprep.subr.bf16.mxu0 0
    %795 = vmatpush1.bf16.xpose.msra.mxu0 %v578
    %796 = vmatprep.subr.bf16.mxu0 0
    %797 = vmatpush1.bf16.xpose.msra.mxu0 %v579
    %798 = vmatprep.subr.bf16.mxu0 0
    %799 = vmatpush1.bf16.xpose.msra.mxu0 %v580
    %800 = vmatprep.mubr.bf16.mxu0 0
    %801 = vmatmul.mubr.bf16.gmra.mrb[0].mxu0 %v132
    %v802 = vpop.f32.mrb[0].mxu0
    %v803 = vadd.f32 0.0, %v802
    %v804 = vpop.f32.mrb[0].mxu0
    %v805 = vadd.f32 0.0, %v804
    %v806 = vpop.f32.mrb[0].mxu0
    %v807 = vpop.f32.mrb[0].mxu0
    %808 = vdwg.mxu0
    %v809 = vmul.f32 %v680, %v680
    %v810 = vmul.f32 %v682, %v682
    %v811 = vmul.f32 %v721, %v721
    %v812 = vmul.f32 %v723, %v723
    %v813 = vmul.f32 %v762, %v762
    %v814 = vmul.f32 %v764, %v764
    %v815 = vmul.f32 %v803, %v803
    %v816 = vmul.f32 %v805, %v805
    %v817 = vadd.f32 %v809, %v810
    %v818 = vadd.f32 %v817, %v811
    %v819 = vadd.f32 %v818, %v812
    %v820 = vadd.f32 %v819, %v813
    %v821 = vadd.f32 %v820, %v814
    %v822 = vadd.f32 %v821, %v815
    %v823 = vadd.f32 %v822, %v816
    %824 = vadd.xlane.f32.xlu0 %v823
    %v825 = vpop.xlane.xlu0 %824
    %v826 = vrot.slane %v825, 4
    %v827 = vadd.f32 %v825, %v826
    %v828 = vrot.slane %v827, 2
    %v829 = vadd.f32 %v827, %v828
    %v830 = vrot.slane %v829, 1
    %v831 = vadd.f32 %v829, %v830
    %vm832 = vcmask 0
    %833 = vst.msk [vmem:[#allocation2] sm:$0x1] %vm832, %v831
    // Predicated region
    $region18: #{transport_jac_forward.11} parent=1 // pred_check
      _
    $region19: #{transport_jac_forward.11} parent=1 // pred_check_branch
      %835 = sbr.rel (0) target = $region21
    $region20: #{transport_jac_forward.11} parent=1 // pred_region
      %s837 = ssub.s32 16, 16
      %838 = vsyncadd [#allocation3], %s837
      %s840 = sshll.u32 [#allocation2], 4
      %s841 = int_to_ptr.vmem [resolvable:$true] %s840
      %843 = dma.vmem_to_hbm [thread:$0]  %s841, 16, %s4, [#allocation3]
    $region21: #{transport_jac_forward.11} parent=1 // pred_fallthru
      _
    // Predicated region
    $region22: #{transport_jac_forward.11} parent=1 // pred_check
      _
    $region23: #{transport_jac_forward.11} parent=1 // pred_check_branch
      %845 = sbr.rel (0) target = $region25
    $region24: #{transport_jac_forward.11} parent=1 // pred_region
      %846 = dma.done [#allocation3], 16
    $region25: #{transport_jac_forward.11} parent=1 // pred_fallthru
      _
    %847 = vsyncpa [#allocation3], 1

</llo_original>
